<compile_context>
chip_gen: v7x
topology: tpu7x:2x2x1
jax: 0.10.0
libtpu: 0.0.40
codegen_flags: <defaults>
</compile_context>

<pallas_src>
import jax
import jax.numpy as jnp
from jax.experimental import pallas as pl
from jax.experimental.pallas import tpu as pltpu

IN_FEATURES = 28 * 28   # 784
HIDDEN = 512
OUT_FEATURES = 10
OUT_PAD = 128           # lane-dense output width (avoids 10-wide masked partial stores)


def mlp_kernel(x_ref, w1_ref, b1_ref, w2_ref, b2_ref, w3_ref, b3_ref,
               w4_ref, b4_ref, o_ref):
    # In-kernel f32 -> bf16 cast of the input tile (no wrapper pad/cast pass).
    x = x_ref[...].astype(jnp.bfloat16)
    # linear1 + relu (bf16 MXU operands, f32 accumulate, f32 bias/ReLU on VPU)
    h = jnp.dot(x, w1_ref[...], preferred_element_type=jnp.float32)
    h = jnp.maximum(h + b1_ref[...], 0.0).astype(jnp.bfloat16)
    # linear2 + relu
    h = jnp.dot(h, w2_ref[...], preferred_element_type=jnp.float32)
    h = jnp.maximum(h + b2_ref[...], 0.0).astype(jnp.bfloat16)
    # linear3 + relu
    h = jnp.dot(h, w3_ref[...], preferred_element_type=jnp.float32)
    h = jnp.maximum(h + b3_ref[...], 0.0).astype(jnp.bfloat16)
    # linear4 (no activation), logits in f32
    h = jnp.dot(h, w4_ref[...], preferred_element_type=jnp.float32)
    o_ref[...] = (h + b4_ref[...]).astype(o_ref.dtype)


def init_params(key):
    """PyTorch nn.Linear-style init (U[-1/sqrt(fan_in), +1/sqrt(fan_in)]), f32.
    Weights stored as [in_features, out_features] (transposed vs. torch)."""
    dims = [(IN_FEATURES, HIDDEN), (HIDDEN, HIDDEN), (HIDDEN, HIDDEN), (HIDDEN, OUT_FEATURES)]
    params = {}
    for i, (fan_in, fan_out) in enumerate(dims, start=1):
        key, kw, kb = jax.random.split(key, 3)
        bound = 1.0 / jnp.sqrt(jnp.float32(fan_in))
        w = jax.random.uniform(kw, (fan_in, fan_out), jnp.float32, -bound, bound)
        b = jax.random.uniform(kb, (1, fan_out), jnp.float32, -bound, bound)
        params[f"l{i}"] = (w, b)
    return params


def prepare_params(params):
    """One-time (not per call) prep for the kernel:
      w1..w3 cast to bf16 unchanged; w4: [512,10] -> [512,128] zero-padded cols
      (bf16), b4 -> [1,128]; biases stay f32 for the f32 epilogue.
    TODO(synk): optional int8 (v5e/v6e) / fp8-e4m3 (v7x) weight quantization with
    per-output-channel scales folded into the bias epilogue would halve weight DMA."""
    w1, b1 = params["l1"]
    w2, b2 = params["l2"]
    w3, b3 = params["l3"]
    w4, b4 = params["l4"]
    w4p = jnp.pad(w4, ((0, 0), (0, OUT_PAD - OUT_FEATURES)))
    b4p = jnp.pad(b4, ((0, 0), (0, OUT_PAD - OUT_FEATURES)))
    bf16 = lambda a: a.astype(jnp.bfloat16)
    f32 = lambda a: a.astype(jnp.float32)
    return dict(w1=bf16(w1), b1=f32(b1),
                w2=bf16(w2), b2=f32(b2),
                w3=bf16(w3), b3=f32(b3),
                w4=bf16(w4p), b4=f32(b4p))


def _pick_tile(batch):
    """Batch tile: 256 rows only when it still leaves >=2 grid steps (keeps both
    v7x TensorCores busy, exploits the 256-wide MXU on v6e/v7x); 128 otherwise;
    tiny batches use a single full-extent tile (no padding required)."""
    if batch >= 512:
        return 256
    if batch >= 128:
        return 128
    return batch


def mnist_model_forward(x, p):
    """x: [B, 784] float32 (un-padded, un-cast). p: output of prepare_params.
    Returns [B, 10] float32."""
    B = x.shape[0]
    tm = _pick_tile(B)
    n_tiles = pl.cdiv(B, tm)   # trailing partial tile handled by Pallas edge masking

    full = lambda a: pl.BlockSpec(a.shape, lambda i: (0, 0))  # weights/bias resident

    out = pl.pallas_call(
        mlp_kernel,
        out_shape=jax.ShapeDtypeStruct((B, OUT_PAD), jnp.float32),
        grid=(n_tiles,),
        in_specs=[
            # 784 equals the full last dim, so the (8,128) rule is satisfied
            # without padding; tm is a multiple of 8 (or equals B for tiny B).
            pl.BlockSpec((tm, IN_FEATURES), lambda i: (i, 0)),
            full(p["w1"]), full(p["b1"]),
            full(p["w2"]), full(p["b2"]),
            full(p["w3"]), full(p["b3"]),
            full(p["w4"]), full(p["b4"]),
        ],
        out_specs=pl.BlockSpec((tm, OUT_PAD), lambda i: (i, 0)),
        compiler_params=pltpu.CompilerParams(
            dimension_semantics=("parallel",),        # shard batch tiles across TCs (v7x)
            vmem_limit_bytes=(16 << 20) if tm >= 256 else (12 << 20),
        ),
    )(x, p["w1"], p["b1"], p["w2"], p["b2"], p["w3"], p["b3"], p["w4"], p["b4"])

    return out[:, :OUT_FEATURES]


def reference_forward(x, params):
    """Pure-JAX f32 reference matching the PyTorch module."""
    h = x
    for name in ("l1", "l2", "l3"):
        w, b = params[name]
        h = jnp.maximum(h @ w + b, 0.0)
    w, b = params["l4"]
    return h @ w + b


if __name__ == "__main__":
    key = jax.random.PRNGKey(0)
    key, kx = jax.random.split(key)

    params = init_params(key)
    prepared = prepare_params(params)

    # 256: two full 128-row tiles (parallel grid). 200: exercises the masked
    # partial trailing tile (no batch padding). 32: single full-extent tile.
    for batch in (256, 200, 32):
        x = jax.random.normal(jax.random.fold_in(kx, batch),
                              (batch, IN_FEATURES), jnp.float32)
        out = jax.block_until_ready(mnist_model_forward(x, prepared))
        ref = reference_forward(x, params)
        assert out.shape == (batch, OUT_FEATURES), out.shape
        err = jnp.max(jnp.abs(out - ref))
        # bf16 weights/activations -> loosened tolerance vs. the f32 reference.
        assert jnp.allclose(out, ref, atol=5e-2, rtol=5e-2), \
            f"B={batch}: max abs err {err}"

    print("KERNEL_OK")
</pallas_src>

<mosaic_0001>
module attributes {stable_mosaic.version = 11 : i64} {
  func.func @mlp_kernel(%arg0: i32, %arg1: memref<128x784xf32, #tpu.memory_space<vmem>>, %arg2: memref<784x512xbf16, #tpu.memory_space<vmem>>, %arg3: memref<1x512xf32, #tpu.memory_space<vmem>>, %arg4: memref<512x512xbf16, #tpu.memory_space<vmem>>, %arg5: memref<1x512xf32, #tpu.memory_space<vmem>>, %arg6: memref<512x512xbf16, #tpu.memory_space<vmem>>, %arg7: memref<1x512xf32, #tpu.memory_space<vmem>>, %arg8: memref<512x128xbf16, #tpu.memory_space<vmem>>, %arg9: memref<1x128xf32, #tpu.memory_space<vmem>>, %arg10: memref<128x128xf32, #tpu.memory_space<vmem>>) attributes {dimension_semantics = [#tpu.dimension_semantics<parallel>], iteration_bounds = array<i64: 2>, scalar_prefetch = 0 : i64, scratch_operands = 0 : i64, tpu.core_type = #tpu.core_type<tc>, window_params = [{transform_indices = @transform_0, window_bounds = array<i64: 128, 784>}, {pipeline_mode = #tpu.pipeline_mode<synchronous>, transform_indices = @transform_1, window_bounds = array<i64: 784, 512>}, {pipeline_mode = #tpu.pipeline_mode<synchronous>, transform_indices = @transform_2, window_bounds = array<i64: 1, 512>}, {pipeline_mode = #tpu.pipeline_mode<synchronous>, transform_indices = @transform_3, window_bounds = array<i64: 512, 512>}, {pipeline_mode = #tpu.pipeline_mode<synchronous>, transform_indices = @transform_4, window_bounds = array<i64: 1, 512>}, {pipeline_mode = #tpu.pipeline_mode<synchronous>, transform_indices = @transform_5, window_bounds = array<i64: 512, 512>}, {pipeline_mode = #tpu.pipeline_mode<synchronous>, transform_indices = @transform_6, window_bounds = array<i64: 1, 512>}, {pipeline_mode = #tpu.pipeline_mode<synchronous>, transform_indices = @transform_7, window_bounds = array<i64: 512, 128>}, {pipeline_mode = #tpu.pipeline_mode<synchronous>, transform_indices = @transform_8, window_bounds = array<i64: 1, 128>}, {transform_indices = @transform_9, window_bounds = array<i64: 128, 128>}]} {
    %c0 = arith.constant 0 : index
    %c0_0 = arith.constant 0 : index
    %0 = vector.load %arg1[%c0, %c0_0] : memref<128x784xf32, #tpu.memory_space<vmem>>, vector<128x784xf32>
    %1 = arith.truncf %0 : vector<128x784xf32> to vector<128x784xbf16>
    %c0_1 = arith.constant 0 : index
    %c0_2 = arith.constant 0 : index
    %2 = vector.load %arg2[%c0_1, %c0_2] : memref<784x512xbf16, #tpu.memory_space<vmem>>, vector<784x512xbf16>
    %cst = arith.constant dense<0.000000e+00> : vector<128x512xf32>
    %3 = tpu.matmul %1, %2, %cst {dimension_numbers = #tpu.dot_dimension_numbers<[1], [0], [0], [1], [0, 0, 1, 1], [], []>} : vector<128x784xbf16>, vector<784x512xbf16>, vector<128x512xf32> -> vector<128x512xf32>
    %c0_3 = arith.constant 0 : index
    %c0_4 = arith.constant 0 : index
    %4 = vector.load %arg3[%c0_3, %c0_4] : memref<1x512xf32, #tpu.memory_space<vmem>>, vector<1x512xf32>
    %5 = vector.broadcast %4 : vector<1x512xf32> to vector<128x512xf32>
    %6 = arith.addf %3, %5 : vector<128x512xf32>
    %cst_5 = arith.constant 0.000000e+00 : f32
    %7 = vector.broadcast %cst_5 : f32 to vector<128x512xf32>
    %8 = arith.maximumf %6, %7 : vector<128x512xf32>
    %9 = arith.truncf %8 : vector<128x512xf32> to vector<128x512xbf16>
    %c0_6 = arith.constant 0 : index
    %c0_7 = arith.constant 0 : index
    %10 = vector.load %arg4[%c0_6, %c0_7] : memref<512x512xbf16, #tpu.memory_space<vmem>>, vector<512x512xbf16>
    %cst_8 = arith.constant dense<0.000000e+00> : vector<128x512xf32>
    %11 = tpu.matmul %9, %10, %cst_8 {dimension_numbers = #tpu.dot_dimension_numbers<[1], [0], [0], [1], [0, 0, 1, 1], [], []>} : vector<128x512xbf16>, vector<512x512xbf16>, vector<128x512xf32> -> vector<128x512xf32>
    %c0_9 = arith.constant 0 : index
    %c0_10 = arith.constant 0 : index
    %12 = vector.load %arg5[%c0_9, %c0_10] : memref<1x512xf32, #tpu.memory_space<vmem>>, vector<1x512xf32>
    %13 = vector.broadcast %12 : vector<1x512xf32> to vector<128x512xf32>
    %14 = arith.addf %11, %13 : vector<128x512xf32>
    %cst_11 = arith.constant 0.000000e+00 : f32
    %15 = vector.broadcast %cst_11 : f32 to vector<128x512xf32>
    %16 = arith.maximumf %14, %15 : vector<128x512xf32>
    %17 = arith.truncf %16 : vector<128x512xf32> to vector<128x512xbf16>
    %c0_12 = arith.constant 0 : index
    %c0_13 = arith.constant 0 : index
    %18 = vector.load %arg6[%c0_12, %c0_13] : memref<512x512xbf16, #tpu.memory_space<vmem>>, vector<512x512xbf16>
    %cst_14 = arith.constant dense<0.000000e+00> : vector<128x512xf32>
    %19 = tpu.matmul %17, %18, %cst_14 {dimension_numbers = #tpu.dot_dimension_numbers<[1], [0], [0], [1], [0, 0, 1, 1], [], []>} : vector<128x512xbf16>, vector<512x512xbf16>, vector<128x512xf32> -> vector<128x512xf32>
    %c0_15 = arith.constant 0 : index
    %c0_16 = arith.constant 0 : index
    %20 = vector.load %arg7[%c0_15, %c0_16] : memref<1x512xf32, #tpu.memory_space<vmem>>, vector<1x512xf32>
    %21 = vector.broadcast %20 : vector<1x512xf32> to vector<128x512xf32>
    %22 = arith.addf %19, %21 : vector<128x512xf32>
    %cst_17 = arith.constant 0.000000e+00 : f32
    %23 = vector.broadcast %cst_17 : f32 to vector<128x512xf32>
    %24 = arith.maximumf %22, %23 : vector<128x512xf32>
    %25 = arith.truncf %24 : vector<128x512xf32> to vector<128x512xbf16>
    %c0_18 = arith.constant 0 : index
    %c0_19 = arith.constant 0 : index
    %26 = vector.load %arg8[%c0_18, %c0_19] : memref<512x128xbf16, #tpu.memory_space<vmem>>, vector<512x128xbf16>
    %cst_20 = arith.constant dense<0.000000e+00> : vector<128x128xf32>
    %27 = tpu.matmul %25, %26, %cst_20 {dimension_numbers = #tpu.dot_dimension_numbers<[1], [0], [0], [1], [0, 0, 1, 1], [], []>} : vector<128x512xbf16>, vector<512x128xbf16>, vector<128x128xf32> -> vector<128x128xf32>
    %c0_21 = arith.constant 0 : index
    %c0_22 = arith.constant 0 : index
    %28 = vector.load %arg9[%c0_21, %c0_22] : memref<1x128xf32, #tpu.memory_space<vmem>>, vector<1x128xf32>
    %29 = vector.broadcast %28 : vector<1x128xf32> to vector<128x128xf32>
    %30 = arith.addf %27, %29 : vector<128x128xf32>
    %c0_23 = arith.constant 0 : index
    %c0_24 = arith.constant 0 : index
    %31 = vector.load %arg10[%c0_23, %c0_24] : memref<128x128xf32, #tpu.memory_space<vmem>>, vector<128x128xf32>
    tpu.vector_store %arg10[%c0_23, %c0_24], %30 {strides = array<i32>} : memref<128x128xf32, #tpu.memory_space<vmem>>, vector<128x128xf32>,
    return
  }
  func.func @transform_0(%arg0: i32) -> (i32, i32) {
    %c0_i32 = arith.constant 0 : i32
    %c0_i32_0 = arith.constant 0 : i32
    return %arg0, %c0_i32 : i32, i32
  }
  func.func @transform_1(%arg0: i32) -> (i32, i32) {
    %c0_i32 = arith.constant 0 : i32
    %c0_i32_0 = arith.constant 0 : i32
    %c0_i32_1 = arith.constant 0 : i32
    return %c0_i32, %c0_i32_0 : i32, i32
  }
  func.func @transform_2(%arg0: i32) -> (i32, i32) {
    %c0_i32 = arith.constant 0 : i32
    %c0_i32_0 = arith.constant 0 : i32
    %c0_i32_1 = arith.constant 0 : i32
    return %c0_i32, %c0_i32_0 : i32, i32
  }
  func.func @transform_3(%arg0: i32) -> (i32, i32) {
    %c0_i32 = arith.constant 0 : i32
    %c0_i32_0 = arith.constant 0 : i32
    %c0_i32_1 = arith.constant 0 : i32
    return %c0_i32, %c0_i32_0 : i32, i32
  }
  func.func @transform_4(%arg0: i32) -> (i32, i32) {
    %c0_i32 = arith.constant 0 : i32
    %c0_i32_0 = arith.constant 0 : i32
    %c0_i32_1 = arith.constant 0 : i32
    return %c0_i32, %c0_i32_0 : i32, i32
  }
  func.func @transform_5(%arg0: i32) -> (i32, i32) {
    %c0_i32 = arith.constant 0 : i32
    %c0_i32_0 = arith.constant 0 : i32
    %c0_i32_1 = arith.constant 0 : i32
    return %c0_i32, %c0_i32_0 : i32, i32
  }
  func.func @transform_6(%arg0: i32) -> (i32, i32) {
    %c0_i32 = arith.constant 0 : i32
    %c0_i32_0 = arith.constant 0 : i32
    %c0_i32_1 = arith.constant 0 : i32
    return %c0_i32, %c0_i32_0 : i32, i32
  }
  func.func @transform_7(%arg0: i32) -> (i32, i32) {
    %c0_i32 = arith.constant 0 : i32
    %c0_i32_0 = arith.constant 0 : i32
    %c0_i32_1 = arith.constant 0 : i32
    return %c0_i32, %c0_i32_0 : i32, i32
  }
  func.func @transform_8(%arg0: i32) -> (i32, i32) {
    %c0_i32 = arith.constant 0 : i32
    %c0_i32_0 = arith.constant 0 : i32
    %c0_i32_1 = arith.constant 0 : i32
    return %c0_i32, %c0_i32_0 : i32, i32
  }
  func.func @transform_9(%arg0: i32) -> (i32, i32) {
    %c0_i32 = arith.constant 0 : i32
    %c0_i32_0 = arith.constant 0 : i32
    return %arg0, %c0_i32 : i32, i32
  }
}

</mosaic_0001>

<llo_original>
// kernel: tpu_custom_call.1
$region0: #{tpu_custom_call.1}
  #allocation0 [shape = 'u32[]', space=smem, size = 0x4, offset = 0x4, fixed_abs, tag = 'smem constant byte address 0x4 - core index']
  #allocation1 [shape = 'u32[144,128]{1,0:T(1,128)}', space=vmem, size = 0x12000, scoped, tag = 'internal scratch']
  %s0 = inlined_call_operand.vmem [shape: f32[256,784], index: 0, kind: input, shape index: {}]
  %s1 = inlined_call_operand.vmem [shape: bf16[784,512], index: 1, kind: input, shape index: {}]
  %s2 = inlined_call_operand.vmem [shape: f32[1,512], index: 2, kind: input, shape index: {}]
  %s3 = inlined_call_operand.vmem [shape: bf16[512,512], index: 3, kind: input, shape index: {}]
  %s4 = inlined_call_operand.vmem [shape: f32[1,512], index: 4, kind: input, shape index: {}]
  %s5 = inlined_call_operand.hbm [shape: bf16[512,512], index: 5, kind: input, shape index: {}]
  %s6 = inlined_call_operand.vmem [shape: f32[1,512], index: 6, kind: input, shape index: {}]
  %s7 = inlined_call_operand.vmem [shape: bf16[512,128], index: 7, kind: input, shape index: {}]
  %s8 = inlined_call_operand.vmem [shape: f32[1,128], index: 8, kind: input, shape index: {}]
  %s9 = inlined_call_operand.hbm [shape: f32[256,128], index: 9, kind: output, shape index: {}]
  %s10 = sld [smem:[#allocation0]]
  $region73: #{tpu_custom_call.1} parent=0
    _
  %s12 = ssub.s32 1, %s10
  %s13 = scalar_select 0, %s12, %s10
  $region1: #{tpu_custom_call.1} parent=0
    #allocation2 [shape = 'u8[524288]{0}', space=vmem, size = 0x80000, scoped, tag = 'input window, operand 5, single buffered']
    #allocation3 [shape = 's32[2]{0}', space=sflag, size = 0x8, scoped, tag = 'scoped memory for tpu_custom_call.1']
    #allocation4 [shape = 's32[2]{0}', space=sflag, size = 0x8, scoped, tag = 'scoped memory for tpu_custom_call.1']
    #allocation5 [shape = 'u8[131072]{0}', space=vmem, size = 0x20000, scoped, tag = 'output window, operand 0']
    %14 = vsyncpa [#allocation3], 0
    %15 = vsyncpa [#allocation4], 0
    %s16 = scalar_lea.sflag [#allocation4], 1
    %17 = vsyncpa %s16, 0
    loop: start=0, step=1, limit=4
    $region2: #{tpu_custom_call.1} parent=1 // loop_pre_header
      _
    $region3: #{tpu_custom_call.1} parent=1 // loop_header
      %s19 = sphi 0, %s23
      %p20 = scmp.ge.s32.totalorder %s19, 4
      %s29 = sphi 0, %s31
      %s32 = sphi 0, %s29
      %s33 = sphi 0, %s32
      %s49 = sphi 0, %s33
      %s53 = sphi 0, %s53
      %s55 = sphi 0, %s53
      %s56 = sphi 0, %s55
      %s70 = sphi 0, %s56
      %s74 = sphi 0, %s74
      %s76 = sphi 0, %s74
      %s77 = sphi 0, %s76
      %s91 = sphi 0, %s77
      %s95 = sphi 0, %s95
      %s97 = sphi 0, %s95
      %s98 = sphi 0, %s97
      %s112 = sphi 0, %s98
      %s116 = sphi 0, %s116
      %s118 = sphi 0, %s116
      %s119 = sphi 0, %s118
      %s133 = sphi 0, %s119
      %s137 = sphi 0, %s137
      %s139 = sphi 0, %s137
      %s140 = sphi 0, %s139
      %s154 = sphi 0, %s140
      %s158 = sphi 0, %s158
      %s160 = sphi 0, %s158
      %s161 = sphi 0, %s160
      %s175 = sphi 0, %s161
      %s179 = sphi 0, %s179
      %s181 = sphi 0, %s179
      %s182 = sphi 0, %s181
      %s196 = sphi 0, %s182
      %s200 = sphi 0, %s200
      %s202 = sphi 0, %s200
      %s203 = sphi 0, %s202
      %s217 = sphi 0, %s203
      %s223 = sphi 0, %s225
      %s226 = sphi 0, %s223
      %s227 = sphi 0, %s226
      %s243 = sphi 0, %s227
    $region4: #{tpu_custom_call.1} parent=1 // loop_header_branch
      %22 = sbr.rel (%p20) target = $region8
    $region5: #{tpu_custom_call.1} parent=1 // loop_body
      %s24 = ssub.s32 %s19, 1
      %s25 = ssub.s32 %s19, 2
      %s26 = sadd.s32 %s19, 1
      %s27 = ssub.s32 %s19, %s26
      %p28 = scmp.eq.s32.totalorder %s27, 0
      %s30 = sadd.s32 %s29, 1
      %s31 = scalar_select %p28, %s29, %s30
      %p34 = pneg %p28
      %p35 = scmp.eq.s32.totalorder %s19, 1
      %p36 = por %p34, %p35
      %p37 = scmp.ne.s32.totalorder %s29, %s32
      %p38 = scmp.eq.s32.totalorder %s19, 0
      %p39 = por %p37, %p38
      %p40 = scmp.ne.s32.totalorder %s29, %s32
      %p41 = scmp.eq.s32.totalorder %s24, 1
      %p42 = por %p40, %p41
      %p43 = scmp.ne.s32.totalorder %s32, %s33
      %p44 = scmp.eq.s32.totalorder %s24, 0
      %p45 = por %p43, %p44
      %p46 = scmp.ne.s32.totalorder %s32, %s33
      %p47 = scmp.eq.s32.totalorder %s25, 1
      %p48 = por %p46, %p47
      %p50 = scmp.ne.s32.totalorder %s33, %s49
      %p51 = scmp.eq.s32.totalorder %s25, 0
      %p52 = por %p50, %p51
      %s54 = sadd.s32 %s53, 1
      %p57 = scmp.eq.s32.totalorder %s19, 1
      %p58 = scmp.ne.s32.totalorder %s53, %s55
      %p59 = scmp.eq.s32.totalorder %s19, 0
      %p60 = por %p58, %p59
      %p61 = scmp.ne.s32.totalorder %s53, %s55
      %p62 = scmp.eq.s32.totalorder %s24, 1
      %p63 = por %p61, %p62
      %p64 = scmp.ne.s32.totalorder %s55, %s56
      %p65 = scmp.eq.s32.totalorder %s24, 0
      %p66 = por %p64, %p65
      %p67 = scmp.ne.s32.totalorder %s55, %s56
      %p68 = scmp.eq.s32.totalorder %s25, 1
      %p69 = por %p67, %p68
      %p71 = scmp.ne.s32.totalorder %s56, %s70
      %p72 = scmp.eq.s32.totalorder %s25, 0
      %p73 = por %p71, %p72
      %s75 = sadd.s32 %s74, 1
      %p78 = scmp.eq.s32.totalorder %s19, 1
      %p79 = scmp.ne.s32.totalorder %s74, %s76
      %p80 = scmp.eq.s32.totalorder %s19, 0
      %p81 = por %p79, %p80
      %p82 = scmp.ne.s32.totalorder %s74, %s76
      %p83 = scmp.eq.s32.totalorder %s24, 1
      %p84 = por %p82, %p83
      %p85 = scmp.ne.s32.totalorder %s76, %s77
      %p86 = scmp.eq.s32.totalorder %s24, 0
      %p87 = por %p85, %p86
      %p88 = scmp.ne.s32.totalorder %s76, %s77
      %p89 = scmp.eq.s32.totalorder %s25, 1
      %p90 = por %p88, %p89
      %p92 = scmp.ne.s32.totalorder %s77, %s91
      %p93 = scmp.eq.s32.totalorder %s25, 0
      %p94 = por %p92, %p93
      %s96 = sadd.s32 %s95, 1
      %p99 = scmp.eq.s32.totalorder %s19, 1
      %p100 = scmp.ne.s32.totalorder %s95, %s97
      %p101 = scmp.eq.s32.totalorder %s19, 0
      %p102 = por %p100, %p101
      %p103 = scmp.ne.s32.totalorder %s95, %s97
      %p104 = scmp.eq.s32.totalorder %s24, 1
      %p105 = por %p103, %p104
      %p106 = scmp.ne.s32.totalorder %s97, %s98
      %p107 = scmp.eq.s32.totalorder %s24, 0
      %p108 = por %p106, %p107
      %p109 = scmp.ne.s32.totalorder %s97, %s98
      %p110 = scmp.eq.s32.totalorder %s25, 1
      %p111 = por %p109, %p110
      %p113 = scmp.ne.s32.totalorder %s98, %s112
      %p114 = scmp.eq.s32.totalorder %s25, 0
      %p115 = por %p113, %p114
      %s117 = sadd.s32 %s116, 1
      %p120 = scmp.eq.s32.totalorder %s19, 1
      %p121 = scmp.ne.s32.totalorder %s116, %s118
      %p122 = scmp.eq.s32.totalorder %s19, 0
      %p123 = por %p121, %p122
      %p124 = scmp.ne.s32.totalorder %s116, %s118
      %p125 = scmp.eq.s32.totalorder %s24, 1
      %p126 = por %p124, %p125
      %p127 = scmp.ne.s32.totalorder %s118, %s119
      %p128 = scmp.eq.s32.totalorder %s24, 0
      %p129 = por %p127, %p128
      %p130 = scmp.ne.s32.totalorder %s118, %s119
      %p131 = scmp.eq.s32.totalorder %s25, 1
      %p132 = por %p130, %p131
      %p134 = scmp.ne.s32.totalorder %s119, %s133
      %p135 = scmp.eq.s32.totalorder %s25, 0
      %p136 = por %p134, %p135
      %s138 = sadd.s32 %s137, 1
      %p141 = scmp.eq.s32.totalorder %s19, 1
      %p142 = scmp.ne.s32.totalorder %s137, %s139
      %p143 = scmp.eq.s32.totalorder %s19, 0
      %p144 = por %p142, %p143
      %p145 = scmp.ne.s32.totalorder %s137, %s139
      %p146 = scmp.eq.s32.totalorder %s24, 1
      %p147 = por %p145, %p146
      %p148 = scmp.ne.s32.totalorder %s139, %s140
      %p149 = scmp.eq.s32.totalorder %s24, 0
      %p150 = por %p148, %p149
      %p151 = scmp.ne.s32.totalorder %s139, %s140
      %p152 = scmp.eq.s32.totalorder %s25, 1
      %p153 = por %p151, %p152
      %p155 = scmp.ne.s32.totalorder %s140, %s154
      %p156 = scmp.eq.s32.totalorder %s25, 0
      %p157 = por %p155, %p156
      %s159 = sadd.s32 %s158, 1
      %p162 = scmp.eq.s32.totalorder %s19, 1
      %p163 = scmp.ne.s32.totalorder %s158, %s160
      %p164 = scmp.eq.s32.totalorder %s19, 0
      %p165 = por %p163, %p164
      %p166 = scmp.ne.s32.totalorder %s158, %s160
      %p167 = scmp.eq.s32.totalorder %s24, 1
      %p168 = por %p166, %p167
      %p169 = scmp.ne.s32.totalorder %s160, %s161
      %p170 = scmp.eq.s32.totalorder %s24, 0
      %p171 = por %p169, %p170
      %p172 = scmp.ne.s32.totalorder %s160, %s161
      %p173 = scmp.eq.s32.totalorder %s25, 1
      %p174 = por %p172, %p173
      %p176 = scmp.ne.s32.totalorder %s161, %s175
      %p177 = scmp.eq.s32.totalorder %s25, 0
      %p178 = por %p176, %p177
      %s180 = sadd.s32 %s179, 1
      %p183 = scmp.eq.s32.totalorder %s19, 1
      %p184 = scmp.ne.s32.totalorder %s179, %s181
      %p185 = scmp.eq.s32.totalorder %s19, 0
      %p186 = por %p184, %p185
      %p187 = scmp.ne.s32.totalorder %s179, %s181
      %p188 = scmp.eq.s32.totalorder %s24, 1
      %p189 = por %p187, %p188
      %p190 = scmp.ne.s32.totalorder %s181, %s182
      %p191 = scmp.eq.s32.totalorder %s24, 0
      %p192 = por %p190, %p191
      %p193 = scmp.ne.s32.totalorder %s181, %s182
      %p194 = scmp.eq.s32.totalorder %s25, 1
      %p195 = por %p193, %p194
      %p197 = scmp.ne.s32.totalorder %s182, %s196
      %p198 = scmp.eq.s32.totalorder %s25, 0
      %p199 = por %p197, %p198
      %s201 = sadd.s32 %s200, 1
      %p204 = scmp.eq.s32.totalorder %s19, 1
      %p205 = scmp.ne.s32.totalorder %s200, %s202
      %p206 = scmp.eq.s32.totalorder %s19, 0
      %p207 = por %p205, %p206
      %p208 = scmp.ne.s32.totalorder %s200, %s202
      %p209 = scmp.eq.s32.totalorder %s24, 1
      %p210 = por %p208, %p209
      %p211 = scmp.ne.s32.totalorder %s202, %s203
      %p212 = scmp.eq.s32.totalorder %s24, 0
      %p213 = por %p211, %p212
      %p214 = scmp.ne.s32.totalorder %s202, %s203
      %p215 = scmp.eq.s32.totalorder %s25, 1
      %p216 = por %p214, %p215
      %p218 = scmp.ne.s32.totalorder %s203, %s217
      %p219 = scmp.eq.s32.totalorder %s25, 0
      %p220 = por %p218, %p219
      %s221 = ssub.s32 %s19, %s26
      %p222 = scmp.eq.s32.totalorder %s221, 0
      %s224 = sadd.s32 %s223, 1
      %s225 = scalar_select %p222, %s223, %s224
      %p228 = pneg %p222
      %p229 = scmp.eq.s32.totalorder %s19, 1
      %p230 = por %p228, %p229
      %p231 = scmp.ne.s32.totalorder %s223, %s226
      %p232 = scmp.eq.s32.totalorder %s19, 0
      %p233 = por %p231, %p232
      %p234 = scmp.ne.s32.totalorder %s223, %s226
      %p235 = scmp.eq.s32.totalorder %s24, 1
      %p236 = por %p234, %p235
      %p237 = scmp.ne.s32.totalorder %s226, %s227
      %p238 = scmp.eq.s32.totalorder %s24, 0
      %p239 = por %p237, %p238
      %p240 = scmp.ne.s32.totalorder %s226, %s227
      %p241 = scmp.eq.s32.totalorder %s25, 1
      %p242 = por %p240, %p241
      %p244 = scmp.ne.s32.totalorder %s227, %s243
      %p245 = scmp.eq.s32.totalorder %s25, 0
      %p246 = por %p244, %p245
      %p247 = scmp.le.s32.totalorder 1, %s19
      %p248 = scmp.lt.s32.totalorder %s19, 3
      %p249 = pnand %p247, %p248
      %p250 = pneg %p249
      // Predicated region
      $region9: #{tpu_custom_call.1} parent=5 // pred_check
        _
      $region10: #{tpu_custom_call.1} parent=5 // pred_check_branch
        %252 = sbr.rel (%p249) target = $region12
      $region11: #{tpu_custom_call.1} parent=5 // pred_region
        %s253 = ssub.s32 %s19, 1
        // Predicated region
        $region13: #{tpu_custom_call.1} parent=11 // pred_check
          %p254 = pneg %p66
        $region14: #{tpu_custom_call.1} parent=11 // pred_check_branch
          %256 = sbr.rel (%p254) target = $region16
        $region15: #{tpu_custom_call.1} parent=11 // pred_region
          _
        $region16: #{tpu_custom_call.1} parent=11 // pred_fallthru
          _
        // Predicated region
        $region17: #{tpu_custom_call.1} parent=11 // pred_check
          %p257 = pneg %p87
        $region18: #{tpu_custom_call.1} parent=11 // pred_check_branch
          %259 = sbr.rel (%p257) target = $region20
        $region19: #{tpu_custom_call.1} parent=11 // pred_region
          _
        $region20: #{tpu_custom_call.1} parent=11 // pred_fallthru
          _
        // Predicated region
        $region21: #{tpu_custom_call.1} parent=11 // pred_check
          %p260 = pneg %p108
        $region22: #{tpu_custom_call.1} parent=11 // pred_check_branch
          %262 = sbr.rel (%p260) target = $region24
        $region23: #{tpu_custom_call.1} parent=11 // pred_region
          _
        $region24: #{tpu_custom_call.1} parent=11 // pred_fallthru
          _
        // Predicated region
        $region25: #{tpu_custom_call.1} parent=11 // pred_check
          %p263 = pneg %p129
        $region26: #{tpu_custom_call.1} parent=11 // pred_check_branch
          %265 = sbr.rel (%p263) target = $region28
        $region27: #{tpu_custom_call.1} parent=11 // pred_region
          _
        $region28: #{tpu_custom_call.1} parent=11 // pred_fallthru
          _
        // Predicated region
        $region29: #{tpu_custom_call.1} parent=11 // pred_check
          %p266 = pneg %p150
        $region30: #{tpu_custom_call.1} parent=11 // pred_check_branch
          %268 = sbr.rel (%p266) target = $region32
        $region31: #{tpu_custom_call.1} parent=11 // pred_region
          %s270 = ssub.s32 16384, 16384
          %271 = vsyncadd [#allocation3], %s270
          %s272 = sshll.u32 [#allocation2], 4
          %s273 = int_to_ptr.vmem [resolvable:$true] %s272
          %278 = dma.hbm_to_vmem [thread:$0]  %s5, 16384, %s273, [#allocation3], 256, 256, 16
        $region32: #{tpu_custom_call.1} parent=11 // pred_fallthru
          _
        // Predicated region
        $region33: #{tpu_custom_call.1} parent=11 // pred_check
          %p279 = pneg %p171
        $region34: #{tpu_custom_call.1} parent=11 // pred_check_branch
          %281 = sbr.rel (%p279) target = $region36
        $region35: #{tpu_custom_call.1} parent=11 // pred_region
          _
        $region36: #{tpu_custom_call.1} parent=11 // pred_fallthru
          _
        // Predicated region
        $region37: #{tpu_custom_call.1} parent=11 // pred_check
          %p282 = pneg %p192
        $region38: #{tpu_custom_call.1} parent=11 // pred_check_branch
          %284 = sbr.rel (%p282) target = $region40
        $region39: #{tpu_custom_call.1} parent=11 // pred_region
          _
        $region40: #{tpu_custom_call.1} parent=11 // pred_fallthru
          _
        // Predicated region
        $region41: #{tpu_custom_call.1} parent=11 // pred_check
          %p285 = pneg %p213
        $region42: #{tpu_custom_call.1} parent=11 // pred_check_branch
          %287 = sbr.rel (%p285) target = $region44
        $region43: #{tpu_custom_call.1} parent=11 // pred_region
          _
        $region44: #{tpu_custom_call.1} parent=11 // pred_fallthru
          _
      $region12: #{tpu_custom_call.1} parent=5 // pred_fallthru
        _
      %p288 = scmp.lt.s32.totalorder %s19, 2
      // Predicated region
      $region45: #{tpu_custom_call.1} parent=5 // pred_check
        %p289 = pneg %p288
      $region46: #{tpu_custom_call.1} parent=5 // pred_check_branch
        %291 = sbr.rel (%p289) target = $region48
      $region47: #{tpu_custom_call.1} parent=5 // pred_region
        // Predicated region
        $region49: #{tpu_custom_call.1} parent=47 // pred_check
          %p292 = pneg %p39
        $region50: #{tpu_custom_call.1} parent=47 // pred_check_branch
          %294 = sbr.rel (%p292) target = $region52
        $region51: #{tpu_custom_call.1} parent=47 // pred_region
          %s295 = smul.u32 16, %s19
          %p296 = scmp.lt.s32.totalorder %s295, 31
          %s297 = scalar_select %p296, %s295, 31
          %s298 = smul.addr %s297, 7
          %s299 = smul.addr %s298, 8
          %s300 = scalar_lea.vmem %s0, %s299
          %s301 = smul.u32 16, %s19
        $region52: #{tpu_custom_call.1} parent=47 // pred_fallthru
          _
      $region48: #{tpu_custom_call.1} parent=5 // pred_fallthru
        _
      %p302 = scmp.le.s32.totalorder 1, %s19
      %p303 = scmp.lt.s32.totalorder %s19, 3
      %p304 = pnand %p302, %p303
      %p305 = pneg %p304
      // Predicated region
      $region53: #{tpu_custom_call.1} parent=5 // pred_check
        _
      $region54: #{tpu_custom_call.1} parent=5 // pred_check_branch
        %307 = sbr.rel (%p304) target = $region56
      $region55: #{tpu_custom_call.1} parent=5 // pred_region
        %s308 = ssub.s32 %s19, 1
        // Predicated region
        $region57: #{tpu_custom_call.1} parent=55 // pred_check
          %p309 = pneg %p150
        $region58: #{tpu_custom_call.1} parent=55 // pred_check_branch
          %311 = sbr.rel (%p309) target = $region60
        $region59: #{tpu_custom_call.1} parent=55 // pred_region
          %312 = dma.done [#allocation3], 16384
        $region60: #{tpu_custom_call.1} parent=55 // pred_fallthru
          _
        %s313 = smul.u32 16, %s24
        %p314 = scmp.lt.s32.totalorder %s313, 31
        %s315 = scalar_select %p314, %s313, 31
        %s316 = smul.addr %s315, 7
        %s317 = smul.addr %s316, 8
        %s318 = scalar_lea.vmem %s0, %s317
        %p319 = pneg %p45
        %p320 = pneg %p42
        %p321 = pneg %p66
        %p322 = pneg %p63
        %p323 = pneg %p87
        %p324 = pneg %p84
        %p325 = pneg %p108
        %p326 = pneg %p105
        %p327 = pneg %p129
        %p328 = pneg %p126
        %p329 = pneg %p150
        %p330 = pneg %p147
        %p331 = pneg %p171
        %p332 = pneg %p168
        %p333 = pneg %p192
        %p334 = pneg %p189
        %p335 = pneg %p213
        %p336 = pneg %p210
        %p337 = pneg %p239
        %p338 = pneg %p236
        %s339 = sand.u32 %s226, 1
        %s340 = scalar_lea.sflag [#allocation4], %s339
        %s341 = sand.u32 %s226, 1
        %s342 = smul.addr %s341, 128
        %s343 = scalar_lea.vmem [#allocation5], %s342
        %s344 = smul.u32 16, %s24
        %p345 = scmp.lt.s32.totalorder %s344, 31
        %s346 = scalar_select %p345, %s344, 31
        %s347 = smul.addr %s346, 7
        %s348 = smul.addr %s347, 8
        %s349 = scalar_lea.vmem %s0, %s348
        %s350 = smul.u32 16, %s24
        %s351 = smul.u32 16, %s24
        %v353 = vld [vmem:[%s349] sm:$0xff]
        %v354 = vld [vmem:[%s349 + $0x8] sm:$0xff]
        %v355 = vld [vmem:[%s349 + $0x10] sm:$0xff]
        %v356 = vld [vmem:[%s349 + $0x18] sm:$0xff]
        %v357 = vld [vmem:[%s349 + $0x20] sm:$0xff]
        %v358 = vld [vmem:[%s349 + $0x28] sm:$0xff]
        %v359 = vld [vmem:[%s349 + $0x30] sm:$0xff]
        %v360 = vld [vmem:[%s349 + $0x38] sm:$0xff]
        %v361 = vld [vmem:[%s349 + $0x40] sm:$0xff]
        %v362 = vld [vmem:[%s349 + $0x48] sm:$0xff]
        %v363 = vld [vmem:[%s349 + $0x50] sm:$0xff]
        %v364 = vld [vmem:[%s349 + $0x58] sm:$0xff]
        %v365 = vld [vmem:[%s349 + $0x60] sm:$0xff]
        %v366 = vld [vmem:[%s349 + $0x68] sm:$0xff]
        %v367 = vld [vmem:[%s349 + $0x70] sm:$0xff]
        %v368 = vld [vmem:[%s349 + $0x78] sm:$0xff]
        %v369 = vld [vmem:[%s349 + $0x80] sm:$0xff]
        %v370 = vld [vmem:[%s349 + $0x88] sm:$0xff]
        %v371 = vld [vmem:[%s349 + $0x90] sm:$0xff]
        %v372 = vld [vmem:[%s349 + $0x98] sm:$0xff]
        %v373 = vld [vmem:[%s349 + $0xa0] sm:$0xff]
        %v374 = vld [vmem:[%s349 + $0xa8] sm:$0xff]
        %v375 = vld [vmem:[%s349 + $0xb0] sm:$0xff]
        %v376 = vld [vmem:[%s349 + $0xb8] sm:$0xff]
        %v377 = vld [vmem:[%s349 + $0xc0] sm:$0xff]
        %v378 = vld [vmem:[%s349 + $0xc8] sm:$0xff]
        %v379 = vld [vmem:[%s349 + $0xd0] sm:$0xff]
        %v380 = vld [vmem:[%s349 + $0xd8] sm:$0xff]
        %v381 = vld [vmem:[%s349 + $0xe0] sm:$0xff]
        %v382 = vld [vmem:[%s349 + $0xe8] sm:$0xff]
        %v383 = vld [vmem:[%s349 + $0xf0] sm:$0xff]
        %v384 = vld [vmem:[%s349 + $0xf8] sm:$0xff]
        %v385 = vld [vmem:[%s349 + $0x100] sm:$0xff]
        %v386 = vld [vmem:[%s349 + $0x108] sm:$0xff]
        %v387 = vld [vmem:[%s349 + $0x110] sm:$0xff]
        %v388 = vld [vmem:[%s349 + $0x118] sm:$0xff]
        %v389 = vld [vmem:[%s349 + $0x120] sm:$0xff]
        %v390 = vld [vmem:[%s349 + $0x128] sm:$0xff]
        %v391 = vld [vmem:[%s349 + $0x130] sm:$0xff]
        %v392 = vld [vmem:[%s349 + $0x138] sm:$0xff]
        %v393 = vld [vmem:[%s349 + $0x140] sm:$0xff]
        %v394 = vld [vmem:[%s349 + $0x148] sm:$0xff]
        %v395 = vld [vmem:[%s349 + $0x150] sm:$0xff]
        %v396 = vld [vmem:[%s349 + $0x158] sm:$0xff]
        %v397 = vld [vmem:[%s349 + $0x160] sm:$0xff]
        %v398 = vld [vmem:[%s349 + $0x168] sm:$0xff]
        %v399 = vld [vmem:[%s349 + $0x170] sm:$0xff]
        %v400 = vld [vmem:[%s349 + $0x178] sm:$0xff]
        %v401 = vld [vmem:[%s349 + $0x180] sm:$0xff]
        %v402 = vld [vmem:[%s349 + $0x188] sm:$0xff]
        %v403 = vld [vmem:[%s349 + $0x190] sm:$0xff]
        %v404 = vld [vmem:[%s349 + $0x198] sm:$0xff]
        %v405 = vld [vmem:[%s349 + $0x1a0] sm:$0xff]
        %v406 = vld [vmem:[%s349 + $0x1a8] sm:$0xff]
        %v407 = vld [vmem:[%s349 + $0x1b0] sm:$0xff]
        %v408 = vld [vmem:[%s349 + $0x1b8] sm:$0xff]
        %v409 = vld [vmem:[%s349 + $0x1c0] sm:$0xff]
        %v410 = vld [vmem:[%s349 + $0x1c8] sm:$0xff]
        %v411 = vld [vmem:[%s349 + $0x1d0] sm:$0xff]
        %v412 = vld [vmem:[%s349 + $0x1d8] sm:$0xff]
        %v413 = vld [vmem:[%s349 + $0x1e0] sm:$0xff]
        %v414 = vld [vmem:[%s349 + $0x1e8] sm:$0xff]
        %v415 = vld [vmem:[%s349 + $0x1f0] sm:$0xff]
        %v416 = vld [vmem:[%s349 + $0x1f8] sm:$0xff]
        %v417 = vld [vmem:[%s349 + $0x200] sm:$0xff]
        %v418 = vld [vmem:[%s349 + $0x208] sm:$0xff]
        %v419 = vld [vmem:[%s349 + $0x210] sm:$0xff]
        %v420 = vld [vmem:[%s349 + $0x218] sm:$0xff]
        %v421 = vld [vmem:[%s349 + $0x220] sm:$0xff]
        %v422 = vld [vmem:[%s349 + $0x228] sm:$0xff]
        %v423 = vld [vmem:[%s349 + $0x230] sm:$0xff]
        %v424 = vld [vmem:[%s349 + $0x238] sm:$0xff]
        %v425 = vld [vmem:[%s349 + $0x240] sm:$0xff]
        %v426 = vld [vmem:[%s349 + $0x248] sm:$0xff]
        %v427 = vld [vmem:[%s349 + $0x250] sm:$0xff]
        %v428 = vld [vmem:[%s349 + $0x258] sm:$0xff]
        %v429 = vld [vmem:[%s349 + $0x260] sm:$0xff]
        %v430 = vld [vmem:[%s349 + $0x268] sm:$0xff]
        %v431 = vld [vmem:[%s349 + $0x270] sm:$0xff]
        %v432 = vld [vmem:[%s349 + $0x278] sm:$0xff]
        %v433 = vld [vmem:[%s349 + $0x280] sm:$0xff]
        %v434 = vld [vmem:[%s349 + $0x288] sm:$0xff]
        %v435 = vld [vmem:[%s349 + $0x290] sm:$0xff]
        %v436 = vld [vmem:[%s349 + $0x298] sm:$0xff]
        %v437 = vld [vmem:[%s349 + $0x2a0] sm:$0xff]
        %v438 = vld [vmem:[%s349 + $0x2a8] sm:$0xff]
        %v439 = vld [vmem:[%s349 + $0x2b0] sm:$0xff]
        %v440 = vld [vmem:[%s349 + $0x2b8] sm:$0xff]
        %v441 = vld [vmem:[%s349 + $0x2c0] sm:$0xff]
        %v442 = vld [vmem:[%s349 + $0x2c8] sm:$0xff]
        %v443 = vld [vmem:[%s349 + $0x2d0] sm:$0xff]
        %v444 = vld [vmem:[%s349 + $0x2d8] sm:$0xff]
        %v445 = vld [vmem:[%s349 + $0x2e0] sm:$0xff]
        %v446 = vld [vmem:[%s349 + $0x2e8] sm:$0xff]
        %v447 = vld [vmem:[%s349 + $0x2f0] sm:$0xff]
        %v448 = vld [vmem:[%s349 + $0x2f8] sm:$0xff]
        %v449 = vld [vmem:[%s349 + $0x300] sm:$0xff]
        %v450 = vld [vmem:[%s349 + $0x308] sm:$0xff]
        %v451 = vld [vmem:[%s349 + $0x310] sm:$0xff]
        %v452 = vld [vmem:[%s349 + $0x318] sm:$0xff]
        %v453 = vld [vmem:[%s349 + $0x320] sm:$0xff]
        %v454 = vld [vmem:[%s349 + $0x328] sm:$0xff]
        %v455 = vld [vmem:[%s349 + $0x330] sm:$0xff]
        %v456 = vld [vmem:[%s349 + $0x338] sm:$0xff]
        %v457 = vld [vmem:[%s349 + $0x340] sm:$0xff]
        %v458 = vld [vmem:[%s349 + $0x348] sm:$0xff]
        %v459 = vld [vmem:[%s349 + $0x350] sm:$0xff]
        %v460 = vld [vmem:[%s349 + $0x358] sm:$0xff]
        %v461 = vld [vmem:[%s349 + $0x360] sm:$0xff]
        %v462 = vld [vmem:[%s349 + $0x368] sm:$0xff]
        %v463 = vld [vmem:[%s349 + $0x370] sm:$0xff]
        %v464 = vld [vmem:[%s349 + $0x378] sm:$0xff]
        %v465 = vpack.c.bf16 %v360, %v353
        %v466 = vpack.c.bf16 %v361, %v354
        %v467 = vpack.c.bf16 %v362, %v355
        %v468 = vpack.c.bf16 %v363, %v356
        %v469 = vpack.c.bf16 %v364, %v357
        %v470 = vpack.c.bf16 %v365, %v358
        %v471 = vpack.c.bf16 %v366, %v359
        %v472 = vpack.c.bf16 %v374, %v367
        %v473 = vpack.c.bf16 %v375, %v368
        %v474 = vpack.c.bf16 %v376, %v369
        %v475 = vpack.c.bf16 %v377, %v370
        %v476 = vpack.c.bf16 %v378, %v371
        %v477 = vpack.c.bf16 %v379, %v372
        %v478 = vpack.c.bf16 %v380, %v373
        %v479 = vpack.c.bf16 %v388, %v381
        %v480 = vpack.c.bf16 %v389, %v382
        %v481 = vpack.c.bf16 %v390, %v383
        %v482 = vpack.c.bf16 %v391, %v384
        %v483 = vpack.c.bf16 %v392, %v385
        %v484 = vpack.c.bf16 %v393, %v386
        %v485 = vpack.c.bf16 %v394, %v387
        %v486 = vpack.c.bf16 %v402, %v395
        %v487 = vpack.c.bf16 %v403, %v396
        %v488 = vpack.c.bf16 %v404, %v397
        %v489 = vpack.c.bf16 %v405, %v398
        %v490 = vpack.c.bf16 %v406, %v399
        %v491 = vpack.c.bf16 %v407, %v400
        %v492 = vpack.c.bf16 %v408, %v401
        %v493 = vpack.c.bf16 %v416, %v409
        %v494 = vpack.c.bf16 %v417, %v410
        %v495 = vpack.c.bf16 %v418, %v411
        %v496 = vpack.c.bf16 %v419, %v412
        %v497 = vpack.c.bf16 %v420, %v413
        %v498 = vpack.c.bf16 %v421, %v414
        %v499 = vpack.c.bf16 %v422, %v415
        %v500 = vpack.c.bf16 %v430, %v423
        %v501 = vpack.c.bf16 %v431, %v424
        %v502 = vpack.c.bf16 %v432, %v425
        %v503 = vpack.c.bf16 %v433, %v426
        %v504 = vpack.c.bf16 %v434, %v427
        %v505 = vpack.c.bf16 %v435, %v428
        %v506 = vpack.c.bf16 %v436, %v429
        %v507 = vpack.c.bf16 %v444, %v437
        %v508 = vpack.c.bf16 %v445, %v438
        %v509 = vpack.c.bf16 %v446, %v439
        %v510 = vpack.c.bf16 %v447, %v440
        %v511 = vpack.c.bf16 %v448, %v441
        %v512 = vpack.c.bf16 %v449, %v442
        %v513 = vpack.c.bf16 %v450, %v443
        %v514 = vpack.c.bf16 %v458, %v451
        %v515 = vpack.c.bf16 %v459, %v452
        %v516 = vpack.c.bf16 %v460, %v453
        %v517 = vpack.c.bf16 %v461, %v454
        %v518 = vpack.c.bf16 %v462, %v455
        %v519 = vpack.c.bf16 %v463, %v456
        %v520 = vpack.c.bf16 %v464, %v457
        %v521 = vld [vmem:[%s1] sm:$0xff]
        %v522 = vld [vmem:[%s1 + $0x8] sm:$0xff]
        %v523 = vld [vmem:[%s1 + $0x10] sm:$0xff]
        %v524 = vld [vmem:[%s1 + $0x18] sm:$0xff]
        %v525 = vld [vmem:[%s1 + $0x20] sm:$0xff]
        %v526 = vld [vmem:[%s1 + $0x28] sm:$0xff]
        %v527 = vld [vmem:[%s1 + $0x30] sm:$0xff]
        %v528 = vld [vmem:[%s1 + $0x38] sm:$0xff]
        %v529 = vld [vmem:[%s1 + $0x40] sm:$0xff]
        %v530 = vld [vmem:[%s1 + $0x48] sm:$0xff]
        %v531 = vld [vmem:[%s1 + $0x50] sm:$0xff]
        %v532 = vld [vmem:[%s1 + $0x58] sm:$0xff]
        %v533 = vld [vmem:[%s1 + $0x60] sm:$0xff]
        %v534 = vld [vmem:[%s1 + $0x68] sm:$0xff]
        %v535 = vld [vmem:[%s1 + $0x70] sm:$0xff]
        %v536 = vld [vmem:[%s1 + $0x78] sm:$0xff]
        %v537 = vld [vmem:[%s1 + $0x80] sm:$0xff]
        %v538 = vld [vmem:[%s1 + $0x88] sm:$0xff]
        %v539 = vld [vmem:[%s1 + $0x90] sm:$0xff]
        %v540 = vld [vmem:[%s1 + $0x98] sm:$0xff]
        %v541 = vld [vmem:[%s1 + $0xa0] sm:$0xff]
        %v542 = vld [vmem:[%s1 + $0xa8] sm:$0xff]
        %v543 = vld [vmem:[%s1 + $0xb0] sm:$0xff]
        %v544 = vld [vmem:[%s1 + $0xb8] sm:$0xff]
        %v545 = vld [vmem:[%s1 + $0xc0] sm:$0xff]
        %v546 = vld [vmem:[%s1 + $0xc8] sm:$0xff]
        %v547 = vld [vmem:[%s1 + $0xd0] sm:$0xff]
        %v548 = vld [vmem:[%s1 + $0xd8] sm:$0xff]
        %v549 = vld [vmem:[%s1 + $0xe0] sm:$0xff]
        %v550 = vld [vmem:[%s1 + $0xe8] sm:$0xff]
        %v551 = vld [vmem:[%s1 + $0xf0] sm:$0xff]
        %v552 = vld [vmem:[%s1 + $0xf8] sm:$0xff]
        %v553 = vld [vmem:[%s1 + $0x100] sm:$0xff]
        %v554 = vld [vmem:[%s1 + $0x108] sm:$0xff]
        %v555 = vld [vmem:[%s1 + $0x110] sm:$0xff]
        %v556 = vld [vmem:[%s1 + $0x118] sm:$0xff]
        %v557 = vld [vmem:[%s1 + $0x120] sm:$0xff]
        %v558 = vld [vmem:[%s1 + $0x128] sm:$0xff]
        %v559 = vld [vmem:[%s1 + $0x130] sm:$0xff]
        %v560 = vld [vmem:[%s1 + $0x138] sm:$0xff]
        %v561 = vld [vmem:[%s1 + $0x140] sm:$0xff]
        %v562 = vld [vmem:[%s1 + $0x148] sm:$0xff]
        %v563 = vld [vmem:[%s1 + $0x150] sm:$0xff]
        %v564 = vld [vmem:[%s1 + $0x158] sm:$0xff]
        %v565 = vld [vmem:[%s1 + $0x160] sm:$0xff]
        %v566 = vld [vmem:[%s1 + $0x168] sm:$0xff]
        %v567 = vld [vmem:[%s1 + $0x170] sm:$0xff]
        %v568 = vld [vmem:[%s1 + $0x178] sm:$0xff]
        %v569 = vld [vmem:[%s1 + $0x180] sm:$0xff]
        %v570 = vld [vmem:[%s1 + $0x188] sm:$0xff]
        %v571 = vld [vmem:[%s1 + $0x190] sm:$0xff]
        %v572 = vld [vmem:[%s1 + $0x198] sm:$0xff]
        %v573 = vld [vmem:[%s1 + $0x1a0] sm:$0xff]
        %v574 = vld [vmem:[%s1 + $0x1a8] sm:$0xff]
        %v575 = vld [vmem:[%s1 + $0x1b0] sm:$0xff]
        %v576 = vld [vmem:[%s1 + $0x1b8] sm:$0xff]
        %v577 = vld [vmem:[%s1 + $0x1c0] sm:$0xff]
        %v578 = vld [vmem:[%s1 + $0x1c8] sm:$0xff]
        %v579 = vld [vmem:[%s1 + $0x1d0] sm:$0xff]
        %v580 = vld [vmem:[%s1 + $0x1d8] sm:$0xff]
        %v581 = vld [vmem:[%s1 + $0x1e0] sm:$0xff]
        %v582 = vld [vmem:[%s1 + $0x1e8] sm:$0xff]
        %v583 = vld [vmem:[%s1 + $0x1f0] sm:$0xff]
        %v584 = vld [vmem:[%s1 + $0x1f8] sm:$0xff]
        %v585 = vld [vmem:[%s1 + $0x200] sm:$0xff]
        %v586 = vld [vmem:[%s1 + $0x208] sm:$0xff]
        %v587 = vld [vmem:[%s1 + $0x210] sm:$0xff]
        %v588 = vld [vmem:[%s1 + $0x218] sm:$0xff]
        %v589 = vld [vmem:[%s1 + $0x220] sm:$0xff]
        %v590 = vld [vmem:[%s1 + $0x228] sm:$0xff]
        %v591 = vld [vmem:[%s1 + $0x230] sm:$0xff]
        %v592 = vld [vmem:[%s1 + $0x238] sm:$0xff]
        %v593 = vld [vmem:[%s1 + $0x240] sm:$0xff]
        %v594 = vld [vmem:[%s1 + $0x248] sm:$0xff]
        %v595 = vld [vmem:[%s1 + $0x250] sm:$0xff]
        %v596 = vld [vmem:[%s1 + $0x258] sm:$0xff]
        %v597 = vld [vmem:[%s1 + $0x260] sm:$0xff]
        %v598 = vld [vmem:[%s1 + $0x268] sm:$0xff]
        %v599 = vld [vmem:[%s1 + $0x270] sm:$0xff]
        %v600 = vld [vmem:[%s1 + $0x278] sm:$0xff]
        %v601 = vld [vmem:[%s1 + $0x280] sm:$0xff]
        %v602 = vld [vmem:[%s1 + $0x288] sm:$0xff]
        %v603 = vld [vmem:[%s1 + $0x290] sm:$0xff]
        %v604 = vld [vmem:[%s1 + $0x298] sm:$0xff]
        %v605 = vld [vmem:[%s1 + $0x2a0] sm:$0xff]
        %v606 = vld [vmem:[%s1 + $0x2a8] sm:$0xff]
        %v607 = vld [vmem:[%s1 + $0x2b0] sm:$0xff]
        %v608 = vld [vmem:[%s1 + $0x2b8] sm:$0xff]
        %v609 = vld [vmem:[%s1 + $0x2c0] sm:$0xff]
        %v610 = vld [vmem:[%s1 + $0x2c8] sm:$0xff]
        %v611 = vld [vmem:[%s1 + $0x2d0] sm:$0xff]
        %v612 = vld [vmem:[%s1 + $0x2d8] sm:$0xff]
        %v613 = vld [vmem:[%s1 + $0x2e0] sm:$0xff]
        %v614 = vld [vmem:[%s1 + $0x2e8] sm:$0xff]
        %v615 = vld [vmem:[%s1 + $0x2f0] sm:$0xff]
        %v616 = vld [vmem:[%s1 + $0x2f8] sm:$0xff]
        %v617 = vld [vmem:[%s1 + $0x300] sm:$0xff]
        %v618 = vld [vmem:[%s1 + $0x308] sm:$0xff]
        %v619 = vld [vmem:[%s1 + $0x310] sm:$0xff]
        %v620 = vld [vmem:[%s1 + $0x318] sm:$0xff]
        %v621 = vld [vmem:[%s1 + $0x320] sm:$0xff]
        %v622 = vld [vmem:[%s1 + $0x328] sm:$0xff]
        %v623 = vld [vmem:[%s1 + $0x330] sm:$0xff]
        %v624 = vld [vmem:[%s1 + $0x338] sm:$0xff]
        %v625 = vld [vmem:[%s1 + $0x340] sm:$0xff]
        %v626 = vld [vmem:[%s1 + $0x348] sm:$0xff]
        %v627 = vld [vmem:[%s1 + $0x350] sm:$0xff]
        %v628 = vld [vmem:[%s1 + $0x358] sm:$0xff]
        %v629 = vld [vmem:[%s1 + $0x360] sm:$0xff]
        %v630 = vld [vmem:[%s1 + $0x368] sm:$0xff]
        %v631 = vld [vmem:[%s1 + $0x370] sm:$0xff]
        %v632 = vld [vmem:[%s1 + $0x378] sm:$0xff]
        %v633 = vld [vmem:[%s1 + $0x380] sm:$0xff]
        %v634 = vld [vmem:[%s1 + $0x388] sm:$0xff]
        %v635 = vld [vmem:[%s1 + $0x390] sm:$0xff]
        %v636 = vld [vmem:[%s1 + $0x398] sm:$0xff]
        %v637 = vld [vmem:[%s1 + $0x3a0] sm:$0xff]
        %v638 = vld [vmem:[%s1 + $0x3a8] sm:$0xff]
        %v639 = vld [vmem:[%s1 + $0x3b0] sm:$0xff]
        %v640 = vld [vmem:[%s1 + $0x3b8] sm:$0xff]
        %v641 = vld [vmem:[%s1 + $0x3c0] sm:$0xff]
        %v642 = vld [vmem:[%s1 + $0x3c8] sm:$0xff]
        %v643 = vld [vmem:[%s1 + $0x3d0] sm:$0xff]
        %v644 = vld [vmem:[%s1 + $0x3d8] sm:$0xff]
        %v645 = vld [vmem:[%s1 + $0x3e0] sm:$0xff]
        %v646 = vld [vmem:[%s1 + $0x3e8] sm:$0xff]
        %v647 = vld [vmem:[%s1 + $0x3f0] sm:$0xff]
        %v648 = vld [vmem:[%s1 + $0x3f8] sm:$0xff]
        %v649 = vld [vmem:[%s1 + $0x400] sm:$0xff]
        %v650 = vld [vmem:[%s1 + $0x408] sm:$0xff]
        %v651 = vld [vmem:[%s1 + $0x410] sm:$0xff]
        %v652 = vld [vmem:[%s1 + $0x418] sm:$0xff]
        %v653 = vld [vmem:[%s1 + $0x420] sm:$0xff]
        %v654 = vld [vmem:[%s1 + $0x428] sm:$0xff]
        %v655 = vld [vmem:[%s1 + $0x430] sm:$0xff]
        %v656 = vld [vmem:[%s1 + $0x438] sm:$0xff]
        %v657 = vld [vmem:[%s1 + $0x440] sm:$0xff]
        %v658 = vld [vmem:[%s1 + $0x448] sm:$0xff]
        %v659 = vld [vmem:[%s1 + $0x450] sm:$0xff]
        %v660 = vld [vmem:[%s1 + $0x458] sm:$0xff]
        %v661 = vld [vmem:[%s1 + $0x460] sm:$0xff]
        %v662 = vld [vmem:[%s1 + $0x468] sm:$0xff]
        %v663 = vld [vmem:[%s1 + $0x470] sm:$0xff]
        %v664 = vld [vmem:[%s1 + $0x478] sm:$0xff]
        %v665 = vld [vmem:[%s1 + $0x480] sm:$0xff]
        %v666 = vld [vmem:[%s1 + $0x488] sm:$0xff]
        %v667 = vld [vmem:[%s1 + $0x490] sm:$0xff]
        %v668 = vld [vmem:[%s1 + $0x498] sm:$0xff]
        %v669 = vld [vmem:[%s1 + $0x4a0] sm:$0xff]
        %v670 = vld [vmem:[%s1 + $0x4a8] sm:$0xff]
        %v671 = vld [vmem:[%s1 + $0x4b0] sm:$0xff]
        %v672 = vld [vmem:[%s1 + $0x4b8] sm:$0xff]
        %v673 = vld [vmem:[%s1 + $0x4c0] sm:$0xff]
        %v674 = vld [vmem:[%s1 + $0x4c8] sm:$0xff]
        %v675 = vld [vmem:[%s1 + $0x4d0] sm:$0xff]
        %v676 = vld [vmem:[%s1 + $0x4d8] sm:$0xff]
        %v677 = vld [vmem:[%s1 + $0x4e0] sm:$0xff]
        %v678 = vld [vmem:[%s1 + $0x4e8] sm:$0xff]
        %v679 = vld [vmem:[%s1 + $0x4f0] sm:$0xff]
        %v680 = vld [vmem:[%s1 + $0x4f8] sm:$0xff]
        %v681 = vld [vmem:[%s1 + $0x500] sm:$0xff]
        %v682 = vld [vmem:[%s1 + $0x508] sm:$0xff]
        %v683 = vld [vmem:[%s1 + $0x510] sm:$0xff]
        %v684 = vld [vmem:[%s1 + $0x518] sm:$0xff]
        %v685 = vld [vmem:[%s1 + $0x520] sm:$0xff]
        %v686 = vld [vmem:[%s1 + $0x528] sm:$0xff]
        %v687 = vld [vmem:[%s1 + $0x530] sm:$0xff]
        %v688 = vld [vmem:[%s1 + $0x538] sm:$0xff]
        %v689 = vld [vmem:[%s1 + $0x540] sm:$0xff]
        %v690 = vld [vmem:[%s1 + $0x548] sm:$0xff]
        %v691 = vld [vmem:[%s1 + $0x550] sm:$0xff]
        %v692 = vld [vmem:[%s1 + $0x558] sm:$0xff]
        %v693 = vld [vmem:[%s1 + $0x560] sm:$0xff]
        %v694 = vld [vmem:[%s1 + $0x568] sm:$0xff]
        %v695 = vld [vmem:[%s1 + $0x570] sm:$0xff]
        %v696 = vld [vmem:[%s1 + $0x578] sm:$0xff]
        %v697 = vld [vmem:[%s1 + $0x580] sm:$0xff]
        %v698 = vld [vmem:[%s1 + $0x588] sm:$0xff]
        %v699 = vld [vmem:[%s1 + $0x590] sm:$0xff]
        %v700 = vld [vmem:[%s1 + $0x598] sm:$0xff]
        %v701 = vld [vmem:[%s1 + $0x5a0] sm:$0xff]
        %v702 = vld [vmem:[%s1 + $0x5a8] sm:$0xff]
        %v703 = vld [vmem:[%s1 + $0x5b0] sm:$0xff]
        %v704 = vld [vmem:[%s1 + $0x5b8] sm:$0xff]
        %v705 = vld [vmem:[%s1 + $0x5c0] sm:$0xff]
        %v706 = vld [vmem:[%s1 + $0x5c8] sm:$0xff]
        %v707 = vld [vmem:[%s1 + $0x5d0] sm:$0xff]
        %v708 = vld [vmem:[%s1 + $0x5d8] sm:$0xff]
        %v709 = vld [vmem:[%s1 + $0x5e0] sm:$0xff]
        %v710 = vld [vmem:[%s1 + $0x5e8] sm:$0xff]
        %v711 = vld [vmem:[%s1 + $0x5f0] sm:$0xff]
        %v712 = vld [vmem:[%s1 + $0x5f8] sm:$0xff]
        %v713 = vld [vmem:[%s1 + $0x600] sm:$0xff]
        %v714 = vld [vmem:[%s1 + $0x608] sm:$0xff]
        %v715 = vld [vmem:[%s1 + $0x610] sm:$0xff]
        %v716 = vld [vmem:[%s1 + $0x618] sm:$0xff]
        %v717 = vld [vmem:[%s2] sm:$0xf]
        %v719 = vlaneseq
        %v720 = vshrl.u32 %v719, 7
        %v721 = vsub.s32 0, %v720
        %v722 = vrot.slane %v717, %v721
        %v723 = vlaneseq
        %v724 = vshrl.u32 %v723, 7
        %v725 = vsub.s32 1, %v724
        %v726 = vrot.slane %v717, %v725
        %v727 = vlaneseq
        %v728 = vshrl.u32 %v727, 7
        %v729 = vsub.s32 2, %v728
        %v730 = vrot.slane %v717, %v729
        %v731 = vlaneseq
        %v732 = vshrl.u32 %v731, 7
        %v733 = vsub.s32 3, %v732
        %v734 = vrot.slane %v717, %v733
        %v935 = vunpack.c.l.b16 %v521
        %v936 = vunpack.c.h.b16 %v521
        %v937 = vunpack.c.l.b16 %v522
        %v938 = vunpack.c.h.b16 %v522
        %v939 = vunpack.c.l.b16 %v523
        %v940 = vunpack.c.h.b16 %v523
        %v941 = vunpack.c.l.b16 %v524
        %v942 = vunpack.c.h.b16 %v524
        %v943 = vunpack.c.l.b16 %v525
        %v944 = vunpack.c.h.b16 %v525
        %v945 = vunpack.c.l.b16 %v526
        %v946 = vunpack.c.h.b16 %v526
        %v947 = vunpack.c.l.b16 %v527
        %v948 = vunpack.c.h.b16 %v527
        %v949 = vunpack.c.l.b16 %v528
        %v950 = vunpack.c.h.b16 %v528
        %v951 = vunpack.c.l.b16 %v529
        %v952 = vunpack.c.h.b16 %v529
        %v953 = vunpack.c.l.b16 %v530
        %v954 = vunpack.c.h.b16 %v530
        %v955 = vunpack.c.l.b16 %v531
        %v956 = vunpack.c.h.b16 %v531
        %v957 = vunpack.c.l.b16 %v532
        %v958 = vunpack.c.h.b16 %v532
        %v959 = vunpack.c.l.b16 %v533
        %v960 = vunpack.c.h.b16 %v533
        %v961 = vunpack.c.l.b16 %v534
        %v962 = vunpack.c.h.b16 %v534
        %v963 = vunpack.c.l.b16 %v535
        %v964 = vunpack.c.h.b16 %v535
        %v965 = vunpack.c.l.b16 %v536
        %v966 = vunpack.c.h.b16 %v536
        %v967 = vunpack.c.l.b16 %v537
        %v968 = vunpack.c.h.b16 %v537
        %v969 = vunpack.c.l.b16 %v538
        %v970 = vunpack.c.h.b16 %v538
        %v971 = vunpack.c.l.b16 %v539
        %v972 = vunpack.c.h.b16 %v539
        %v973 = vunpack.c.l.b16 %v540
        %v974 = vunpack.c.h.b16 %v540
        %v975 = vunpack.c.l.b16 %v541
        %v976 = vunpack.c.h.b16 %v541
        %v977 = vunpack.c.l.b16 %v542
        %v978 = vunpack.c.h.b16 %v542
        %v979 = vunpack.c.l.b16 %v543
        %v980 = vunpack.c.h.b16 %v543
        %v981 = vunpack.c.l.b16 %v544
        %v982 = vunpack.c.h.b16 %v544
        %v983 = vunpack.c.l.b16 %v545
        %v984 = vunpack.c.h.b16 %v545
        %v985 = vunpack.c.l.b16 %v546
        %v986 = vunpack.c.h.b16 %v546
        %v987 = vunpack.c.l.b16 %v547
        %v988 = vunpack.c.h.b16 %v547
        %v989 = vunpack.c.l.b16 %v548
        %v990 = vunpack.c.h.b16 %v548
        %v991 = vunpack.c.l.b16 %v549
        %v992 = vunpack.c.h.b16 %v549
        %v993 = vunpack.c.l.b16 %v550
        %v994 = vunpack.c.h.b16 %v550
        %v995 = vunpack.c.l.b16 %v551
        %v996 = vunpack.c.h.b16 %v551
        %v997 = vunpack.c.l.b16 %v552
        %v998 = vunpack.c.h.b16 %v552
        %v999 = vunpack.c.l.b16 %v553
        %v1000 = vunpack.c.h.b16 %v553
        %v1001 = vunpack.c.l.b16 %v554
        %v1002 = vunpack.c.h.b16 %v554
        %v1003 = vunpack.c.l.b16 %v555
        %v1004 = vunpack.c.h.b16 %v555
        %v1005 = vunpack.c.l.b16 %v556
        %v1006 = vunpack.c.h.b16 %v556
        %v1007 = vunpack.c.l.b16 %v557
        %v1008 = vunpack.c.h.b16 %v557
        %v1009 = vunpack.c.l.b16 %v558
        %v1010 = vunpack.c.h.b16 %v558
        %v1011 = vunpack.c.l.b16 %v559
        %v1012 = vunpack.c.h.b16 %v559
        %v1013 = vunpack.c.l.b16 %v560
        %v1014 = vunpack.c.h.b16 %v560
        %v1015 = vunpack.c.l.b16 %v561
        %v1016 = vunpack.c.h.b16 %v561
        %v1017 = vunpack.c.l.b16 %v562
        %v1018 = vunpack.c.h.b16 %v562
        %v1019 = vunpack.c.l.b16 %v563
        %v1020 = vunpack.c.h.b16 %v563
        %v1021 = vunpack.c.l.b16 %v564
        %v1022 = vunpack.c.h.b16 %v564
        %v1023 = vunpack.c.l.b16 %v565
        %v1024 = vunpack.c.h.b16 %v565
        %v1025 = vunpack.c.l.b16 %v566
        %v1026 = vunpack.c.h.b16 %v566
        %v1027 = vunpack.c.l.b16 %v567
        %v1028 = vunpack.c.h.b16 %v567
        %v1029 = vunpack.c.l.b16 %v568
        %v1030 = vunpack.c.h.b16 %v568
        %v1031 = vunpack.c.l.b16 %v569
        %v1032 = vunpack.c.h.b16 %v569
        %v1033 = vunpack.c.l.b16 %v570
        %v1034 = vunpack.c.h.b16 %v570
        %v1035 = vunpack.c.l.b16 %v571
        %v1036 = vunpack.c.h.b16 %v571
        %v1037 = vunpack.c.l.b16 %v572
        %v1038 = vunpack.c.h.b16 %v572
        %v1039 = vunpack.c.l.b16 %v573
        %v1040 = vunpack.c.h.b16 %v573
        %v1041 = vunpack.c.l.b16 %v574
        %v1042 = vunpack.c.h.b16 %v574
        %v1043 = vunpack.c.l.b16 %v575
        %v1044 = vunpack.c.h.b16 %v575
        %v1045 = vunpack.c.l.b16 %v576
        %v1046 = vunpack.c.h.b16 %v576
        %v1047 = vunpack.c.l.b16 %v577
        %v1048 = vunpack.c.h.b16 %v577
        %v1049 = vunpack.c.l.b16 %v578
        %v1050 = vunpack.c.h.b16 %v578
        %v1051 = vunpack.c.l.b16 %v579
        %v1052 = vunpack.c.h.b16 %v579
        %v1053 = vunpack.c.l.b16 %v580
        %v1054 = vunpack.c.h.b16 %v580
        %v1055 = vunpack.c.l.b16 %v581
        %v1056 = vunpack.c.h.b16 %v581
        %v1057 = vunpack.c.l.b16 %v582
        %v1058 = vunpack.c.h.b16 %v582
        %v1059 = vunpack.c.l.b16 %v583
        %v1060 = vunpack.c.h.b16 %v583
        %v1061 = vunpack.c.l.b16 %v584
        %v1062 = vunpack.c.h.b16 %v584
        %v1063 = vunpack.c.l.b16 %v585
        %v1064 = vunpack.c.h.b16 %v585
        %v1065 = vunpack.c.l.b16 %v586
        %v1066 = vunpack.c.h.b16 %v586
        %v1067 = vunpack.c.l.b16 %v587
        %v1068 = vunpack.c.h.b16 %v587
        %v1069 = vunpack.c.l.b16 %v588
        %v1070 = vunpack.c.h.b16 %v588
        %v1071 = vunpack.c.l.b16 %v589
        %v1072 = vunpack.c.h.b16 %v589
        %v1073 = vunpack.c.l.b16 %v590
        %v1074 = vunpack.c.h.b16 %v590
        %v1075 = vunpack.c.l.b16 %v591
        %v1076 = vunpack.c.h.b16 %v591
        %v1077 = vunpack.c.l.b16 %v592
        %v1078 = vunpack.c.h.b16 %v592
        %v1079 = vunpack.c.l.b16 %v593
        %v1080 = vunpack.c.h.b16 %v593
        %v1081 = vunpack.c.l.b16 %v594
        %v1082 = vunpack.c.h.b16 %v594
        %v1083 = vunpack.c.l.b16 %v595
        %v1084 = vunpack.c.h.b16 %v595
        %v1085 = vunpack.c.l.b16 %v596
        %v1086 = vunpack.c.h.b16 %v596
        %v1087 = vunpack.c.l.b16 %v597
        %v1088 = vunpack.c.h.b16 %v597
        %v1089 = vunpack.c.l.b16 %v598
        %v1090 = vunpack.c.h.b16 %v598
        %v1091 = vunpack.c.l.b16 %v599
        %v1092 = vunpack.c.h.b16 %v599
        %v1093 = vunpack.c.l.b16 %v600
        %v1094 = vunpack.c.h.b16 %v600
        %v1095 = vunpack.c.l.b16 %v601
        %v1096 = vunpack.c.h.b16 %v601
        %v1097 = vunpack.c.l.b16 %v602
        %v1098 = vunpack.c.h.b16 %v602
        %v1099 = vunpack.c.l.b16 %v603
        %v1100 = vunpack.c.h.b16 %v603
        %v1101 = vunpack.c.l.b16 %v604
        %v1102 = vunpack.c.h.b16 %v604
        %v1103 = vunpack.c.l.b16 %v605
        %v1104 = vunpack.c.h.b16 %v605
        %v1105 = vunpack.c.l.b16 %v606
        %v1106 = vunpack.c.h.b16 %v606
        %v1107 = vunpack.c.l.b16 %v607
        %v1108 = vunpack.c.h.b16 %v607
        %v1109 = vunpack.c.l.b16 %v608
        %v1110 = vunpack.c.h.b16 %v608
        %v1111 = vunpack.c.l.b16 %v609
        %v1112 = vunpack.c.h.b16 %v609
        %v1113 = vunpack.c.l.b16 %v610
        %v1114 = vunpack.c.h.b16 %v610
        %v1115 = vunpack.c.l.b16 %v611
        %v1116 = vunpack.c.h.b16 %v611
        %v1117 = vunpack.c.l.b16 %v612
        %v1118 = vunpack.c.h.b16 %v612
        %v1119 = vunpack.c.l.b16 %v613
        %v1120 = vunpack.c.h.b16 %v613
        %v1121 = vunpack.c.l.b16 %v614
        %v1122 = vunpack.c.h.b16 %v614
        %v1123 = vunpack.c.l.b16 %v615
        %v1124 = vunpack.c.h.b16 %v615
        %v1125 = vunpack.c.l.b16 %v616
        %v1126 = vunpack.c.h.b16 %v616
        %v1127 = vunpack.c.l.b16 %v617
        %v1128 = vunpack.c.h.b16 %v617
        %v1129 = vunpack.c.l.b16 %v618
        %v1130 = vunpack.c.h.b16 %v618
        %v1131 = vunpack.c.l.b16 %v619
        %v1132 = vunpack.c.h.b16 %v619
        %v1133 = vunpack.c.l.b16 %v620
        %v1134 = vunpack.c.h.b16 %v620
        %v1135 = vunpack.c.l.b16 %v621
        %v1136 = vunpack.c.h.b16 %v621
        %v1137 = vunpack.c.l.b16 %v622
        %v1138 = vunpack.c.h.b16 %v622
        %v1139 = vunpack.c.l.b16 %v623
        %v1140 = vunpack.c.h.b16 %v623
        %v1141 = vunpack.c.l.b16 %v624
        %v1142 = vunpack.c.h.b16 %v624
        %v1143 = vunpack.c.l.b16 %v625
        %v1144 = vunpack.c.h.b16 %v625
        %v1145 = vunpack.c.l.b16 %v626
        %v1146 = vunpack.c.h.b16 %v626
        %v1147 = vunpack.c.l.b16 %v627
        %v1148 = vunpack.c.h.b16 %v627
        %v1149 = vunpack.c.l.b16 %v628
        %v1150 = vunpack.c.h.b16 %v628
        %v1151 = vunpack.c.l.b16 %v629
        %v1152 = vunpack.c.h.b16 %v629
        %v1153 = vunpack.c.l.b16 %v630
        %v1154 = vunpack.c.h.b16 %v630
        %v1155 = vunpack.c.l.b16 %v631
        %v1156 = vunpack.c.h.b16 %v631
        %v1157 = vunpack.c.l.b16 %v632
        %v1158 = vunpack.c.h.b16 %v632
        %v1159 = vunpack.c.l.b16 %v633
        %v1160 = vunpack.c.h.b16 %v633
        %v1161 = vunpack.c.l.b16 %v634
        %v1162 = vunpack.c.h.b16 %v634
        %v1163 = vunpack.c.l.b16 %v635
        %v1164 = vunpack.c.h.b16 %v635
        %v1165 = vunpack.c.l.b16 %v636
        %v1166 = vunpack.c.h.b16 %v636
        %v1167 = vunpack.c.l.b16 %v637
        %v1168 = vunpack.c.h.b16 %v637
        %v1169 = vunpack.c.l.b16 %v638
        %v1170 = vunpack.c.h.b16 %v638
        %v1171 = vunpack.c.l.b16 %v639
        %v1172 = vunpack.c.h.b16 %v639
        %v1173 = vunpack.c.l.b16 %v640
        %v1174 = vunpack.c.h.b16 %v640
        %v1175 = vunpack.c.l.b16 %v641
        %v1176 = vunpack.c.h.b16 %v641
        %v1177 = vunpack.c.l.b16 %v642
        %v1178 = vunpack.c.h.b16 %v642
        %v1179 = vunpack.c.l.b16 %v643
        %v1180 = vunpack.c.h.b16 %v643
        %v1181 = vunpack.c.l.b16 %v644
        %v1182 = vunpack.c.h.b16 %v644
        %v1183 = vunpack.c.l.b16 %v645
        %v1184 = vunpack.c.h.b16 %v645
        %v1185 = vunpack.c.l.b16 %v646
        %v1186 = vunpack.c.h.b16 %v646
        %v1187 = vunpack.c.l.b16 %v647
        %v1188 = vunpack.c.h.b16 %v647
        %v1189 = vunpack.c.l.b16 %v648
        %v1190 = vunpack.c.h.b16 %v648
        %v1191 = vunpack.c.l.b16 %v649
        %v1192 = vunpack.c.h.b16 %v649
        %v1193 = vunpack.c.l.b16 %v650
        %v1194 = vunpack.c.h.b16 %v650
        %v1195 = vunpack.c.l.b16 %v651
        %v1196 = vunpack.c.h.b16 %v651
        %v1197 = vunpack.c.l.b16 %v652
        %v1198 = vunpack.c.h.b16 %v652
        %v1199 = vunpack.c.l.b16 %v653
        %v1200 = vunpack.c.h.b16 %v653
        %v1201 = vunpack.c.l.b16 %v654
        %v1202 = vunpack.c.h.b16 %v654
        %v1203 = vunpack.c.l.b16 %v655
        %v1204 = vunpack.c.h.b16 %v655
        %v1205 = vunpack.c.l.b16 %v656
        %v1206 = vunpack.c.h.b16 %v656
        %v1207 = vunpack.c.l.b16 %v657
        %v1208 = vunpack.c.h.b16 %v657
        %v1209 = vunpack.c.l.b16 %v658
        %v1210 = vunpack.c.h.b16 %v658
        %v1211 = vunpack.c.l.b16 %v659
        %v1212 = vunpack.c.h.b16 %v659
        %v1213 = vunpack.c.l.b16 %v660
        %v1214 = vunpack.c.h.b16 %v660
        %v1215 = vunpack.c.l.b16 %v661
        %v1216 = vunpack.c.h.b16 %v661
        %v1217 = vunpack.c.l.b16 %v662
        %v1218 = vunpack.c.h.b16 %v662
        %v1219 = vunpack.c.l.b16 %v663
        %v1220 = vunpack.c.h.b16 %v663
        %v1221 = vunpack.c.l.b16 %v664
        %v1222 = vunpack.c.h.b16 %v664
        %v1223 = vunpack.c.l.b16 %v665
        %v1224 = vunpack.c.h.b16 %v665
        %v1225 = vunpack.c.l.b16 %v666
        %v1226 = vunpack.c.h.b16 %v666
        %v1227 = vunpack.c.l.b16 %v667
        %v1228 = vunpack.c.h.b16 %v667
        %v1229 = vunpack.c.l.b16 %v668
        %v1230 = vunpack.c.h.b16 %v668
        %v1231 = vunpack.c.l.b16 %v669
        %v1232 = vunpack.c.h.b16 %v669
        %v1233 = vunpack.c.l.b16 %v670
        %v1234 = vunpack.c.h.b16 %v670
        %v1235 = vunpack.c.l.b16 %v671
        %v1236 = vunpack.c.h.b16 %v671
        %v1237 = vunpack.c.l.b16 %v672
        %v1238 = vunpack.c.h.b16 %v672
        %v1239 = vunpack.c.l.b16 %v673
        %v1240 = vunpack.c.h.b16 %v673
        %v1241 = vunpack.c.l.b16 %v674
        %v1242 = vunpack.c.h.b16 %v674
        %v1243 = vunpack.c.l.b16 %v675
        %v1244 = vunpack.c.h.b16 %v675
        %v1245 = vunpack.c.l.b16 %v676
        %v1246 = vunpack.c.h.b16 %v676
        %v1247 = vunpack.c.l.b16 %v677
        %v1248 = vunpack.c.h.b16 %v677
        %v1249 = vunpack.c.l.b16 %v678
        %v1250 = vunpack.c.h.b16 %v678
        %v1251 = vunpack.c.l.b16 %v679
        %v1252 = vunpack.c.h.b16 %v679
        %v1253 = vunpack.c.l.b16 %v680
        %v1254 = vunpack.c.h.b16 %v680
        %v1255 = vunpack.c.l.b16 %v681
        %v1256 = vunpack.c.h.b16 %v681
        %v1257 = vunpack.c.l.b16 %v682
        %v1258 = vunpack.c.h.b16 %v682
        %v1259 = vunpack.c.l.b16 %v683
        %v1260 = vunpack.c.h.b16 %v683
        %v1261 = vunpack.c.l.b16 %v684
        %v1262 = vunpack.c.h.b16 %v684
        %v1263 = vunpack.c.l.b16 %v685
        %v1264 = vunpack.c.h.b16 %v685
        %v1265 = vunpack.c.l.b16 %v686
        %v1266 = vunpack.c.h.b16 %v686
        %v1267 = vunpack.c.l.b16 %v687
        %v1268 = vunpack.c.h.b16 %v687
        %v1269 = vunpack.c.l.b16 %v688
        %v1270 = vunpack.c.h.b16 %v688
        %v1271 = vunpack.c.l.b16 %v689
        %v1272 = vunpack.c.h.b16 %v689
        %v1273 = vunpack.c.l.b16 %v690
        %v1274 = vunpack.c.h.b16 %v690
        %v1275 = vunpack.c.l.b16 %v691
        %v1276 = vunpack.c.h.b16 %v691
        %v1277 = vunpack.c.l.b16 %v692
        %v1278 = vunpack.c.h.b16 %v692
        %v1279 = vunpack.c.l.b16 %v693
        %v1280 = vunpack.c.h.b16 %v693
        %v1281 = vunpack.c.l.b16 %v694
        %v1282 = vunpack.c.h.b16 %v694
        %v1283 = vunpack.c.l.b16 %v695
        %v1284 = vunpack.c.h.b16 %v695
        %v1285 = vunpack.c.l.b16 %v696
        %v1286 = vunpack.c.h.b16 %v696
        %v1287 = vunpack.c.l.b16 %v697
        %v1288 = vunpack.c.h.b16 %v697
        %v1289 = vunpack.c.l.b16 %v698
        %v1290 = vunpack.c.h.b16 %v698
        %v1291 = vunpack.c.l.b16 %v699
        %v1292 = vunpack.c.h.b16 %v699
        %v1293 = vunpack.c.l.b16 %v700
        %v1294 = vunpack.c.h.b16 %v700
        %v1295 = vunpack.c.l.b16 %v701
        %v1296 = vunpack.c.h.b16 %v701
        %v1297 = vunpack.c.l.b16 %v702
        %v1298 = vunpack.c.h.b16 %v702
        %v1299 = vunpack.c.l.b16 %v703
        %v1300 = vunpack.c.h.b16 %v703
        %v1301 = vunpack.c.l.b16 %v704
        %v1302 = vunpack.c.h.b16 %v704
        %v1303 = vunpack.c.l.b16 %v705
        %v1304 = vunpack.c.h.b16 %v705
        %v1305 = vunpack.c.l.b16 %v706
        %v1306 = vunpack.c.h.b16 %v706
        %v1307 = vunpack.c.l.b16 %v707
        %v1308 = vunpack.c.h.b16 %v707
        %v1309 = vunpack.c.l.b16 %v708
        %v1310 = vunpack.c.h.b16 %v708
        %v1311 = vunpack.c.l.b16 %v709
        %v1312 = vunpack.c.h.b16 %v709
        %v1313 = vunpack.c.l.b16 %v710
        %v1314 = vunpack.c.h.b16 %v710
        %v1315 = vunpack.c.l.b16 %v711
        %v1316 = vunpack.c.h.b16 %v711
        %v1317 = vunpack.c.l.b16 %v712
        %v1318 = vunpack.c.h.b16 %v712
        %v1319 = vunpack.c.l.b16 %v713
        %v1320 = vunpack.c.h.b16 %v713
        %v1321 = vunpack.c.l.b16 %v714
        %v1322 = vunpack.c.h.b16 %v714
        %v1323 = vunpack.c.l.b16 %v715
        %v1324 = vunpack.c.h.b16 %v715
        %v1325 = vunpack.c.l.b16 %v716
        %v1326 = vunpack.c.h.b16 %v716
        %v1327 = vpack.c.b16 %v939, %v935
        %v1328 = vpack.c.b16 %v940, %v936
        %v1329 = vpack.c.b16 %v941, %v937
        %v1330 = vpack.c.b16 %v942, %v938
        %v1331 = vpack.c.b16 %v947, %v943
        %v1332 = vpack.c.b16 %v948, %v944
        %v1333 = vpack.c.b16 %v949, %v945
        %v1334 = vpack.c.b16 %v950, %v946
        %v1335 = vpack.c.b16 %v955, %v951
        %v1336 = vpack.c.b16 %v956, %v952
        %v1337 = vpack.c.b16 %v957, %v953
        %v1338 = vpack.c.b16 %v958, %v954
        %v1339 = vpack.c.b16 %v963, %v959
        %v1340 = vpack.c.b16 %v964, %v960
        %v1341 = vpack.c.b16 %v965, %v961
        %v1342 = vpack.c.b16 %v966, %v962
        %v1343 = vpack.c.b16 %v971, %v967
        %v1344 = vpack.c.b16 %v972, %v968
        %v1345 = vpack.c.b16 %v973, %v969
        %v1346 = vpack.c.b16 %v974, %v970
        %v1347 = vpack.c.b16 %v979, %v975
        %v1348 = vpack.c.b16 %v980, %v976
        %v1349 = vpack.c.b16 %v981, %v977
        %v1350 = vpack.c.b16 %v982, %v978
        %v1351 = vpack.c.b16 %v987, %v983
        %v1352 = vpack.c.b16 %v988, %v984
        %v1353 = vpack.c.b16 %v989, %v985
        %v1354 = vpack.c.b16 %v990, %v986
        %v1355 = vpack.c.b16 %v995, %v991
        %v1356 = vpack.c.b16 %v996, %v992
        %v1357 = vpack.c.b16 %v997, %v993
        %v1358 = vpack.c.b16 %v998, %v994
        %v1359 = vpack.c.b16 %v1003, %v999
        %v1360 = vpack.c.b16 %v1004, %v1000
        %v1361 = vpack.c.b16 %v1005, %v1001
        %v1362 = vpack.c.b16 %v1006, %v1002
        %v1363 = vpack.c.b16 %v1011, %v1007
        %v1364 = vpack.c.b16 %v1012, %v1008
        %v1365 = vpack.c.b16 %v1013, %v1009
        %v1366 = vpack.c.b16 %v1014, %v1010
        %v1367 = vpack.c.b16 %v1019, %v1015
        %v1368 = vpack.c.b16 %v1020, %v1016
        %v1369 = vpack.c.b16 %v1021, %v1017
        %v1370 = vpack.c.b16 %v1022, %v1018
        %v1371 = vpack.c.b16 %v1027, %v1023
        %v1372 = vpack.c.b16 %v1028, %v1024
        %v1373 = vpack.c.b16 %v1029, %v1025
        %v1374 = vpack.c.b16 %v1030, %v1026
        %v1375 = vpack.c.b16 %v1035, %v1031
        %v1376 = vpack.c.b16 %v1036, %v1032
        %v1377 = vpack.c.b16 %v1037, %v1033
        %v1378 = vpack.c.b16 %v1038, %v1034
        %v1379 = vpack.c.b16 %v1043, %v1039
        %v1380 = vpack.c.b16 %v1044, %v1040
        %v1381 = vpack.c.b16 %v1045, %v1041
        %v1382 = vpack.c.b16 %v1046, %v1042
        %v1383 = vpack.c.b16 %v1051, %v1047
        %v1384 = vpack.c.b16 %v1052, %v1048
        %v1385 = vpack.c.b16 %v1053, %v1049
        %v1386 = vpack.c.b16 %v1054, %v1050
        %v1387 = vpack.c.b16 %v1059, %v1055
        %v1388 = vpack.c.b16 %v1060, %v1056
        %v1389 = vpack.c.b16 %v1061, %v1057
        %v1390 = vpack.c.b16 %v1062, %v1058
        %v1391 = vpack.c.b16 %v1067, %v1063
        %v1392 = vpack.c.b16 %v1068, %v1064
        %v1393 = vpack.c.b16 %v1069, %v1065
        %v1394 = vpack.c.b16 %v1070, %v1066
        %v1395 = vpack.c.b16 %v1075, %v1071
        %v1396 = vpack.c.b16 %v1076, %v1072
        %v1397 = vpack.c.b16 %v1077, %v1073
        %v1398 = vpack.c.b16 %v1078, %v1074
        %v1399 = vpack.c.b16 %v1083, %v1079
        %v1400 = vpack.c.b16 %v1084, %v1080
        %v1401 = vpack.c.b16 %v1085, %v1081
        %v1402 = vpack.c.b16 %v1086, %v1082
        %v1403 = vpack.c.b16 %v1091, %v1087
        %v1404 = vpack.c.b16 %v1092, %v1088
        %v1405 = vpack.c.b16 %v1093, %v1089
        %v1406 = vpack.c.b16 %v1094, %v1090
        %v1407 = vpack.c.b16 %v1099, %v1095
        %v1408 = vpack.c.b16 %v1100, %v1096
        %v1409 = vpack.c.b16 %v1101, %v1097
        %v1410 = vpack.c.b16 %v1102, %v1098
        %v1411 = vpack.c.b16 %v1107, %v1103
        %v1412 = vpack.c.b16 %v1108, %v1104
        %v1413 = vpack.c.b16 %v1109, %v1105
        %v1414 = vpack.c.b16 %v1110, %v1106
        %v1415 = vpack.c.b16 %v1115, %v1111
        %v1416 = vpack.c.b16 %v1116, %v1112
        %v1417 = vpack.c.b16 %v1117, %v1113
        %v1418 = vpack.c.b16 %v1118, %v1114
        %v1419 = vpack.c.b16 %v1123, %v1119
        %v1420 = vpack.c.b16 %v1124, %v1120
        %v1421 = vpack.c.b16 %v1125, %v1121
        %v1422 = vpack.c.b16 %v1126, %v1122
        %v1423 = vpack.c.b16 %v1131, %v1127
        %v1424 = vpack.c.b16 %v1132, %v1128
        %v1425 = vpack.c.b16 %v1133, %v1129
        %v1426 = vpack.c.b16 %v1134, %v1130
        %v1427 = vpack.c.b16 %v1139, %v1135
        %v1428 = vpack.c.b16 %v1140, %v1136
        %v1429 = vpack.c.b16 %v1141, %v1137
        %v1430 = vpack.c.b16 %v1142, %v1138
        %v1431 = vpack.c.b16 %v1147, %v1143
        %v1432 = vpack.c.b16 %v1148, %v1144
        %v1433 = vpack.c.b16 %v1149, %v1145
        %v1434 = vpack.c.b16 %v1150, %v1146
        %v1435 = vpack.c.b16 %v1155, %v1151
        %v1436 = vpack.c.b16 %v1156, %v1152
        %v1437 = vpack.c.b16 %v1157, %v1153
        %v1438 = vpack.c.b16 %v1158, %v1154
        %v1439 = vpack.c.b16 %v1163, %v1159
        %v1440 = vpack.c.b16 %v1164, %v1160
        %v1441 = vpack.c.b16 %v1165, %v1161
        %v1442 = vpack.c.b16 %v1166, %v1162
        %v1443 = vpack.c.b16 %v1171, %v1167
        %v1444 = vpack.c.b16 %v1172, %v1168
        %v1445 = vpack.c.b16 %v1173, %v1169
        %v1446 = vpack.c.b16 %v1174, %v1170
        %v1447 = vpack.c.b16 %v1179, %v1175
        %v1448 = vpack.c.b16 %v1180, %v1176
        %v1449 = vpack.c.b16 %v1181, %v1177
        %v1450 = vpack.c.b16 %v1182, %v1178
        %v1451 = vpack.c.b16 %v1187, %v1183
        %v1452 = vpack.c.b16 %v1188, %v1184
        %v1453 = vpack.c.b16 %v1189, %v1185
        %v1454 = vpack.c.b16 %v1190, %v1186
        %v1455 = vpack.c.b16 %v1195, %v1191
        %v1456 = vpack.c.b16 %v1196, %v1192
        %v1457 = vpack.c.b16 %v1197, %v1193
        %v1458 = vpack.c.b16 %v1198, %v1194
        %v1459 = vpack.c.b16 %v1203, %v1199
        %v1460 = vpack.c.b16 %v1204, %v1200
        %v1461 = vpack.c.b16 %v1205, %v1201
        %v1462 = vpack.c.b16 %v1206, %v1202
        %v1463 = vpack.c.b16 %v1211, %v1207
        %v1464 = vpack.c.b16 %v1212, %v1208
        %v1465 = vpack.c.b16 %v1213, %v1209
        %v1466 = vpack.c.b16 %v1214, %v1210
        %v1467 = vpack.c.b16 %v1219, %v1215
        %v1468 = vpack.c.b16 %v1220, %v1216
        %v1469 = vpack.c.b16 %v1221, %v1217
        %v1470 = vpack.c.b16 %v1222, %v1218
        %v1471 = vpack.c.b16 %v1227, %v1223
        %v1472 = vpack.c.b16 %v1228, %v1224
        %v1473 = vpack.c.b16 %v1229, %v1225
        %v1474 = vpack.c.b16 %v1230, %v1226
        %v1475 = vpack.c.b16 %v1235, %v1231
        %v1476 = vpack.c.b16 %v1236, %v1232
        %v1477 = vpack.c.b16 %v1237, %v1233
        %v1478 = vpack.c.b16 %v1238, %v1234
        %v1479 = vpack.c.b16 %v1243, %v1239
        %v1480 = vpack.c.b16 %v1244, %v1240
        %v1481 = vpack.c.b16 %v1245, %v1241
        %v1482 = vpack.c.b16 %v1246, %v1242
        %v1483 = vpack.c.b16 %v1251, %v1247
        %v1484 = vpack.c.b16 %v1252, %v1248
        %v1485 = vpack.c.b16 %v1253, %v1249
        %v1486 = vpack.c.b16 %v1254, %v1250
        %v1487 = vpack.c.b16 %v1259, %v1255
        %v1488 = vpack.c.b16 %v1260, %v1256
        %v1489 = vpack.c.b16 %v1261, %v1257
        %v1490 = vpack.c.b16 %v1262, %v1258
        %v1491 = vpack.c.b16 %v1267, %v1263
        %v1492 = vpack.c.b16 %v1268, %v1264
        %v1493 = vpack.c.b16 %v1269, %v1265
        %v1494 = vpack.c.b16 %v1270, %v1266
        %v1495 = vpack.c.b16 %v1275, %v1271
        %v1496 = vpack.c.b16 %v1276, %v1272
        %v1497 = vpack.c.b16 %v1277, %v1273
        %v1498 = vpack.c.b16 %v1278, %v1274
        %v1499 = vpack.c.b16 %v1283, %v1279
        %v1500 = vpack.c.b16 %v1284, %v1280
        %v1501 = vpack.c.b16 %v1285, %v1281
        %v1502 = vpack.c.b16 %v1286, %v1282
        %v1503 = vpack.c.b16 %v1291, %v1287
        %v1504 = vpack.c.b16 %v1292, %v1288
        %v1505 = vpack.c.b16 %v1293, %v1289
        %v1506 = vpack.c.b16 %v1294, %v1290
        %v1507 = vpack.c.b16 %v1299, %v1295
        %v1508 = vpack.c.b16 %v1300, %v1296
        %v1509 = vpack.c.b16 %v1301, %v1297
        %v1510 = vpack.c.b16 %v1302, %v1298
        %v1511 = vpack.c.b16 %v1307, %v1303
        %v1512 = vpack.c.b16 %v1308, %v1304
        %v1513 = vpack.c.b16 %v1309, %v1305
        %v1514 = vpack.c.b16 %v1310, %v1306
        %v1515 = vpack.c.b16 %v1315, %v1311
        %v1516 = vpack.c.b16 %v1316, %v1312
        %v1517 = vpack.c.b16 %v1317, %v1313
        %v1518 = vpack.c.b16 %v1318, %v1314
        %v1519 = vpack.c.b16 %v1323, %v1319
        %v1520 = vpack.c.b16 %v1324, %v1320
        %v1521 = vpack.c.b16 %v1325, %v1321
        %v1522 = vpack.c.b16 %v1326, %v1322
        %vm1719 = vcmask 130048
        %v1721 = vsel %vm1719, %v471, 0
        %v1724 = vsel %vm1719, %v478, 0
        %v1727 = vsel %vm1719, %v485, 0
        %v1730 = vsel %vm1719, %v492, 0
        %v1733 = vsel %vm1719, %v499, 0
        %v1736 = vsel %vm1719, %v506, 0
        %v1739 = vsel %vm1719, %v513, 0
        %v1742 = vsel %vm1719, %v520, 0
        %1744 = vmatprep.subr.bf16.mxu0 %v1328
        %1745 = vmatpush1.bf16.msra.mxu0 %v1327
        %1746 = vmatprep.subr.bf16.mxu0 %v1332
        %1747 = vmatpush1.bf16.msra.mxu0 %v1331
        %1748 = vmatprep.subr.bf16.mxu0 %v1336
        %1749 = vmatpush1.bf16.msra.mxu0 %v1335
        %1750 = vmatprep.subr.bf16.mxu0 %v1340
        %1751 = vmatpush1.bf16.msra.mxu0 %v1339
        %1752 = vmatprep.subr.bf16.mxu0 %v1344
        %1753 = vmatpush1.bf16.msra.mxu0 %v1343
        %1754 = vmatprep.subr.bf16.mxu0 %v1348
        %1755 = vmatpush1.bf16.msra.mxu0 %v1347
        %1756 = vmatprep.subr.bf16.mxu0 %v1352
        %1757 = vmatpush1.bf16.msra.mxu0 %v1351
        %1758 = vmatprep.subr.bf16.mxu0 %v1356
        %1759 = vmatpush1.bf16.msra.mxu0 %v1355
        %1760 = vmatprep.subr.bf16.mxu0 %v1360
        %1761 = vmatpush1.bf16.msra.mxu0 %v1359
        %1762 = vmatprep.subr.bf16.mxu0 %v1364
        %1763 = vmatpush1.bf16.msra.mxu0 %v1363
        %1764 = vmatprep.subr.bf16.mxu0 %v1368
        %1765 = vmatpush1.bf16.msra.mxu0 %v1367
        %1766 = vmatprep.subr.bf16.mxu0 %v1372
        %1767 = vmatpush1.bf16.msra.mxu0 %v1371
        %1768 = vmatprep.subr.bf16.mxu0 %v1376
        %1769 = vmatpush1.bf16.msra.mxu0 %v1375
        %1770 = vmatprep.subr.bf16.mxu0 %v1380
        %1771 = vmatpush1.bf16.msra.mxu0 %v1379
        %1772 = vmatprep.subr.bf16.mxu0 %v1384
        %1773 = vmatpush1.bf16.msra.mxu0 %v1383
        %1774 = vmatprep.subr.bf16.mxu0 %v1388
        %1775 = vmatpush1.bf16.msra.mxu0 %v1387
        %1776 = vmatprep.mubr.bf16.mxu0 %v466
        %1777 = vmatmul.mubr.bf16.gmra.mrb[0].mxu0 %v465
        %v1778 = vpop.f32.mrb[0].mxu0
        %v1779 = vadd.f32 %v722, %v1778
        %v1780 = vpop.f32.mrb[0].mxu0
        %v1781 = vadd.f32 %v726, %v1780
        %v1782 = vpop.f32.mrb[0].mxu0
        %v1783 = vadd.f32 %v722, %v1782
        %v1784 = vpop.f32.mrb[0].mxu0
        %v1785 = vadd.f32 %v726, %v1784
        %1786 = vmatprep.mubr.bf16.mxu0 %v473
        %1787 = vmatmul.mubr.bf16.gmra.mrb[0].mxu0 %v472
        %v1788 = vpop.f32.mrb[0].mxu0
        %v1789 = vadd.f32 %v722, %v1788
        %v1790 = vpop.f32.mrb[0].mxu0
        %v1791 = vadd.f32 %v726, %v1790
        %v1792 = vpop.f32.mrb[0].mxu0
        %v1793 = vadd.f32 %v722, %v1792
        %v1794 = vpop.f32.mrb[0].mxu0
        %v1795 = vadd.f32 %v726, %v1794
        %1796 = vmatprep.mubr.bf16.mxu0 %v480
        %1797 = vmatmul.mubr.bf16.gmra.mrb[0].mxu0 %v479
        %v1798 = vpop.f32.mrb[0].mxu0
        %v1799 = vadd.f32 %v722, %v1798
        %v1800 = vpop.f32.mrb[0].mxu0
        %v1801 = vadd.f32 %v726, %v1800
        %v1802 = vpop.f32.mrb[0].mxu0
        %v1803 = vadd.f32 %v722, %v1802
        %v1804 = vpop.f32.mrb[0].mxu0
        %v1805 = vadd.f32 %v726, %v1804
        %1806 = vmatprep.mubr.bf16.mxu0 %v487
        %1807 = vmatmul.mubr.bf16.gmra.mrb[0].mxu0 %v486
        %v1808 = vpop.f32.mrb[0].mxu0
        %v1809 = vadd.f32 %v722, %v1808
        %v1810 = vpop.f32.mrb[0].mxu0
        %v1811 = vadd.f32 %v726, %v1810
        %v1812 = vpop.f32.mrb[0].mxu0
        %v1813 = vadd.f32 %v722, %v1812
        %v1814 = vpop.f32.mrb[0].mxu0
        %v1815 = vadd.f32 %v726, %v1814
        %1816 = vmatprep.mubr.bf16.mxu0 %v494
        %1817 = vmatmul.mubr.bf16.gmra.mrb[0].mxu0 %v493
        %v1818 = vpop.f32.mrb[0].mxu0
        %v1819 = vadd.f32 %v722, %v1818
        %v1820 = vpop.f32.mrb[0].mxu0
        %v1821 = vadd.f32 %v726, %v1820
        %v1822 = vpop.f32.mrb[0].mxu0
        %v1823 = vadd.f32 %v722, %v1822
        %v1824 = vpop.f32.mrb[0].mxu0
        %v1825 = vadd.f32 %v726, %v1824
        %1826 = vmatprep.mubr.bf16.mxu0 %v501
        %1827 = vmatmul.mubr.bf16.gmra.mrb[0].mxu0 %v500
        %v1828 = vpop.f32.mrb[0].mxu0
        %v1829 = vadd.f32 %v722, %v1828
        %v1830 = vpop.f32.mrb[0].mxu0
        %v1831 = vadd.f32 %v726, %v1830
        %v1832 = vpop.f32.mrb[0].mxu0
        %v1833 = vadd.f32 %v722, %v1832
        %v1834 = vpop.f32.mrb[0].mxu0
        %v1835 = vadd.f32 %v726, %v1834
        %1836 = vmatprep.mubr.bf16.mxu0 %v508
        %1837 = vmatmul.mubr.bf16.gmra.mrb[0].mxu0 %v507
        %v1838 = vpop.f32.mrb[0].mxu0
        %v1839 = vadd.f32 %v722, %v1838
        %v1840 = vpop.f32.mrb[0].mxu0
        %v1841 = vadd.f32 %v726, %v1840
        %v1842 = vpop.f32.mrb[0].mxu0
        %v1843 = vadd.f32 %v722, %v1842
        %v1844 = vpop.f32.mrb[0].mxu0
        %v1845 = vadd.f32 %v726, %v1844
        %1846 = vmatprep.mubr.bf16.mxu0 %v515
        %1847 = vmatmul.mubr.bf16.gmra.mrb[0].mxu0 %v514
        %v1848 = vpop.f32.mrb[0].mxu0
        %v1849 = vadd.f32 %v722, %v1848
        %v1850 = vpop.f32.mrb[0].mxu0
        %v1851 = vadd.f32 %v726, %v1850
        %v1852 = vpop.f32.mrb[0].mxu0
        %v1853 = vadd.f32 %v722, %v1852
        %v1854 = vpop.f32.mrb[0].mxu0
        %v1855 = vadd.f32 %v726, %v1854
        %1856 = vdwg.mxu0
        %1857 = vmatprep.subr.bf16.mxu0 %v1392
        %1858 = vmatpush1.bf16.msra.mxu0 %v1391
        %1859 = vmatprep.subr.bf16.mxu0 %v1396
        %1860 = vmatpush1.bf16.msra.mxu0 %v1395
        %1861 = vmatprep.subr.bf16.mxu0 %v1400
        %1862 = vmatpush1.bf16.msra.mxu0 %v1399
        %1863 = vmatprep.subr.bf16.mxu0 %v1404
        %1864 = vmatpush1.bf16.msra.mxu0 %v1403
        %1865 = vmatprep.subr.bf16.mxu0 %v1408
        %1866 = vmatpush1.bf16.msra.mxu0 %v1407
        %1867 = vmatprep.subr.bf16.mxu0 %v1412
        %1868 = vmatpush1.bf16.msra.mxu0 %v1411
        %1869 = vmatprep.subr.bf16.mxu0 %v1416
        %1870 = vmatpush1.bf16.msra.mxu0 %v1415
        %1871 = vmatprep.subr.bf16.mxu0 %v1420
        %1872 = vmatpush1.bf16.msra.mxu0 %v1419
        %1873 = vmatprep.subr.bf16.mxu0 %v1424
        %1874 = vmatpush1.bf16.msra.mxu0 %v1423
        %1875 = vmatprep.subr.bf16.mxu0 %v1428
        %1876 = vmatpush1.bf16.msra.mxu0 %v1427
        %1877 = vmatprep.subr.bf16.mxu0 %v1432
        %1878 = vmatpush1.bf16.msra.mxu0 %v1431
        %1879 = vmatprep.subr.bf16.mxu0 %v1436
        %1880 = vmatpush1.bf16.msra.mxu0 %v1435
        %1881 = vmatprep.subr.bf16.mxu0 %v1440
        %1882 = vmatpush1.bf16.msra.mxu0 %v1439
        %1883 = vmatprep.subr.bf16.mxu0 %v1444
        %1884 = vmatpush1.bf16.msra.mxu0 %v1443
        %1885 = vmatprep.subr.bf16.mxu0 %v1448
        %1886 = vmatpush1.bf16.msra.mxu0 %v1447
        %1887 = vmatprep.subr.bf16.mxu0 %v1452
        %1888 = vmatpush1.bf16.msra.mxu0 %v1451
        %1889 = vmatprep.mubr.bf16.mxu0 %v468
        %1890 = vmatmul.mubr.bf16.gmra.mrb[0].mxu0 %v467
        %v1891 = vpop.f32.mrb[0].mxu0
        %v1892 = vadd.f32 %v1779, %v1891
        %v1893 = vpop.f32.mrb[0].mxu0
        %v1894 = vadd.f32 %v1781, %v1893
        %v1895 = vpop.f32.mrb[0].mxu0
        %v1896 = vadd.f32 %v1783, %v1895
        %v1897 = vpop.f32.mrb[0].mxu0
        %v1898 = vadd.f32 %v1785, %v1897
        %1899 = vmatprep.mubr.bf16.mxu0 %v475
        %1900 = vmatmul.mubr.bf16.gmra.mrb[0].mxu0 %v474
        %v1901 = vpop.f32.mrb[0].mxu0
        %v1902 = vadd.f32 %v1789, %v1901
        %v1903 = vpop.f32.mrb[0].mxu0
        %v1904 = vadd.f32 %v1791, %v1903
        %v1905 = vpop.f32.mrb[0].mxu0
        %v1906 = vadd.f32 %v1793, %v1905
        %v1907 = vpop.f32.mrb[0].mxu0
        %v1908 = vadd.f32 %v1795, %v1907
        %1909 = vmatprep.mubr.bf16.mxu0 %v482
        %1910 = vmatmul.mubr.bf16.gmra.mrb[0].mxu0 %v481
        %v1911 = vpop.f32.mrb[0].mxu0
        %v1912 = vadd.f32 %v1799, %v1911
        %v1913 = vpop.f32.mrb[0].mxu0
        %v1914 = vadd.f32 %v1801, %v1913
        %v1915 = vpop.f32.mrb[0].mxu0
        %v1916 = vadd.f32 %v1803, %v1915
        %v1917 = vpop.f32.mrb[0].mxu0
        %v1918 = vadd.f32 %v1805, %v1917
        %1919 = vmatprep.mubr.bf16.mxu0 %v489
        %1920 = vmatmul.mubr.bf16.gmra.mrb[0].mxu0 %v488
        %v1921 = vpop.f32.mrb[0].mxu0
        %v1922 = vadd.f32 %v1809, %v1921
        %v1923 = vpop.f32.mrb[0].mxu0
        %v1924 = vadd.f32 %v1811, %v1923
        %v1925 = vpop.f32.mrb[0].mxu0
        %v1926 = vadd.f32 %v1813, %v1925
        %v1927 = vpop.f32.mrb[0].mxu0
        %v1928 = vadd.f32 %v1815, %v1927
        %1929 = vmatprep.mubr.bf16.mxu0 %v496
        %1930 = vmatmul.mubr.bf16.gmra.mrb[0].mxu0 %v495
        %v1931 = vpop.f32.mrb[0].mxu0
        %v1932 = vadd.f32 %v1819, %v1931
        %v1933 = vpop.f32.mrb[0].mxu0
        %v1934 = vadd.f32 %v1821, %v1933
        %v1935 = vpop.f32.mrb[0].mxu0
        %v1936 = vadd.f32 %v1823, %v1935
        %v1937 = vpop.f32.mrb[0].mxu0
        %v1938 = vadd.f32 %v1825, %v1937
        %1939 = vmatprep.mubr.bf16.mxu0 %v503
        %1940 = vmatmul.mubr.bf16.gmra.mrb[0].mxu0 %v502
        %v1941 = vpop.f32.mrb[0].mxu0
        %v1942 = vadd.f32 %v1829, %v1941
        %v1943 = vpop.f32.mrb[0].mxu0
        %v1944 = vadd.f32 %v1831, %v1943
        %v1945 = vpop.f32.mrb[0].mxu0
        %v1946 = vadd.f32 %v1833, %v1945
        %v1947 = vpop.f32.mrb[0].mxu0
        %v1948 = vadd.f32 %v1835, %v1947
        %1949 = vmatprep.mubr.bf16.mxu0 %v510
        %1950 = vmatmul.mubr.bf16.gmra.mrb[0].mxu0 %v509
        %v1951 = vpop.f32.mrb[0].mxu0
        %v1952 = vadd.f32 %v1839, %v1951
        %v1953 = vpop.f32.mrb[0].mxu0
        %v1954 = vadd.f32 %v1841, %v1953
        %v1955 = vpop.f32.mrb[0].mxu0
        %v1956 = vadd.f32 %v1843, %v1955
        %v1957 = vpop.f32.mrb[0].mxu0
        %v1958 = vadd.f32 %v1845, %v1957
        %1959 = vmatprep.mubr.bf16.mxu0 %v517
        %1960 = vmatmul.mubr.bf16.gmra.mrb[0].mxu0 %v516
        %v1961 = vpop.f32.mrb[0].mxu0
        %v1962 = vadd.f32 %v1849, %v1961
        %v1963 = vpop.f32.mrb[0].mxu0
        %v1964 = vadd.f32 %v1851, %v1963
        %v1965 = vpop.f32.mrb[0].mxu0
        %v1966 = vadd.f32 %v1853, %v1965
        %v1967 = vpop.f32.mrb[0].mxu0
        %v1968 = vadd.f32 %v1855, %v1967
        %1969 = vdwg.mxu0
        %1970 = vmatprep.subr.bf16.mxu0 %v1456
        %1971 = vmatpush1.bf16.msra.mxu0 %v1455
        %1972 = vmatprep.subr.bf16.mxu0 %v1460
        %1973 = vmatpush1.bf16.msra.mxu0 %v1459
        %1974 = vmatprep.subr.bf16.mxu0 %v1464
        %1975 = vmatpush1.bf16.msra.mxu0 %v1463
        %1976 = vmatprep.subr.bf16.mxu0 %v1468
        %1977 = vmatpush1.bf16.msra.mxu0 %v1467
        %1978 = vmatprep.subr.bf16.mxu0 %v1472
        %1979 = vmatpush1.bf16.msra.mxu0 %v1471
        %1980 = vmatprep.subr.bf16.mxu0 %v1476
        %1981 = vmatpush1.bf16.msra.mxu0 %v1475
        %1982 = vmatprep.subr.bf16.mxu0 %v1480
        %1983 = vmatpush1.bf16.msra.mxu0 %v1479
        %1984 = vmatprep.subr.bf16.mxu0 %v1484
        %1985 = vmatpush1.bf16.msra.mxu0 %v1483
        %1986 = vmatprep.subr.bf16.mxu0 %v1488
        %1987 = vmatpush1.bf16.msra.mxu0 %v1487
        %1988 = vmatprep.subr.bf16.mxu0 %v1492
        %1989 = vmatpush1.bf16.msra.mxu0 %v1491
        %1990 = vmatprep.subr.bf16.mxu0 %v1496
        %1991 = vmatpush1.bf16.msra.mxu0 %v1495
        %1992 = vmatprep.subr.bf16.mxu0 %v1500
        %1993 = vmatpush1.bf16.msra.mxu0 %v1499
        %1994 = vmatprep.subr.bf16.mxu0 %v1504
        %1995 = vmatpush1.bf16.msra.mxu0 %v1503
        %1996 = vmatprep.subr.bf16.mxu0 %v1508
        %1997 = vmatpush1.bf16.msra.mxu0 %v1507
        %1998 = vmatprep.subr.bf16.mxu0 %v1512
        %1999 = vmatpush1.bf16.msra.mxu0 %v1511
        %2000 = vmatprep.subr.bf16.mxu0 %v1516
        %2001 = vmatpush1.bf16.msra.mxu0 %v1515
        %2002 = vmatprep.mubr.bf16.mxu0 %v470
        %2003 = vmatmul.mubr.bf16.gmra.mrb[0].mxu0 %v469
        %v2004 = vpop.f32.mrb[0].mxu0
        %v2005 = vadd.f32 %v1892, %v2004
        %v2006 = vpop.f32.mrb[0].mxu0
        %v2007 = vadd.f32 %v1894, %v2006
        %v2008 = vpop.f32.mrb[0].mxu0
        %v2009 = vadd.f32 %v1896, %v2008
        %v2010 = vpop.f32.mrb[0].mxu0
        %v2011 = vadd.f32 %v1898, %v2010
        %2012 = vmatprep.mubr.bf16.mxu0 %v477
        %2013 = vmatmul.mubr.bf16.gmra.mrb[0].mxu0 %v476
        %v2014 = vpop.f32.mrb[0].mxu0
        %v2015 = vadd.f32 %v1902, %v2014
        %v2016 = vpop.f32.mrb[0].mxu0
        %v2017 = vadd.f32 %v1904, %v2016
        %v2018 = vpop.f32.mrb[0].mxu0
        %v2019 = vadd.f32 %v1906, %v2018
        %v2020 = vpop.f32.mrb[0].mxu0
        %v2021 = vadd.f32 %v1908, %v2020
        %2022 = vmatprep.mubr.bf16.mxu0 %v484
        %2023 = vmatmul.mubr.bf16.gmra.mrb[0].mxu0 %v483
        %v2024 = vpop.f32.mrb[0].mxu0
        %v2025 = vadd.f32 %v1912, %v2024
        %v2026 = vpop.f32.mrb[0].mxu0
        %v2027 = vadd.f32 %v1914, %v2026
        %v2028 = vpop.f32.mrb[0].mxu0
        %v2029 = vadd.f32 %v1916, %v2028
        %v2030 = vpop.f32.mrb[0].mxu0
        %v2031 = vadd.f32 %v1918, %v2030
        %2032 = vmatprep.mubr.bf16.mxu0 %v491
        %2033 = vmatmul.mubr.bf16.gmra.mrb[0].mxu0 %v490
        %v2034 = vpop.f32.mrb[0].mxu0
        %v2035 = vadd.f32 %v1922, %v2034
        %v2036 = vpop.f32.mrb[0].mxu0
        %v2037 = vadd.f32 %v1924, %v2036
        %v2038 = vpop.f32.mrb[0].mxu0
        %v2039 = vadd.f32 %v1926, %v2038
        %v2040 = vpop.f32.mrb[0].mxu0
        %v2041 = vadd.f32 %v1928, %v2040
        %2042 = vmatprep.mubr.bf16.mxu0 %v498
        %2043 = vmatmul.mubr.bf16.gmra.mrb[0].mxu0 %v497
        %v2044 = vpop.f32.mrb[0].mxu0
        %v2045 = vadd.f32 %v1932, %v2044
        %v2046 = vpop.f32.mrb[0].mxu0
        %v2047 = vadd.f32 %v1934, %v2046
        %v2048 = vpop.f32.mrb[0].mxu0
        %v2049 = vadd.f32 %v1936, %v2048
        %v2050 = vpop.f32.mrb[0].mxu0
        %v2051 = vadd.f32 %v1938, %v2050
        %2052 = vmatprep.mubr.bf16.mxu0 %v505
        %2053 = vmatmul.mubr.bf16.gmra.mrb[0].mxu0 %v504
        %v2054 = vpop.f32.mrb[0].mxu0
        %v2055 = vadd.f32 %v1942, %v2054
        %v2056 = vpop.f32.mrb[0].mxu0
        %v2057 = vadd.f32 %v1944, %v2056
        %v2058 = vpop.f32.mrb[0].mxu0
        %v2059 = vadd.f32 %v1946, %v2058
        %v2060 = vpop.f32.mrb[0].mxu0
        %v2061 = vadd.f32 %v1948, %v2060
        %2062 = vmatprep.mubr.bf16.mxu0 %v512
        %2063 = vmatmul.mubr.bf16.gmra.mrb[0].mxu0 %v511
        %v2064 = vpop.f32.mrb[0].mxu0
        %v2065 = vadd.f32 %v1952, %v2064
        %v2066 = vpop.f32.mrb[0].mxu0
        %v2067 = vadd.f32 %v1954, %v2066
        %v2068 = vpop.f32.mrb[0].mxu0
        %v2069 = vadd.f32 %v1956, %v2068
        %v2070 = vpop.f32.mrb[0].mxu0
        %v2071 = vadd.f32 %v1958, %v2070
        %2072 = vmatprep.mubr.bf16.mxu0 %v519
        %2073 = vmatmul.mubr.bf16.gmra.mrb[0].mxu0 %v518
        %v2074 = vpop.f32.mrb[0].mxu0
        %v2075 = vadd.f32 %v1962, %v2074
        %v2076 = vpop.f32.mrb[0].mxu0
        %v2077 = vadd.f32 %v1964, %v2076
        %v2078 = vpop.f32.mrb[0].mxu0
        %v2079 = vadd.f32 %v1966, %v2078
        %v2080 = vpop.f32.mrb[0].mxu0
        %v2081 = vadd.f32 %v1968, %v2080
        %2082 = vdwg.mxu0
        %2083 = vmatprep.subr.bf16.mxu0 %v1520
        %2084 = vmatpush1.bf16.msra.mxu0 %v1519
        %2085 = vmatprep.subr.bf16.mxu0 0
        %2086 = vmatpush1.bf16.msra.mxu0 0
        %2087 = vmatprep.subr.bf16.mxu0 0
        %2088 = vmatpush1.bf16.msra.mxu0 0
        %2089 = vmatprep.subr.bf16.mxu0 0
        %2090 = vmatpush1.bf16.msra.mxu0 0
        %2091 = vmatprep.subr.bf16.mxu0 0
        %2092 = vmatpush1.bf16.msra.mxu0 0
        %2093 = vmatprep.subr.bf16.mxu0 0
        %2094 = vmatpush1.bf16.msra.mxu0 0
        %2095 = vmatprep.subr.bf16.mxu0 0
        %2096 = vmatpush1.bf16.msra.mxu0 0
        %2097 = vmatprep.subr.bf16.mxu0 0
        %2098 = vmatpush1.bf16.msra.mxu0 0
        %2099 = vmatprep.subr.bf16.mxu0 0
        %2100 = vmatpush1.bf16.msra.mxu0 0
        %2101 = vmatprep.subr.bf16.mxu0 0
        %2102 = vmatpush1.bf16.msra.mxu0 0
        %2103 = vmatprep.subr.bf16.mxu0 0
        %2104 = vmatpush1.bf16.msra.mxu0 0
        %2105 = vmatprep.subr.bf16.mxu0 0
        %2106 = vmatpush1.bf16.msra.mxu0 0
        %2107 = vmatprep.subr.bf16.mxu0 0
        %2108 = vmatpush1.bf16.msra.mxu0 0
        %2109 = vmatprep.subr.bf16.mxu0 0
        %2110 = vmatpush1.bf16.msra.mxu0 0
        %2111 = vmatprep.subr.bf16.mxu0 0
        %2112 = vmatpush1.bf16.msra.mxu0 0
        %2113 = vmatprep.subr.bf16.mxu0 0
        %2114 = vmatpush1.bf16.msra.mxu0 0
        %2115 = vmatprep.mubr.bf16.mxu0 0
        %2116 = vmatmul.mubr.bf16.gmra.mrb[0].mxu0 %v1721
        %v2117 = vpop.f32.mrb[0].mxu0
        %v2118 = vadd.f32 %v2005, %v2117
        %v2119 = vpop.f32.mrb[0].mxu0
        %v2120 = vadd.f32 %v2007, %v2119
        %v2121 = vpop.f32.mrb[0].mxu0
        %v2122 = vadd.f32 %v2009, %v2121
        %v2123 = vpop.f32.mrb[0].mxu0
        %v2124 = vadd.f32 %v2011, %v2123
        %2125 = vmatprep.mubr.bf16.mxu0 0
        %2126 = vmatmul.mubr.bf16.gmra.mrb[0].mxu0 %v1724
        %v2127 = vpop.f32.mrb[0].mxu0
        %v2128 = vadd.f32 %v2015, %v2127
        %v2129 = vpop.f32.mrb[0].mxu0
        %v2130 = vadd.f32 %v2017, %v2129
        %v2131 = vpop.f32.mrb[0].mxu0
        %v2132 = vadd.f32 %v2019, %v2131
        %v2133 = vpop.f32.mrb[0].mxu0
        %v2134 = vadd.f32 %v2021, %v2133
        %2135 = vmatprep.mubr.bf16.mxu0 0
        %2136 = vmatmul.mubr.bf16.gmra.mrb[0].mxu0 %v1727
        %v2137 = vpop.f32.mrb[0].mxu0
        %v2138 = vadd.f32 %v2025, %v2137
        %v2139 = vpop.f32.mrb[0].mxu0
        %v2140 = vadd.f32 %v2027, %v2139
        %v2141 = vpop.f32.mrb[0].mxu0
        %v2142 = vadd.f32 %v2029, %v2141
        %v2143 = vpop.f32.mrb[0].mxu0
        %v2144 = vadd.f32 %v2031, %v2143
        %2145 = vmatprep.mubr.bf16.mxu0 0
        %2146 = vmatmul.mubr.bf16.gmra.mrb[0].mxu0 %v1730
        %v2147 = vpop.f32.mrb[0].mxu0
        %v2148 = vadd.f32 %v2035, %v2147
        %v2149 = vpop.f32.mrb[0].mxu0
        %v2150 = vadd.f32 %v2037, %v2149
        %v2151 = vpop.f32.mrb[0].mxu0
        %v2152 = vadd.f32 %v2039, %v2151
        %v2153 = vpop.f32.mrb[0].mxu0
        %v2154 = vadd.f32 %v2041, %v2153
        %2155 = vmatprep.mubr.bf16.mxu0 0
        %2156 = vmatmul.mubr.bf16.gmra.mrb[0].mxu0 %v1733
        %v2157 = vpop.f32.mrb[0].mxu0
        %v2158 = vadd.f32 %v2045, %v2157
        %v2159 = vpop.f32.mrb[0].mxu0
        %v2160 = vadd.f32 %v2047, %v2159
        %v2161 = vpop.f32.mrb[0].mxu0
        %v2162 = vadd.f32 %v2049, %v2161
        %v2163 = vpop.f32.mrb[0].mxu0
        %v2164 = vadd.f32 %v2051, %v2163
        %2165 = vmatprep.mubr.bf16.mxu0 0
        %2166 = vmatmul.mubr.bf16.gmra.mrb[0].mxu0 %v1736
        %v2167 = vpop.f32.mrb[0].mxu0
        %v2168 = vadd.f32 %v2055, %v2167
        %v2169 = vpop.f32.mrb[0].mxu0
        %v2170 = vadd.f32 %v2057, %v2169
        %v2171 = vpop.f32.mrb[0].mxu0
        %v2172 = vadd.f32 %v2059, %v2171
        %v2173 = vpop.f32.mrb[0].mxu0
        %v2174 = vadd.f32 %v2061, %v2173
        %2175 = vmatprep.mubr.bf16.mxu0 0
        %2176 = vmatmul.mubr.bf16.gmra.mrb[0].mxu0 %v1739
        %v2177 = vpop.f32.mrb[0].mxu0
        %v2178 = vadd.f32 %v2065, %v2177
        %v2179 = vpop.f32.mrb[0].mxu0
        %v2180 = vadd.f32 %v2067, %v2179
        %v2181 = vpop.f32.mrb[0].mxu0
        %v2182 = vadd.f32 %v2069, %v2181
        %v2183 = vpop.f32.mrb[0].mxu0
        %v2184 = vadd.f32 %v2071, %v2183
        %2185 = vmatprep.mubr.bf16.mxu0 0
        %2186 = vmatmul.mubr.bf16.gmra.mrb[0].mxu0 %v1742
        %v2187 = vpop.f32.mrb[0].mxu0
        %v2188 = vadd.f32 %v2075, %v2187
        %v2189 = vpop.f32.mrb[0].mxu0
        %v2190 = vadd.f32 %v2077, %v2189
        %v2191 = vpop.f32.mrb[0].mxu0
        %v2192 = vadd.f32 %v2079, %v2191
        %v2193 = vpop.f32.mrb[0].mxu0
        %v2194 = vadd.f32 %v2081, %v2193
        %2195 = vdwg.mxu0
        %2196 = vmatprep.subr.bf16.mxu0 %v1330
        %2197 = vmatpush1.bf16.msra.mxu0 %v1329
        %2198 = vmatprep.subr.bf16.mxu0 %v1334
        %2199 = vmatpush1.bf16.msra.mxu0 %v1333
        %2200 = vmatprep.subr.bf16.mxu0 %v1338
        %2201 = vmatpush1.bf16.msra.mxu0 %v1337
        %2202 = vmatprep.subr.bf16.mxu0 %v1342
        %2203 = vmatpush1.bf16.msra.mxu0 %v1341
        %2204 = vmatprep.subr.bf16.mxu0 %v1346
        %2205 = vmatpush1.bf16.msra.mxu0 %v1345
        %2206 = vmatprep.subr.bf16.mxu0 %v1350
        %2207 = vmatpush1.bf16.msra.mxu0 %v1349
        %2208 = vmatprep.subr.bf16.mxu0 %v1354
        %2209 = vmatpush1.bf16.msra.mxu0 %v1353
        %2210 = vmatprep.subr.bf16.mxu0 %v1358
        %2211 = vmatpush1.bf16.msra.mxu0 %v1357
        %2212 = vmatprep.subr.bf16.mxu0 %v1362
        %2213 = vmatpush1.bf16.msra.mxu0 %v1361
        %2214 = vmatprep.subr.bf16.mxu0 %v1366
        %2215 = vmatpush1.bf16.msra.mxu0 %v1365
        %2216 = vmatprep.subr.bf16.mxu0 %v1370
        %2217 = vmatpush1.bf16.msra.mxu0 %v1369
        %2218 = vmatprep.subr.bf16.mxu0 %v1374
        %2219 = vmatpush1.bf16.msra.mxu0 %v1373
        %2220 = vmatprep.subr.bf16.mxu0 %v1378
        %2221 = vmatpush1.bf16.msra.mxu0 %v1377
        %2222 = vmatprep.subr.bf16.mxu0 %v1382
        %2223 = vmatpush1.bf16.msra.mxu0 %v1381
        %2224 = vmatprep.subr.bf16.mxu0 %v1386
        %2225 = vmatpush1.bf16.msra.mxu0 %v1385
        %2226 = vmatprep.subr.bf16.mxu0 %v1390
        %2227 = vmatpush1.bf16.msra.mxu0 %v1389
        %2228 = vmatprep.mubr.bf16.mxu0 %v466
        %2229 = vmatmul.mubr.bf16.gmra.mrb[0].mxu0 %v465
        %v2230 = vpop.f32.mrb[0].mxu0
        %v2231 = vadd.f32 %v730, %v2230
        %v2232 = vpop.f32.mrb[0].mxu0
        %v2233 = vadd.f32 %v734, %v2232
        %v2234 = vpop.f32.mrb[0].mxu0
        %v2235 = vadd.f32 %v730, %v2234
        %v2236 = vpop.f32.mrb[0].mxu0
        %v2237 = vadd.f32 %v734, %v2236
        %2238 = vmatprep.mubr.bf16.mxu0 %v473
        %2239 = vmatmul.mubr.bf16.gmra.mrb[0].mxu0 %v472
        %v2240 = vpop.f32.mrb[0].mxu0
        %v2241 = vadd.f32 %v730, %v2240
        %v2242 = vpop.f32.mrb[0].mxu0
        %v2243 = vadd.f32 %v734, %v2242
        %v2244 = vpop.f32.mrb[0].mxu0
        %v2245 = vadd.f32 %v730, %v2244
        %v2246 = vpop.f32.mrb[0].mxu0
        %v2247 = vadd.f32 %v734, %v2246
        %2248 = vmatprep.mubr.bf16.mxu0 %v480
        %2249 = vmatmul.mubr.bf16.gmra.mrb[0].mxu0 %v479
        %v2250 = vpop.f32.mrb[0].mxu0
        %v2251 = vadd.f32 %v730, %v2250
        %v2252 = vpop.f32.mrb[0].mxu0
        %v2253 = vadd.f32 %v734, %v2252
        %v2254 = vpop.f32.mrb[0].mxu0
        %v2255 = vadd.f32 %v730, %v2254
        %v2256 = vpop.f32.mrb[0].mxu0
        %v2257 = vadd.f32 %v734, %v2256
        %2258 = vmatprep.mubr.bf16.mxu0 %v487
        %2259 = vmatmul.mubr.bf16.gmra.mrb[0].mxu0 %v486
        %v2260 = vpop.f32.mrb[0].mxu0
        %v2261 = vadd.f32 %v730, %v2260
        %v2262 = vpop.f32.mrb[0].mxu0
        %v2263 = vadd.f32 %v734, %v2262
        %v2264 = vpop.f32.mrb[0].mxu0
        %v2265 = vadd.f32 %v730, %v2264
        %v2266 = vpop.f32.mrb[0].mxu0
        %v2267 = vadd.f32 %v734, %v2266
        %2268 = vmatprep.mubr.bf16.mxu0 %v494
        %2269 = vmatmul.mubr.bf16.gmra.mrb[0].mxu0 %v493
        %v2270 = vpop.f32.mrb[0].mxu0
        %v2271 = vadd.f32 %v730, %v2270
        %v2272 = vpop.f32.mrb[0].mxu0
        %v2273 = vadd.f32 %v734, %v2272
        %v2274 = vpop.f32.mrb[0].mxu0
        %v2275 = vadd.f32 %v730, %v2274
        %v2276 = vpop.f32.mrb[0].mxu0
        %v2277 = vadd.f32 %v734, %v2276
        %2278 = vmatprep.mubr.bf16.mxu0 %v501
        %2279 = vmatmul.mubr.bf16.gmra.mrb[0].mxu0 %v500
        %v2280 = vpop.f32.mrb[0].mxu0
        %v2281 = vadd.f32 %v730, %v2280
        %v2282 = vpop.f32.mrb[0].mxu0
        %v2283 = vadd.f32 %v734, %v2282
        %v2284 = vpop.f32.mrb[0].mxu0
        %v2285 = vadd.f32 %v730, %v2284
        %v2286 = vpop.f32.mrb[0].mxu0
        %v2287 = vadd.f32 %v734, %v2286
        %2288 = vmatprep.mubr.bf16.mxu0 %v508
        %2289 = vmatmul.mubr.bf16.gmra.mrb[0].mxu0 %v507
        %v2290 = vpop.f32.mrb[0].mxu0
        %v2291 = vadd.f32 %v730, %v2290
        %v2292 = vpop.f32.mrb[0].mxu0
        %v2293 = vadd.f32 %v734, %v2292
        %v2294 = vpop.f32.mrb[0].mxu0
        %v2295 = vadd.f32 %v730, %v2294
        %v2296 = vpop.f32.mrb[0].mxu0
        %v2297 = vadd.f32 %v734, %v2296
        %2298 = vmatprep.mubr.bf16.mxu0 %v515
        %2299 = vmatmul.mubr.bf16.gmra.mrb[0].mxu0 %v514
        %v2300 = vpop.f32.mrb[0].mxu0
        %v2301 = vadd.f32 %v730, %v2300
        %v2302 = vpop.f32.mrb[0].mxu0
        %v2303 = vadd.f32 %v734, %v2302
        %v2304 = vpop.f32.mrb[0].mxu0
        %v2305 = vadd.f32 %v730, %v2304
        %v2306 = vpop.f32.mrb[0].mxu0
        %v2307 = vadd.f32 %v734, %v2306
        %2308 = vdwg.mxu0
        %2309 = vmatprep.subr.bf16.mxu0 %v1394
        %2310 = vmatpush1.bf16.msra.mxu0 %v1393
        %2311 = vmatprep.subr.bf16.mxu0 %v1398
        %2312 = vmatpush1.bf16.msra.mxu0 %v1397
        %2313 = vmatprep.subr.bf16.mxu0 %v1402
        %2314 = vmatpush1.bf16.msra.mxu0 %v1401
        %2315 = vmatprep.subr.bf16.mxu0 %v1406
        %2316 = vmatpush1.bf16.msra.mxu0 %v1405
        %2317 = vmatprep.subr.bf16.mxu0 %v1410
        %2318 = vmatpush1.bf16.msra.mxu0 %v1409
        %2319 = vmatprep.subr.bf16.mxu0 %v1414
        %2320 = vmatpush1.bf16.msra.mxu0 %v1413
        %2321 = vmatprep.subr.bf16.mxu0 %v1418
        %2322 = vmatpush1.bf16.msra.mxu0 %v1417
        %2323 = vmatprep.subr.bf16.mxu0 %v1422
        %2324 = vmatpush1.bf16.msra.mxu0 %v1421
        %2325 = vmatprep.subr.bf16.mxu0 %v1426
        %2326 = vmatpush1.bf16.msra.mxu0 %v1425
        %2327 = vmatprep.subr.bf16.mxu0 %v1430
        %2328 = vmatpush1.bf16.msra.mxu0 %v1429
        %2329 = vmatprep.subr.bf16.mxu0 %v1434
        %2330 = vmatpush1.bf16.msra.mxu0 %v1433
        %2331 = vmatprep.subr.bf16.mxu0 %v1438
        %2332 = vmatpush1.bf16.msra.mxu0 %v1437
        %2333 = vmatprep.subr.bf16.mxu0 %v1442
        %2334 = vmatpush1.bf16.msra.mxu0 %v1441
        %2335 = vmatprep.subr.bf16.mxu0 %v1446
        %2336 = vmatpush1.bf16.msra.mxu0 %v1445
        %2337 = vmatprep.subr.bf16.mxu0 %v1450
        %2338 = vmatpush1.bf16.msra.mxu0 %v1449
        %2339 = vmatprep.subr.bf16.mxu0 %v1454
        %2340 = vmatpush1.bf16.msra.mxu0 %v1453
        %2341 = vmatprep.mubr.bf16.mxu0 %v468
        %2342 = vmatmul.mubr.bf16.gmra.mrb[0].mxu0 %v467
        %v2343 = vpop.f32.mrb[0].mxu0
        %v2344 = vadd.f32 %v2231, %v2343
        %v2345 = vpop.f32.mrb[0].mxu0
        %v2346 = vadd.f32 %v2233, %v2345
        %v2347 = vpop.f32.mrb[0].mxu0
        %v2348 = vadd.f32 %v2235, %v2347
        %v2349 = vpop.f32.mrb[0].mxu0
        %v2350 = vadd.f32 %v2237, %v2349
        %2351 = vmatprep.mubr.bf16.mxu0 %v475
        %2352 = vmatmul.mubr.bf16.gmra.mrb[0].mxu0 %v474
        %v2353 = vpop.f32.mrb[0].mxu0
        %v2354 = vadd.f32 %v2241, %v2353
        %v2355 = vpop.f32.mrb[0].mxu0
        %v2356 = vadd.f32 %v2243, %v2355
        %v2357 = vpop.f32.mrb[0].mxu0
        %v2358 = vadd.f32 %v2245, %v2357
        %v2359 = vpop.f32.mrb[0].mxu0
        %v2360 = vadd.f32 %v2247, %v2359
        %2361 = vmatprep.mubr.bf16.mxu0 %v482
        %2362 = vmatmul.mubr.bf16.gmra.mrb[0].mxu0 %v481
        %v2363 = vpop.f32.mrb[0].mxu0
        %v2364 = vadd.f32 %v2251, %v2363
        %v2365 = vpop.f32.mrb[0].mxu0
        %v2366 = vadd.f32 %v2253, %v2365
        %v2367 = vpop.f32.mrb[0].mxu0
        %v2368 = vadd.f32 %v2255, %v2367
        %v2369 = vpop.f32.mrb[0].mxu0
        %v2370 = vadd.f32 %v2257, %v2369
        %2371 = vmatprep.mubr.bf16.mxu0 %v489
        %2372 = vmatmul.mubr.bf16.gmra.mrb[0].mxu0 %v488
        %v2373 = vpop.f32.mrb[0].mxu0
        %v2374 = vadd.f32 %v2261, %v2373
        %v2375 = vpop.f32.mrb[0].mxu0
        %v2376 = vadd.f32 %v2263, %v2375
        %v2377 = vpop.f32.mrb[0].mxu0
        %v2378 = vadd.f32 %v2265, %v2377
        %v2379 = vpop.f32.mrb[0].mxu0
        %v2380 = vadd.f32 %v2267, %v2379
        %2381 = vmatprep.mubr.bf16.mxu0 %v496
        %2382 = vmatmul.mubr.bf16.gmra.mrb[0].mxu0 %v495
        %v2383 = vpop.f32.mrb[0].mxu0
        %v2384 = vadd.f32 %v2271, %v2383
        %v2385 = vpop.f32.mrb[0].mxu0
        %v2386 = vadd.f32 %v2273, %v2385
        %v2387 = vpop.f32.mrb[0].mxu0
        %v2388 = vadd.f32 %v2275, %v2387
        %v2389 = vpop.f32.mrb[0].mxu0
        %v2390 = vadd.f32 %v2277, %v2389
        %2391 = vmatprep.mubr.bf16.mxu0 %v503
        %2392 = vmatmul.mubr.bf16.gmra.mrb[0].mxu0 %v502
        %v2393 = vpop.f32.mrb[0].mxu0
        %v2394 = vadd.f32 %v2281, %v2393
        %v2395 = vpop.f32.mrb[0].mxu0
        %v2396 = vadd.f32 %v2283, %v2395
        %v2397 = vpop.f32.mrb[0].mxu0
        %v2398 = vadd.f32 %v2285, %v2397
        %v2399 = vpop.f32.mrb[0].mxu0
        %v2400 = vadd.f32 %v2287, %v2399
        %2401 = vmatprep.mubr.bf16.mxu0 %v510
        %2402 = vmatmul.mubr.bf16.gmra.mrb[0].mxu0 %v509
        %v2403 = vpop.f32.mrb[0].mxu0
        %v2404 = vadd.f32 %v2291, %v2403
        %v2405 = vpop.f32.mrb[0].mxu0
        %v2406 = vadd.f32 %v2293, %v2405
        %v2407 = vpop.f32.mrb[0].mxu0
        %v2408 = vadd.f32 %v2295, %v2407
        %v2409 = vpop.f32.mrb[0].mxu0
        %v2410 = vadd.f32 %v2297, %v2409
        %2411 = vmatprep.mubr.bf16.mxu0 %v517
        %2412 = vmatmul.mubr.bf16.gmra.mrb[0].mxu0 %v516
        %v2413 = vpop.f32.mrb[0].mxu0
        %v2414 = vadd.f32 %v2301, %v2413
        %v2415 = vpop.f32.mrb[0].mxu0
        %v2416 = vadd.f32 %v2303, %v2415
        %v2417 = vpop.f32.mrb[0].mxu0
        %v2418 = vadd.f32 %v2305, %v2417
        %v2419 = vpop.f32.mrb[0].mxu0
        %v2420 = vadd.f32 %v2307, %v2419
        %2421 = vdwg.mxu0
        %2422 = vmatprep.subr.bf16.mxu0 %v1458
        %2423 = vmatpush1.bf16.msra.mxu0 %v1457
        %2424 = vmatprep.subr.bf16.mxu0 %v1462
        %2425 = vmatpush1.bf16.msra.mxu0 %v1461
        %2426 = vmatprep.subr.bf16.mxu0 %v1466
        %2427 = vmatpush1.bf16.msra.mxu0 %v1465
        %2428 = vmatprep.subr.bf16.mxu0 %v1470
        %2429 = vmatpush1.bf16.msra.mxu0 %v1469
        %2430 = vmatprep.subr.bf16.mxu0 %v1474
        %2431 = vmatpush1.bf16.msra.mxu0 %v1473
        %2432 = vmatprep.subr.bf16.mxu0 %v1478
        %2433 = vmatpush1.bf16.msra.mxu0 %v1477
        %2434 = vmatprep.subr.bf16.mxu0 %v1482
        %2435 = vmatpush1.bf16.msra.mxu0 %v1481
        %2436 = vmatprep.subr.bf16.mxu0 %v1486
        %2437 = vmatpush1.bf16.msra.mxu0 %v1485
        %2438 = vmatprep.subr.bf16.mxu0 %v1490
        %2439 = vmatpush1.bf16.msra.mxu0 %v1489
        %2440 = vmatprep.subr.bf16.mxu0 %v1494
        %2441 = vmatpush1.bf16.msra.mxu0 %v1493
        %2442 = vmatprep.subr.bf16.mxu0 %v1498
        %2443 = vmatpush1.bf16.msra.mxu0 %v1497
        %2444 = vmatprep.subr.bf16.mxu0 %v1502
        %2445 = vmatpush1.bf16.msra.mxu0 %v1501
        %2446 = vmatprep.subr.bf16.mxu0 %v1506
        %2447 = vmatpush1.bf16.msra.mxu0 %v1505
        %2448 = vmatprep.subr.bf16.mxu0 %v1510
        %2449 = vmatpush1.bf16.msra.mxu0 %v1509
        %2450 = vmatprep.subr.bf16.mxu0 %v1514
        %2451 = vmatpush1.bf16.msra.mxu0 %v1513
        %2452 = vmatprep.subr.bf16.mxu0 %v1518
        %2453 = vmatpush1.bf16.msra.mxu0 %v1517
        %2454 = vmatprep.mubr.bf16.mxu0 %v470
        %2455 = vmatmul.mubr.bf16.gmra.mrb[0].mxu0 %v469
        %v2456 = vpop.f32.mrb[0].mxu0
        %v2457 = vadd.f32 %v2344, %v2456
        %v2458 = vpop.f32.mrb[0].mxu0
        %v2459 = vadd.f32 %v2346, %v2458
        %v2460 = vpop.f32.mrb[0].mxu0
        %v2461 = vadd.f32 %v2348, %v2460
        %v2462 = vpop.f32.mrb[0].mxu0
        %v2463 = vadd.f32 %v2350, %v2462
        %2464 = vmatprep.mubr.bf16.mxu0 %v477
        %2465 = vmatmul.mubr.bf16.gmra.mrb[0].mxu0 %v476
        %v2466 = vpop.f32.mrb[0].mxu0
        %v2467 = vadd.f32 %v2354, %v2466
        %v2468 = vpop.f32.mrb[0].mxu0
        %v2469 = vadd.f32 %v2356, %v2468
        %v2470 = vpop.f32.mrb[0].mxu0
        %v2471 = vadd.f32 %v2358, %v2470
        %v2472 = vpop.f32.mrb[0].mxu0
        %v2473 = vadd.f32 %v2360, %v2472
        %2474 = vmatprep.mubr.bf16.mxu0 %v484
        %2475 = vmatmul.mubr.bf16.gmra.mrb[0].mxu0 %v483
        %v2476 = vpop.f32.mrb[0].mxu0
        %v2477 = vadd.f32 %v2364, %v2476
        %v2478 = vpop.f32.mrb[0].mxu0
        %v2479 = vadd.f32 %v2366, %v2478
        %v2480 = vpop.f32.mrb[0].mxu0
        %v2481 = vadd.f32 %v2368, %v2480
        %v2482 = vpop.f32.mrb[0].mxu0
        %v2483 = vadd.f32 %v2370, %v2482
        %2484 = vmatprep.mubr.bf16.mxu0 %v491
        %2485 = vmatmul.mubr.bf16.gmra.mrb[0].mxu0 %v490
        %v2486 = vpop.f32.mrb[0].mxu0
        %v2487 = vadd.f32 %v2374, %v2486
        %v2488 = vpop.f32.mrb[0].mxu0
        %v2489 = vadd.f32 %v2376, %v2488
        %v2490 = vpop.f32.mrb[0].mxu0
        %v2491 = vadd.f32 %v2378, %v2490
        %v2492 = vpop.f32.mrb[0].mxu0
        %v2493 = vadd.f32 %v2380, %v2492
        %2494 = vmatprep.mubr.bf16.mxu0 %v498
        %2495 = vmatmul.mubr.bf16.gmra.mrb[0].mxu0 %v497
        %v2496 = vpop.f32.mrb[0].mxu0
        %v2497 = vadd.f32 %v2384, %v2496
        %v2498 = vpop.f32.mrb[0].mxu0
        %v2499 = vadd.f32 %v2386, %v2498
        %v2500 = vpop.f32.mrb[0].mxu0
        %v2501 = vadd.f32 %v2388, %v2500
        %v2502 = vpop.f32.mrb[0].mxu0
        %v2503 = vadd.f32 %v2390, %v2502
        %2504 = vmatprep.mubr.bf16.mxu0 %v505
        %2505 = vmatmul.mubr.bf16.gmra.mrb[0].mxu0 %v504
        %v2506 = vpop.f32.mrb[0].mxu0
        %v2507 = vadd.f32 %v2394, %v2506
        %v2508 = vpop.f32.mrb[0].mxu0
        %v2509 = vadd.f32 %v2396, %v2508
        %v2510 = vpop.f32.mrb[0].mxu0
        %v2511 = vadd.f32 %v2398, %v2510
        %v2512 = vpop.f32.mrb[0].mxu0
        %v2513 = vadd.f32 %v2400, %v2512
        %2514 = vmatprep.mubr.bf16.mxu0 %v512
        %2515 = vmatmul.mubr.bf16.gmra.mrb[0].mxu0 %v511
        %v2516 = vpop.f32.mrb[0].mxu0
        %v2517 = vadd.f32 %v2404, %v2516
        %v2518 = vpop.f32.mrb[0].mxu0
        %v2519 = vadd.f32 %v2406, %v2518
        %v2520 = vpop.f32.mrb[0].mxu0
        %v2521 = vadd.f32 %v2408, %v2520
        %v2522 = vpop.f32.mrb[0].mxu0
        %v2523 = vadd.f32 %v2410, %v2522
        %2524 = vmatprep.mubr.bf16.mxu0 %v519
        %2525 = vmatmul.mubr.bf16.gmra.mrb[0].mxu0 %v518
        %v2526 = vpop.f32.mrb[0].mxu0
        %v2527 = vadd.f32 %v2414, %v2526
        %v2528 = vpop.f32.mrb[0].mxu0
        %v2529 = vadd.f32 %v2416, %v2528
        %v2530 = vpop.f32.mrb[0].mxu0
        %v2531 = vadd.f32 %v2418, %v2530
        %v2532 = vpop.f32.mrb[0].mxu0
        %v2533 = vadd.f32 %v2420, %v2532
        %2534 = vdwg.mxu0
        %2535 = vmatprep.subr.bf16.mxu0 %v1522
        %2536 = vmatpush1.bf16.msra.mxu0 %v1521
        %2537 = vmatprep.subr.bf16.mxu0 0
        %2538 = vmatpush1.bf16.msra.mxu0 0
        %2539 = vmatprep.subr.bf16.mxu0 0
        %2540 = vmatpush1.bf16.msra.mxu0 0
        %2541 = vmatprep.subr.bf16.mxu0 0
        %2542 = vmatpush1.bf16.msra.mxu0 0
        %2543 = vmatprep.subr.bf16.mxu0 0
        %2544 = vmatpush1.bf16.msra.mxu0 0
        %2545 = vmatprep.subr.bf16.mxu0 0
        %2546 = vmatpush1.bf16.msra.mxu0 0
        %2547 = vmatprep.subr.bf16.mxu0 0
        %2548 = vmatpush1.bf16.msra.mxu0 0
        %2549 = vmatprep.subr.bf16.mxu0 0
        %2550 = vmatpush1.bf16.msra.mxu0 0
        %2551 = vmatprep.subr.bf16.mxu0 0
        %2552 = vmatpush1.bf16.msra.mxu0 0
        %2553 = vmatprep.subr.bf16.mxu0 0
        %2554 = vmatpush1.bf16.msra.mxu0 0
        %2555 = vmatprep.subr.bf16.mxu0 0
        %2556 = vmatpush1.bf16.msra.mxu0 0
        %2557 = vmatprep.subr.bf16.mxu0 0
        %2558 = vmatpush1.bf16.msra.mxu0 0
        %2559 = vmatprep.subr.bf16.mxu0 0
        %2560 = vmatpush1.bf16.msra.mxu0 0
        %2561 = vmatprep.subr.bf16.mxu0 0
        %2562 = vmatpush1.bf16.msra.mxu0 0
        %2563 = vmatprep.subr.bf16.mxu0 0
        %2564 = vmatpush1.bf16.msra.mxu0 0
        %2565 = vmatprep.subr.bf16.mxu0 0
        %2566 = vmatpush1.bf16.msra.mxu0 0
        %2567 = vmatprep.mubr.bf16.mxu0 0
        %2568 = vmatmul.mubr.bf16.gmra.mrb[0].mxu0 %v1721
        %v2569 = vpop.f32.mrb[0].mxu0
        %v2570 = vadd.f32 %v2457, %v2569
        %v2571 = vpop.f32.mrb[0].mxu0
        %v2572 = vadd.f32 %v2459, %v2571
        %v2573 = vpop.f32.mrb[0].mxu0
        %v2574 = vadd.f32 %v2461, %v2573
        %v2575 = vpop.f32.mrb[0].mxu0
        %v2576 = vadd.f32 %v2463, %v2575
        %2577 = vmatprep.mubr.bf16.mxu0 0
        %2578 = vmatmul.mubr.bf16.gmra.mrb[0].mxu0 %v1724
        %v2579 = vpop.f32.mrb[0].mxu0
        %v2580 = vadd.f32 %v2467, %v2579
        %v2581 = vpop.f32.mrb[0].mxu0
        %v2582 = vadd.f32 %v2469, %v2581
        %v2583 = vpop.f32.mrb[0].mxu0
        %v2584 = vadd.f32 %v2471, %v2583
        %v2585 = vpop.f32.mrb[0].mxu0
        %v2586 = vadd.f32 %v2473, %v2585
        %2587 = vmatprep.mubr.bf16.mxu0 0
        %2588 = vmatmul.mubr.bf16.gmra.mrb[0].mxu0 %v1727
        %v2589 = vpop.f32.mrb[0].mxu0
        %v2590 = vadd.f32 %v2477, %v2589
        %v2591 = vpop.f32.mrb[0].mxu0
        %v2592 = vadd.f32 %v2479, %v2591
        %v2593 = vpop.f32.mrb[0].mxu0
        %v2594 = vadd.f32 %v2481, %v2593
        %v2595 = vpop.f32.mrb[0].mxu0
        %v2596 = vadd.f32 %v2483, %v2595
        %2597 = vmatprep.mubr.bf16.mxu0 0
        %2598 = vmatmul.mubr.bf16.gmra.mrb[0].mxu0 %v1730
        %v2599 = vpop.f32.mrb[0].mxu0
        %v2600 = vadd.f32 %v2487, %v2599
        %v2601 = vpop.f32.mrb[0].mxu0
        %v2602 = vadd.f32 %v2489, %v2601
        %v2603 = vpop.f32.mrb[0].mxu0
        %v2604 = vadd.f32 %v2491, %v2603
        %v2605 = vpop.f32.mrb[0].mxu0
        %v2606 = vadd.f32 %v2493, %v2605
        %2607 = vmatprep.mubr.bf16.mxu0 0
        %2608 = vmatmul.mubr.bf16.gmra.mrb[0].mxu0 %v1733
        %v2609 = vpop.f32.mrb[0].mxu0
        %v2610 = vadd.f32 %v2497, %v2609
        %v2611 = vpop.f32.mrb[0].mxu0
        %v2612 = vadd.f32 %v2499, %v2611
        %v2613 = vpop.f32.mrb[0].mxu0
        %v2614 = vadd.f32 %v2501, %v2613
        %v2615 = vpop.f32.mrb[0].mxu0
        %v2616 = vadd.f32 %v2503, %v2615
        %2617 = vmatprep.mubr.bf16.mxu0 0
        %2618 = vmatmul.mubr.bf16.gmra.mrb[0].mxu0 %v1736
        %v2619 = vpop.f32.mrb[0].mxu0
        %v2620 = vadd.f32 %v2507, %v2619
        %v2621 = vpop.f32.mrb[0].mxu0
        %v2622 = vadd.f32 %v2509, %v2621
        %v2623 = vpop.f32.mrb[0].mxu0
        %v2624 = vadd.f32 %v2511, %v2623
        %v2625 = vpop.f32.mrb[0].mxu0
        %v2626 = vadd.f32 %v2513, %v2625
        %2627 = vmatprep.mubr.bf16.mxu0 0
        %2628 = vmatmul.mubr.bf16.gmra.mrb[0].mxu0 %v1739
        %v2629 = vpop.f32.mrb[0].mxu0
        %v2630 = vadd.f32 %v2517, %v2629
        %v2631 = vpop.f32.mrb[0].mxu0
        %v2632 = vadd.f32 %v2519, %v2631
        %v2633 = vpop.f32.mrb[0].mxu0
        %v2634 = vadd.f32 %v2521, %v2633
        %v2635 = vpop.f32.mrb[0].mxu0
        %v2636 = vadd.f32 %v2523, %v2635
        %2637 = vmatprep.mubr.bf16.mxu0 0
        %2638 = vmatmul.mubr.bf16.gmra.mrb[0].mxu0 %v1742
        %v2639 = vpop.f32.mrb[0].mxu0
        %v2640 = vadd.f32 %v2527, %v2639
        %v2641 = vpop.f32.mrb[0].mxu0
        %v2642 = vadd.f32 %v2529, %v2641
        %v2643 = vpop.f32.mrb[0].mxu0
        %v2644 = vadd.f32 %v2531, %v2643
        %v2645 = vpop.f32.mrb[0].mxu0
        %v2646 = vadd.f32 %v2533, %v2645
        %2647 = vdwg.mxu0
        %v2648 = vmax.f32 %v2118, 0.0
        %v2649 = vmax.f32 %v2120, 0.0
        %v2650 = vmax.f32 %v2570, 0.0
        %v2651 = vmax.f32 %v2572, 0.0
        %v2652 = vmax.f32 %v2122, 0.0
        %v2653 = vmax.f32 %v2124, 0.0
        %v2654 = vmax.f32 %v2574, 0.0
        %v2655 = vmax.f32 %v2576, 0.0
        %v2656 = vmax.f32 %v2128, 0.0
        %v2657 = vmax.f32 %v2130, 0.0
        %v2658 = vmax.f32 %v2580, 0.0
        %v2659 = vmax.f32 %v2582, 0.0
        %v2660 = vmax.f32 %v2132, 0.0
        %v2661 = vmax.f32 %v2134, 0.0
        %v2662 = vmax.f32 %v2584, 0.0
        %v2663 = vmax.f32 %v2586, 0.0
        %v2664 = vmax.f32 %v2138, 0.0
        %v2665 = vmax.f32 %v2140, 0.0
        %v2666 = vmax.f32 %v2590, 0.0
        %v2667 = vmax.f32 %v2592, 0.0
        %v2668 = vmax.f32 %v2142, 0.0
        %v2669 = vmax.f32 %v2144, 0.0
        %v2670 = vmax.f32 %v2594, 0.0
        %v2671 = vmax.f32 %v2596, 0.0
        %v2672 = vmax.f32 %v2148, 0.0
        %v2673 = vmax.f32 %v2150, 0.0
        %v2674 = vmax.f32 %v2600, 0.0
        %v2675 = vmax.f32 %v2602, 0.0
        %v2676 = vmax.f32 %v2152, 0.0
        %v2677 = vmax.f32 %v2154, 0.0
        %v2678 = vmax.f32 %v2604, 0.0
        %v2679 = vmax.f32 %v2606, 0.0
        %v2680 = vmax.f32 %v2158, 0.0
        %v2681 = vmax.f32 %v2160, 0.0
        %v2682 = vmax.f32 %v2610, 0.0
        %v2683 = vmax.f32 %v2612, 0.0
        %v2684 = vmax.f32 %v2162, 0.0
        %v2685 = vmax.f32 %v2164, 0.0
        %v2686 = vmax.f32 %v2614, 0.0
        %v2687 = vmax.f32 %v2616, 0.0
        %v2688 = vmax.f32 %v2168, 0.0
        %v2689 = vmax.f32 %v2170, 0.0
        %v2690 = vmax.f32 %v2620, 0.0
        %v2691 = vmax.f32 %v2622, 0.0
        %v2692 = vmax.f32 %v2172, 0.0
        %v2693 = vmax.f32 %v2174, 0.0
        %v2694 = vmax.f32 %v2624, 0.0
        %v2695 = vmax.f32 %v2626, 0.0
        %v2696 = vmax.f32 %v2178, 0.0
        %v2697 = vmax.f32 %v2180, 0.0
        %v2698 = vmax.f32 %v2630, 0.0
        %v2699 = vmax.f32 %v2632, 0.0
        %v2700 = vmax.f32 %v2182, 0.0
        %v2701 = vmax.f32 %v2184, 0.0
        %v2702 = vmax.f32 %v2634, 0.0
        %v2703 = vmax.f32 %v2636, 0.0
        %v2704 = vmax.f32 %v2188, 0.0
        %v2705 = vmax.f32 %v2190, 0.0
        %v2706 = vmax.f32 %v2640, 0.0
        %v2707 = vmax.f32 %v2642, 0.0
        %v2708 = vmax.f32 %v2192, 0.0
        %v2709 = vmax.f32 %v2194, 0.0
        %v2710 = vmax.f32 %v2644, 0.0
        %v2711 = vmax.f32 %v2646, 0.0
        %v2712 = vpack.c.bf16 %v2652, %v2648
        %v2713 = vpack.c.bf16 %v2653, %v2649
        %v2714 = vpack.c.bf16 %v2654, %v2650
        %v2715 = vpack.c.bf16 %v2655, %v2651
        %v2716 = vpack.c.bf16 %v2660, %v2656
        %v2717 = vpack.c.bf16 %v2661, %v2657
        %v2718 = vpack.c.bf16 %v2662, %v2658
        %v2719 = vpack.c.bf16 %v2663, %v2659
        %v2720 = vpack.c.bf16 %v2668, %v2664
        %v2721 = vpack.c.bf16 %v2669, %v2665
        %v2722 = vpack.c.bf16 %v2670, %v2666
        %v2723 = vpack.c.bf16 %v2671, %v2667
        %v2724 = vpack.c.bf16 %v2676, %v2672
        %v2725 = vpack.c.bf16 %v2677, %v2673
        %v2726 = vpack.c.bf16 %v2678, %v2674
        %v2727 = vpack.c.bf16 %v2679, %v2675
        %v2728 = vpack.c.bf16 %v2684, %v2680
        %v2729 = vpack.c.bf16 %v2685, %v2681
        %v2730 = vpack.c.bf16 %v2686, %v2682
        %v2731 = vpack.c.bf16 %v2687, %v2683
        %v2732 = vpack.c.bf16 %v2692, %v2688
        %v2733 = vpack.c.bf16 %v2693, %v2689
        %v2734 = vpack.c.bf16 %v2694, %v2690
        %v2735 = vpack.c.bf16 %v2695, %v2691
        %v2736 = vpack.c.bf16 %v2700, %v2696
        %v2737 = vpack.c.bf16 %v2701, %v2697
        %v2738 = vpack.c.bf16 %v2702, %v2698
        %v2739 = vpack.c.bf16 %v2703, %v2699
        %v2740 = vpack.c.bf16 %v2708, %v2704
        %v2741 = vpack.c.bf16 %v2709, %v2705
        %v2742 = vpack.c.bf16 %v2710, %v2706
        %v2743 = vpack.c.bf16 %v2711, %v2707
        %v2744 = vld [vmem:[%s3] sm:$0xff]
        %v2745 = vld [vmem:[%s3 + $0x8] sm:$0xff]
        %v2746 = vld [vmem:[%s3 + $0x10] sm:$0xff]
        %v2747 = vld [vmem:[%s3 + $0x18] sm:$0xff]
        %v2748 = vld [vmem:[%s3 + $0x20] sm:$0xff]
        %v2749 = vld [vmem:[%s3 + $0x28] sm:$0xff]
        %v2750 = vld [vmem:[%s3 + $0x30] sm:$0xff]
        %v2751 = vld [vmem:[%s3 + $0x38] sm:$0xff]
        %v2752 = vld [vmem:[%s3 + $0x40] sm:$0xff]
        %v2753 = vld [vmem:[%s3 + $0x48] sm:$0xff]
        %v2754 = vld [vmem:[%s3 + $0x50] sm:$0xff]
        %v2755 = vld [vmem:[%s3 + $0x58] sm:$0xff]
        %v2756 = vld [vmem:[%s3 + $0x60] sm:$0xff]
        %v2757 = vld [vmem:[%s3 + $0x68] sm:$0xff]
        %v2758 = vld [vmem:[%s3 + $0x70] sm:$0xff]
        %v2759 = vld [vmem:[%s3 + $0x78] sm:$0xff]
        %v2760 = vld [vmem:[%s3 + $0x80] sm:$0xff]
        %v2761 = vld [vmem:[%s3 + $0x88] sm:$0xff]
        %v2762 = vld [vmem:[%s3 + $0x90] sm:$0xff]
        %v2763 = vld [vmem:[%s3 + $0x98] sm:$0xff]
        %v2764 = vld [vmem:[%s3 + $0xa0] sm:$0xff]
        %v2765 = vld [vmem:[%s3 + $0xa8] sm:$0xff]
        %v2766 = vld [vmem:[%s3 + $0xb0] sm:$0xff]
        %v2767 = vld [vmem:[%s3 + $0xb8] sm:$0xff]
        %v2768 = vld [vmem:[%s3 + $0xc0] sm:$0xff]
        %v2769 = vld [vmem:[%s3 + $0xc8] sm:$0xff]
        %v2770 = vld [vmem:[%s3 + $0xd0] sm:$0xff]
        %v2771 = vld [vmem:[%s3 + $0xd8] sm:$0xff]
        %v2772 = vld [vmem:[%s3 + $0xe0] sm:$0xff]
        %v2773 = vld [vmem:[%s3 + $0xe8] sm:$0xff]
        %v2774 = vld [vmem:[%s3 + $0xf0] sm:$0xff]
        %v2775 = vld [vmem:[%s3 + $0xf8] sm:$0xff]
        %v2776 = vld [vmem:[%s3 + $0x100] sm:$0xff]
        %v2777 = vld [vmem:[%s3 + $0x108] sm:$0xff]
        %v2778 = vld [vmem:[%s3 + $0x110] sm:$0xff]
        %v2779 = vld [vmem:[%s3 + $0x118] sm:$0xff]
        %v2780 = vld [vmem:[%s3 + $0x120] sm:$0xff]
        %v2781 = vld [vmem:[%s3 + $0x128] sm:$0xff]
        %v2782 = vld [vmem:[%s3 + $0x130] sm:$0xff]
        %v2783 = vld [vmem:[%s3 + $0x138] sm:$0xff]
        %v2784 = vld [vmem:[%s3 + $0x140] sm:$0xff]
        %v2785 = vld [vmem:[%s3 + $0x148] sm:$0xff]
        %v2786 = vld [vmem:[%s3 + $0x150] sm:$0xff]
        %v2787 = vld [vmem:[%s3 + $0x158] sm:$0xff]
        %v2788 = vld [vmem:[%s3 + $0x160] sm:$0xff]
        %v2789 = vld [vmem:[%s3 + $0x168] sm:$0xff]
        %v2790 = vld [vmem:[%s3 + $0x170] sm:$0xff]
        %v2791 = vld [vmem:[%s3 + $0x178] sm:$0xff]
        %v2792 = vld [vmem:[%s3 + $0x180] sm:$0xff]
        %v2793 = vld [vmem:[%s3 + $0x188] sm:$0xff]
        %v2794 = vld [vmem:[%s3 + $0x190] sm:$0xff]
        %v2795 = vld [vmem:[%s3 + $0x198] sm:$0xff]
        %v2796 = vld [vmem:[%s3 + $0x1a0] sm:$0xff]
        %v2797 = vld [vmem:[%s3 + $0x1a8] sm:$0xff]
        %v2798 = vld [vmem:[%s3 + $0x1b0] sm:$0xff]
        %v2799 = vld [vmem:[%s3 + $0x1b8] sm:$0xff]
        %v2800 = vld [vmem:[%s3 + $0x1c0] sm:$0xff]
        %v2801 = vld [vmem:[%s3 + $0x1c8] sm:$0xff]
        %v2802 = vld [vmem:[%s3 + $0x1d0] sm:$0xff]
        %v2803 = vld [vmem:[%s3 + $0x1d8] sm:$0xff]
        %v2804 = vld [vmem:[%s3 + $0x1e0] sm:$0xff]
        %v2805 = vld [vmem:[%s3 + $0x1e8] sm:$0xff]
        %v2806 = vld [vmem:[%s3 + $0x1f0] sm:$0xff]
        %v2807 = vld [vmem:[%s3 + $0x1f8] sm:$0xff]
        %v2808 = vld [vmem:[%s3 + $0x200] sm:$0xff]
        %v2809 = vld [vmem:[%s3 + $0x208] sm:$0xff]
        %v2810 = vld [vmem:[%s3 + $0x210] sm:$0xff]
        %v2811 = vld [vmem:[%s3 + $0x218] sm:$0xff]
        %v2812 = vld [vmem:[%s3 + $0x220] sm:$0xff]
        %v2813 = vld [vmem:[%s3 + $0x228] sm:$0xff]
        %v2814 = vld [vmem:[%s3 + $0x230] sm:$0xff]
        %v2815 = vld [vmem:[%s3 + $0x238] sm:$0xff]
        %v2816 = vld [vmem:[%s3 + $0x240] sm:$0xff]
        %v2817 = vld [vmem:[%s3 + $0x248] sm:$0xff]
        %v2818 = vld [vmem:[%s3 + $0x250] sm:$0xff]
        %v2819 = vld [vmem:[%s3 + $0x258] sm:$0xff]
        %v2820 = vld [vmem:[%s3 + $0x260] sm:$0xff]
        %v2821 = vld [vmem:[%s3 + $0x268] sm:$0xff]
        %v2822 = vld [vmem:[%s3 + $0x270] sm:$0xff]
        %v2823 = vld [vmem:[%s3 + $0x278] sm:$0xff]
        %v2824 = vld [vmem:[%s3 + $0x280] sm:$0xff]
        %v2825 = vld [vmem:[%s3 + $0x288] sm:$0xff]
        %v2826 = vld [vmem:[%s3 + $0x290] sm:$0xff]
        %v2827 = vld [vmem:[%s3 + $0x298] sm:$0xff]
        %v2828 = vld [vmem:[%s3 + $0x2a0] sm:$0xff]
        %v2829 = vld [vmem:[%s3 + $0x2a8] sm:$0xff]
        %v2830 = vld [vmem:[%s3 + $0x2b0] sm:$0xff]
        %v2831 = vld [vmem:[%s3 + $0x2b8] sm:$0xff]
        %v2832 = vld [vmem:[%s3 + $0x2c0] sm:$0xff]
        %v2833 = vld [vmem:[%s3 + $0x2c8] sm:$0xff]
        %v2834 = vld [vmem:[%s3 + $0x2d0] sm:$0xff]
        %v2835 = vld [vmem:[%s3 + $0x2d8] sm:$0xff]
        %v2836 = vld [vmem:[%s3 + $0x2e0] sm:$0xff]
        %v2837 = vld [vmem:[%s3 + $0x2e8] sm:$0xff]
        %v2838 = vld [vmem:[%s3 + $0x2f0] sm:$0xff]
        %v2839 = vld [vmem:[%s3 + $0x2f8] sm:$0xff]
        %v2840 = vld [vmem:[%s3 + $0x300] sm:$0xff]
        %v2841 = vld [vmem:[%s3 + $0x308] sm:$0xff]
        %v2842 = vld [vmem:[%s3 + $0x310] sm:$0xff]
        %v2843 = vld [vmem:[%s3 + $0x318] sm:$0xff]
        %v2844 = vld [vmem:[%s3 + $0x320] sm:$0xff]
        %v2845 = vld [vmem:[%s3 + $0x328] sm:$0xff]
        %v2846 = vld [vmem:[%s3 + $0x330] sm:$0xff]
        %v2847 = vld [vmem:[%s3 + $0x338] sm:$0xff]
        %v2848 = vld [vmem:[%s3 + $0x340] sm:$0xff]
        %v2849 = vld [vmem:[%s3 + $0x348] sm:$0xff]
        %v2850 = vld [vmem:[%s3 + $0x350] sm:$0xff]
        %v2851 = vld [vmem:[%s3 + $0x358] sm:$0xff]
        %v2852 = vld [vmem:[%s3 + $0x360] sm:$0xff]
        %v2853 = vld [vmem:[%s3 + $0x368] sm:$0xff]
        %v2854 = vld [vmem:[%s3 + $0x370] sm:$0xff]
        %v2855 = vld [vmem:[%s3 + $0x378] sm:$0xff]
        %v2856 = vld [vmem:[%s3 + $0x380] sm:$0xff]
        %v2857 = vld [vmem:[%s3 + $0x388] sm:$0xff]
        %v2858 = vld [vmem:[%s3 + $0x390] sm:$0xff]
        %v2859 = vld [vmem:[%s3 + $0x398] sm:$0xff]
        %v2860 = vld [vmem:[%s3 + $0x3a0] sm:$0xff]
        %v2861 = vld [vmem:[%s3 + $0x3a8] sm:$0xff]
        %v2862 = vld [vmem:[%s3 + $0x3b0] sm:$0xff]
        %v2863 = vld [vmem:[%s3 + $0x3b8] sm:$0xff]
        %v2864 = vld [vmem:[%s3 + $0x3c0] sm:$0xff]
        %v2865 = vld [vmem:[%s3 + $0x3c8] sm:$0xff]
        %v2866 = vld [vmem:[%s3 + $0x3d0] sm:$0xff]
        %v2867 = vld [vmem:[%s3 + $0x3d8] sm:$0xff]
        %v2868 = vld [vmem:[%s3 + $0x3e0] sm:$0xff]
        %v2869 = vld [vmem:[%s3 + $0x3e8] sm:$0xff]
        %v2870 = vld [vmem:[%s3 + $0x3f0] sm:$0xff]
        %v2871 = vld [vmem:[%s3 + $0x3f8] sm:$0xff]
        %v2872 = vld [vmem:[%s4] sm:$0xf]
        %v2874 = vlaneseq
        %v2875 = vshrl.u32 %v2874, 7
        %v2876 = vsub.s32 0, %v2875
        %v2877 = vrot.slane %v2872, %v2876
        %v2878 = vlaneseq
        %v2879 = vshrl.u32 %v2878, 7
        %v2880 = vsub.s32 1, %v2879
        %v2881 = vrot.slane %v2872, %v2880
        %v2882 = vlaneseq
        %v2883 = vshrl.u32 %v2882, 7
        %v2884 = vsub.s32 2, %v2883
        %v2885 = vrot.slane %v2872, %v2884
        %v2886 = vlaneseq
        %v2887 = vshrl.u32 %v2886, 7
        %v2888 = vsub.s32 3, %v2887
        %v2889 = vrot.slane %v2872, %v2888
        %v3022 = vunpack.c.l.b16 %v2744
        %v3023 = vunpack.c.h.b16 %v2744
        %v3024 = vunpack.c.l.b16 %v2745
        %v3025 = vunpack.c.h.b16 %v2745
        %v3026 = vunpack.c.l.b16 %v2746
        %v3027 = vunpack.c.h.b16 %v2746
        %v3028 = vunpack.c.l.b16 %v2747
        %v3029 = vunpack.c.h.b16 %v2747
        %v3030 = vunpack.c.l.b16 %v2748
        %v3031 = vunpack.c.h.b16 %v2748
        %v3032 = vunpack.c.l.b16 %v2749
        %v3033 = vunpack.c.h.b16 %v2749
        %v3034 = vunpack.c.l.b16 %v2750
        %v3035 = vunpack.c.h.b16 %v2750
        %v3036 = vunpack.c.l.b16 %v2751
        %v3037 = vunpack.c.h.b16 %v2751
        %v3038 = vunpack.c.l.b16 %v2752
        %v3039 = vunpack.c.h.b16 %v2752
        %v3040 = vunpack.c.l.b16 %v2753
        %v3041 = vunpack.c.h.b16 %v2753
        %v3042 = vunpack.c.l.b16 %v2754
        %v3043 = vunpack.c.h.b16 %v2754
        %v3044 = vunpack.c.l.b16 %v2755
        %v3045 = vunpack.c.h.b16 %v2755
        %v3046 = vunpack.c.l.b16 %v2756
        %v3047 = vunpack.c.h.b16 %v2756
        %v3048 = vunpack.c.l.b16 %v2757
        %v3049 = vunpack.c.h.b16 %v2757
        %v3050 = vunpack.c.l.b16 %v2758
        %v3051 = vunpack.c.h.b16 %v2758
        %v3052 = vunpack.c.l.b16 %v2759
        %v3053 = vunpack.c.h.b16 %v2759
        %v3054 = vunpack.c.l.b16 %v2760
        %v3055 = vunpack.c.h.b16 %v2760
        %v3056 = vunpack.c.l.b16 %v2761
        %v3057 = vunpack.c.h.b16 %v2761
        %v3058 = vunpack.c.l.b16 %v2762
        %v3059 = vunpack.c.h.b16 %v2762
        %v3060 = vunpack.c.l.b16 %v2763
        %v3061 = vunpack.c.h.b16 %v2763
        %v3062 = vunpack.c.l.b16 %v2764
        %v3063 = vunpack.c.h.b16 %v2764
        %v3064 = vunpack.c.l.b16 %v2765
        %v3065 = vunpack.c.h.b16 %v2765
        %v3066 = vunpack.c.l.b16 %v2766
        %v3067 = vunpack.c.h.b16 %v2766
        %v3068 = vunpack.c.l.b16 %v2767
        %v3069 = vunpack.c.h.b16 %v2767
        %v3070 = vunpack.c.l.b16 %v2768
        %v3071 = vunpack.c.h.b16 %v2768
        %v3072 = vunpack.c.l.b16 %v2769
        %v3073 = vunpack.c.h.b16 %v2769
        %v3074 = vunpack.c.l.b16 %v2770
        %v3075 = vunpack.c.h.b16 %v2770
        %v3076 = vunpack.c.l.b16 %v2771
        %v3077 = vunpack.c.h.b16 %v2771
        %v3078 = vunpack.c.l.b16 %v2772
        %v3079 = vunpack.c.h.b16 %v2772
        %v3080 = vunpack.c.l.b16 %v2773
        %v3081 = vunpack.c.h.b16 %v2773
        %v3082 = vunpack.c.l.b16 %v2774
        %v3083 = vunpack.c.h.b16 %v2774
        %v3084 = vunpack.c.l.b16 %v2775
        %v3085 = vunpack.c.h.b16 %v2775
        %v3086 = vunpack.c.l.b16 %v2776
        %v3087 = vunpack.c.h.b16 %v2776
        %v3088 = vunpack.c.l.b16 %v2777
        %v3089 = vunpack.c.h.b16 %v2777
        %v3090 = vunpack.c.l.b16 %v2778
        %v3091 = vunpack.c.h.b16 %v2778
        %v3092 = vunpack.c.l.b16 %v2779
        %v3093 = vunpack.c.h.b16 %v2779
        %v3094 = vunpack.c.l.b16 %v2780
        %v3095 = vunpack.c.h.b16 %v2780
        %v3096 = vunpack.c.l.b16 %v2781
        %v3097 = vunpack.c.h.b16 %v2781
        %v3098 = vunpack.c.l.b16 %v2782
        %v3099 = vunpack.c.h.b16 %v2782
        %v3100 = vunpack.c.l.b16 %v2783
        %v3101 = vunpack.c.h.b16 %v2783
        %v3102 = vunpack.c.l.b16 %v2784
        %v3103 = vunpack.c.h.b16 %v2784
        %v3104 = vunpack.c.l.b16 %v2785
        %v3105 = vunpack.c.h.b16 %v2785
        %v3106 = vunpack.c.l.b16 %v2786
        %v3107 = vunpack.c.h.b16 %v2786
        %v3108 = vunpack.c.l.b16 %v2787
        %v3109 = vunpack.c.h.b16 %v2787
        %v3110 = vunpack.c.l.b16 %v2788
        %v3111 = vunpack.c.h.b16 %v2788
        %v3112 = vunpack.c.l.b16 %v2789
        %v3113 = vunpack.c.h.b16 %v2789
        %v3114 = vunpack.c.l.b16 %v2790
        %v3115 = vunpack.c.h.b16 %v2790
        %v3116 = vunpack.c.l.b16 %v2791
        %v3117 = vunpack.c.h.b16 %v2791
        %v3118 = vunpack.c.l.b16 %v2792
        %v3119 = vunpack.c.h.b16 %v2792
        %v3120 = vunpack.c.l.b16 %v2793
        %v3121 = vunpack.c.h.b16 %v2793
        %v3122 = vunpack.c.l.b16 %v2794
        %v3123 = vunpack.c.h.b16 %v2794
        %v3124 = vunpack.c.l.b16 %v2795
        %v3125 = vunpack.c.h.b16 %v2795
        %v3126 = vunpack.c.l.b16 %v2796
        %v3127 = vunpack.c.h.b16 %v2796
        %v3128 = vunpack.c.l.b16 %v2797
        %v3129 = vunpack.c.h.b16 %v2797
        %v3130 = vunpack.c.l.b16 %v2798
        %v3131 = vunpack.c.h.b16 %v2798
        %v3132 = vunpack.c.l.b16 %v2799
        %v3133 = vunpack.c.h.b16 %v2799
        %v3134 = vunpack.c.l.b16 %v2800
        %v3135 = vunpack.c.h.b16 %v2800
        %v3136 = vunpack.c.l.b16 %v2801
        %v3137 = vunpack.c.h.b16 %v2801
        %v3138 = vunpack.c.l.b16 %v2802
        %v3139 = vunpack.c.h.b16 %v2802
        %v3140 = vunpack.c.l.b16 %v2803
        %v3141 = vunpack.c.h.b16 %v2803
        %v3142 = vunpack.c.l.b16 %v2804
        %v3143 = vunpack.c.h.b16 %v2804
        %v3144 = vunpack.c.l.b16 %v2805
        %v3145 = vunpack.c.h.b16 %v2805
        %v3146 = vunpack.c.l.b16 %v2806
        %v3147 = vunpack.c.h.b16 %v2806
        %v3148 = vunpack.c.l.b16 %v2807
        %v3149 = vunpack.c.h.b16 %v2807
        %v3150 = vunpack.c.l.b16 %v2808
        %v3151 = vunpack.c.h.b16 %v2808
        %v3152 = vunpack.c.l.b16 %v2809
        %v3153 = vunpack.c.h.b16 %v2809
        %v3154 = vunpack.c.l.b16 %v2810
        %v3155 = vunpack.c.h.b16 %v2810
        %v3156 = vunpack.c.l.b16 %v2811
        %v3157 = vunpack.c.h.b16 %v2811
        %v3158 = vunpack.c.l.b16 %v2812
        %v3159 = vunpack.c.h.b16 %v2812
        %v3160 = vunpack.c.l.b16 %v2813
        %v3161 = vunpack.c.h.b16 %v2813
        %v3162 = vunpack.c.l.b16 %v2814
        %v3163 = vunpack.c.h.b16 %v2814
        %v3164 = vunpack.c.l.b16 %v2815
        %v3165 = vunpack.c.h.b16 %v2815
        %v3166 = vunpack.c.l.b16 %v2816
        %v3167 = vunpack.c.h.b16 %v2816
        %v3168 = vunpack.c.l.b16 %v2817
        %v3169 = vunpack.c.h.b16 %v2817
        %v3170 = vunpack.c.l.b16 %v2818
        %v3171 = vunpack.c.h.b16 %v2818
        %v3172 = vunpack.c.l.b16 %v2819
        %v3173 = vunpack.c.h.b16 %v2819
        %v3174 = vunpack.c.l.b16 %v2820
        %v3175 = vunpack.c.h.b16 %v2820
        %v3176 = vunpack.c.l.b16 %v2821
        %v3177 = vunpack.c.h.b16 %v2821
        %v3178 = vunpack.c.l.b16 %v2822
        %v3179 = vunpack.c.h.b16 %v2822
        %v3180 = vunpack.c.l.b16 %v2823
        %v3181 = vunpack.c.h.b16 %v2823
        %v3182 = vunpack.c.l.b16 %v2824
        %v3183 = vunpack.c.h.b16 %v2824
        %v3184 = vunpack.c.l.b16 %v2825
        %v3185 = vunpack.c.h.b16 %v2825
        %v3186 = vunpack.c.l.b16 %v2826
        %v3187 = vunpack.c.h.b16 %v2826
        %v3188 = vunpack.c.l.b16 %v2827
        %v3189 = vunpack.c.h.b16 %v2827
        %v3190 = vunpack.c.l.b16 %v2828
        %v3191 = vunpack.c.h.b16 %v2828
        %v3192 = vunpack.c.l.b16 %v2829
        %v3193 = vunpack.c.h.b16 %v2829
        %v3194 = vunpack.c.l.b16 %v2830
        %v3195 = vunpack.c.h.b16 %v2830
        %v3196 = vunpack.c.l.b16 %v2831
        %v3197 = vunpack.c.h.b16 %v2831
        %v3198 = vunpack.c.l.b16 %v2832
        %v3199 = vunpack.c.h.b16 %v2832
        %v3200 = vunpack.c.l.b16 %v2833
        %v3201 = vunpack.c.h.b16 %v2833
        %v3202 = vunpack.c.l.b16 %v2834
        %v3203 = vunpack.c.h.b16 %v2834
        %v3204 = vunpack.c.l.b16 %v2835
        %v3205 = vunpack.c.h.b16 %v2835
        %v3206 = vunpack.c.l.b16 %v2836
        %v3207 = vunpack.c.h.b16 %v2836
        %v3208 = vunpack.c.l.b16 %v2837
        %v3209 = vunpack.c.h.b16 %v2837
        %v3210 = vunpack.c.l.b16 %v2838
        %v3211 = vunpack.c.h.b16 %v2838
        %v3212 = vunpack.c.l.b16 %v2839
        %v3213 = vunpack.c.h.b16 %v2839
        %v3214 = vunpack.c.l.b16 %v2840
        %v3215 = vunpack.c.h.b16 %v2840
        %v3216 = vunpack.c.l.b16 %v2841
        %v3217 = vunpack.c.h.b16 %v2841
        %v3218 = vunpack.c.l.b16 %v2842
        %v3219 = vunpack.c.h.b16 %v2842
        %v3220 = vunpack.c.l.b16 %v2843
        %v3221 = vunpack.c.h.b16 %v2843
        %v3222 = vunpack.c.l.b16 %v2844
        %v3223 = vunpack.c.h.b16 %v2844
        %v3224 = vunpack.c.l.b16 %v2845
        %v3225 = vunpack.c.h.b16 %v2845
        %v3226 = vunpack.c.l.b16 %v2846
        %v3227 = vunpack.c.h.b16 %v2846
        %v3228 = vunpack.c.l.b16 %v2847
        %v3229 = vunpack.c.h.b16 %v2847
        %v3230 = vunpack.c.l.b16 %v2848
        %v3231 = vunpack.c.h.b16 %v2848
        %v3232 = vunpack.c.l.b16 %v2849
        %v3233 = vunpack.c.h.b16 %v2849
        %v3234 = vunpack.c.l.b16 %v2850
        %v3235 = vunpack.c.h.b16 %v2850
        %v3236 = vunpack.c.l.b16 %v2851
        %v3237 = vunpack.c.h.b16 %v2851
        %v3238 = vunpack.c.l.b16 %v2852
        %v3239 = vunpack.c.h.b16 %v2852
        %v3240 = vunpack.c.l.b16 %v2853
        %v3241 = vunpack.c.h.b16 %v2853
        %v3242 = vunpack.c.l.b16 %v2854
        %v3243 = vunpack.c.h.b16 %v2854
        %v3244 = vunpack.c.l.b16 %v2855
        %v3245 = vunpack.c.h.b16 %v2855
        %v3246 = vunpack.c.l.b16 %v2856
        %v3247 = vunpack.c.h.b16 %v2856
        %v3248 = vunpack.c.l.b16 %v2857
        %v3249 = vunpack.c.h.b16 %v2857
        %v3250 = vunpack.c.l.b16 %v2858
        %v3251 = vunpack.c.h.b16 %v2858
        %v3252 = vunpack.c.l.b16 %v2859
        %v3253 = vunpack.c.h.b16 %v2859
        %v3254 = vunpack.c.l.b16 %v2860
        %v3255 = vunpack.c.h.b16 %v2860
        %v3256 = vunpack.c.l.b16 %v2861
        %v3257 = vunpack.c.h.b16 %v2861
        %v3258 = vunpack.c.l.b16 %v2862
        %v3259 = vunpack.c.h.b16 %v2862
        %v3260 = vunpack.c.l.b16 %v2863
        %v3261 = vunpack.c.h.b16 %v2863
        %v3262 = vunpack.c.l.b16 %v2864
        %v3263 = vunpack.c.h.b16 %v2864
        %v3264 = vunpack.c.l.b16 %v2865
        %v3265 = vunpack.c.h.b16 %v2865
        %v3266 = vunpack.c.l.b16 %v2866
        %v3267 = vunpack.c.h.b16 %v2866
        %v3268 = vunpack.c.l.b16 %v2867
        %v3269 = vunpack.c.h.b16 %v2867
        %v3270 = vunpack.c.l.b16 %v2868
        %v3271 = vunpack.c.h.b16 %v2868
        %v3272 = vunpack.c.l.b16 %v2869
        %v3273 = vunpack.c.h.b16 %v2869
        %v3274 = vunpack.c.l.b16 %v2870
        %v3275 = vunpack.c.h.b16 %v2870
        %v3276 = vunpack.c.l.b16 %v2871
        %v3277 = vunpack.c.h.b16 %v2871
        %v3278 = vpack.c.b16 %v3026, %v3022
        %v3279 = vpack.c.b16 %v3027, %v3023
        %v3280 = vpack.c.b16 %v3028, %v3024
        %v3281 = vpack.c.b16 %v3029, %v3025
        %v3282 = vpack.c.b16 %v3034, %v3030
        %v3283 = vpack.c.b16 %v3035, %v3031
        %v3284 = vpack.c.b16 %v3036, %v3032
        %v3285 = vpack.c.b16 %v3037, %v3033
        %v3286 = vpack.c.b16 %v3042, %v3038
        %v3287 = vpack.c.b16 %v3043, %v3039
        %v3288 = vpack.c.b16 %v3044, %v3040
        %v3289 = vpack.c.b16 %v3045, %v3041
        %v3290 = vpack.c.b16 %v3050, %v3046
        %v3291 = vpack.c.b16 %v3051, %v3047
        %v3292 = vpack.c.b16 %v3052, %v3048
        %v3293 = vpack.c.b16 %v3053, %v3049
        %v3294 = vpack.c.b16 %v3058, %v3054
        %v3295 = vpack.c.b16 %v3059, %v3055
        %v3296 = vpack.c.b16 %v3060, %v3056
        %v3297 = vpack.c.b16 %v3061, %v3057
        %v3298 = vpack.c.b16 %v3066, %v3062
        %v3299 = vpack.c.b16 %v3067, %v3063
        %v3300 = vpack.c.b16 %v3068, %v3064
        %v3301 = vpack.c.b16 %v3069, %v3065
        %v3302 = vpack.c.b16 %v3074, %v3070
        %v3303 = vpack.c.b16 %v3075, %v3071
        %v3304 = vpack.c.b16 %v3076, %v3072
        %v3305 = vpack.c.b16 %v3077, %v3073
        %v3306 = vpack.c.b16 %v3082, %v3078
        %v3307 = vpack.c.b16 %v3083, %v3079
        %v3308 = vpack.c.b16 %v3084, %v3080
        %v3309 = vpack.c.b16 %v3085, %v3081
        %v3310 = vpack.c.b16 %v3090, %v3086
        %v3311 = vpack.c.b16 %v3091, %v3087
        %v3312 = vpack.c.b16 %v3092, %v3088
        %v3313 = vpack.c.b16 %v3093, %v3089
        %v3314 = vpack.c.b16 %v3098, %v3094
        %v3315 = vpack.c.b16 %v3099, %v3095
        %v3316 = vpack.c.b16 %v3100, %v3096
        %v3317 = vpack.c.b16 %v3101, %v3097
        %v3318 = vpack.c.b16 %v3106, %v3102
        %v3319 = vpack.c.b16 %v3107, %v3103
        %v3320 = vpack.c.b16 %v3108, %v3104
        %v3321 = vpack.c.b16 %v3109, %v3105
        %v3322 = vpack.c.b16 %v3114, %v3110
        %v3323 = vpack.c.b16 %v3115, %v3111
        %v3324 = vpack.c.b16 %v3116, %v3112
        %v3325 = vpack.c.b16 %v3117, %v3113
        %v3326 = vpack.c.b16 %v3122, %v3118
        %v3327 = vpack.c.b16 %v3123, %v3119
        %v3328 = vpack.c.b16 %v3124, %v3120
        %v3329 = vpack.c.b16 %v3125, %v3121
        %v3330 = vpack.c.b16 %v3130, %v3126
        %v3331 = vpack.c.b16 %v3131, %v3127
        %v3332 = vpack.c.b16 %v3132, %v3128
        %v3333 = vpack.c.b16 %v3133, %v3129
        %v3334 = vpack.c.b16 %v3138, %v3134
        %v3335 = vpack.c.b16 %v3139, %v3135
        %v3336 = vpack.c.b16 %v3140, %v3136
        %v3337 = vpack.c.b16 %v3141, %v3137
        %v3338 = vpack.c.b16 %v3146, %v3142
        %v3339 = vpack.c.b16 %v3147, %v3143
        %v3340 = vpack.c.b16 %v3148, %v3144
        %v3341 = vpack.c.b16 %v3149, %v3145
        %v3342 = vpack.c.b16 %v3154, %v3150
        %v3343 = vpack.c.b16 %v3155, %v3151
        %v3344 = vpack.c.b16 %v3156, %v3152
        %v3345 = vpack.c.b16 %v3157, %v3153
        %v3346 = vpack.c.b16 %v3162, %v3158
        %v3347 = vpack.c.b16 %v3163, %v3159
        %v3348 = vpack.c.b16 %v3164, %v3160
        %v3349 = vpack.c.b16 %v3165, %v3161
        %v3350 = vpack.c.b16 %v3170, %v3166
        %v3351 = vpack.c.b16 %v3171, %v3167
        %v3352 = vpack.c.b16 %v3172, %v3168
        %v3353 = vpack.c.b16 %v3173, %v3169
        %v3354 = vpack.c.b16 %v3178, %v3174
        %v3355 = vpack.c.b16 %v3179, %v3175
        %v3356 = vpack.c.b16 %v3180, %v3176
        %v3357 = vpack.c.b16 %v3181, %v3177
        %v3358 = vpack.c.b16 %v3186, %v3182
        %v3359 = vpack.c.b16 %v3187, %v3183
        %v3360 = vpack.c.b16 %v3188, %v3184
        %v3361 = vpack.c.b16 %v3189, %v3185
        %v3362 = vpack.c.b16 %v3194, %v3190
        %v3363 = vpack.c.b16 %v3195, %v3191
        %v3364 = vpack.c.b16 %v3196, %v3192
        %v3365 = vpack.c.b16 %v3197, %v3193
        %v3366 = vpack.c.b16 %v3202, %v3198
        %v3367 = vpack.c.b16 %v3203, %v3199
        %v3368 = vpack.c.b16 %v3204, %v3200
        %v3369 = vpack.c.b16 %v3205, %v3201
        %v3370 = vpack.c.b16 %v3210, %v3206
        %v3371 = vpack.c.b16 %v3211, %v3207
        %v3372 = vpack.c.b16 %v3212, %v3208
        %v3373 = vpack.c.b16 %v3213, %v3209
        %v3374 = vpack.c.b16 %v3218, %v3214
        %v3375 = vpack.c.b16 %v3219, %v3215
        %v3376 = vpack.c.b16 %v3220, %v3216
        %v3377 = vpack.c.b16 %v3221, %v3217
        %v3378 = vpack.c.b16 %v3226, %v3222
        %v3379 = vpack.c.b16 %v3227, %v3223
        %v3380 = vpack.c.b16 %v3228, %v3224
        %v3381 = vpack.c.b16 %v3229, %v3225
        %v3382 = vpack.c.b16 %v3234, %v3230
        %v3383 = vpack.c.b16 %v3235, %v3231
        %v3384 = vpack.c.b16 %v3236, %v3232
        %v3385 = vpack.c.b16 %v3237, %v3233
        %v3386 = vpack.c.b16 %v3242, %v3238
        %v3387 = vpack.c.b16 %v3243, %v3239
        %v3388 = vpack.c.b16 %v3244, %v3240
        %v3389 = vpack.c.b16 %v3245, %v3241
        %v3390 = vpack.c.b16 %v3250, %v3246
        %v3391 = vpack.c.b16 %v3251, %v3247
        %v3392 = vpack.c.b16 %v3252, %v3248
        %v3393 = vpack.c.b16 %v3253, %v3249
        %v3394 = vpack.c.b16 %v3258, %v3254
        %v3395 = vpack.c.b16 %v3259, %v3255
        %v3396 = vpack.c.b16 %v3260, %v3256
        %v3397 = vpack.c.b16 %v3261, %v3257
        %v3398 = vpack.c.b16 %v3266, %v3262
        %v3399 = vpack.c.b16 %v3267, %v3263
        %v3400 = vpack.c.b16 %v3268, %v3264
        %v3401 = vpack.c.b16 %v3269, %v3265
        %v3402 = vpack.c.b16 %v3274, %v3270
        %v3403 = vpack.c.b16 %v3275, %v3271
        %v3404 = vpack.c.b16 %v3276, %v3272
        %v3405 = vpack.c.b16 %v3277, %v3273
        %3534 = vmatprep.subr.bf16.mxu0 %v3279
        %3535 = vmatpush1.bf16.msra.mxu0 %v3278
        %3536 = vmatprep.subr.bf16.mxu0 %v3283
        %3537 = vmatpush1.bf16.msra.mxu0 %v3282
        %3538 = vmatprep.subr.bf16.mxu0 %v3287
        %3539 = vmatpush1.bf16.msra.mxu0 %v3286
        %3540 = vmatprep.subr.bf16.mxu0 %v3291
        %3541 = vmatpush1.bf16.msra.mxu0 %v3290
        %3542 = vmatprep.subr.bf16.mxu0 %v3295
        %3543 = vmatpush1.bf16.msra.mxu0 %v3294
        %3544 = vmatprep.subr.bf16.mxu0 %v3299
        %3545 = vmatpush1.bf16.msra.mxu0 %v3298
        %3546 = vmatprep.subr.bf16.mxu0 %v3303
        %3547 = vmatpush1.bf16.msra.mxu0 %v3302
        %3548 = vmatprep.subr.bf16.mxu0 %v3307
        %3549 = vmatpush1.bf16.msra.mxu0 %v3306
        %3550 = vmatprep.subr.bf16.mxu0 %v3311
        %3551 = vmatpush1.bf16.msra.mxu0 %v3310
        %3552 = vmatprep.subr.bf16.mxu0 %v3315
        %3553 = vmatpush1.bf16.msra.mxu0 %v3314
        %3554 = vmatprep.subr.bf16.mxu0 %v3319
        %3555 = vmatpush1.bf16.msra.mxu0 %v3318
        %3556 = vmatprep.subr.bf16.mxu0 %v3323
        %3557 = vmatpush1.bf16.msra.mxu0 %v3322
        %3558 = vmatprep.subr.bf16.mxu0 %v3327
        %3559 = vmatpush1.bf16.msra.mxu0 %v3326
        %3560 = vmatprep.subr.bf16.mxu0 %v3331
        %3561 = vmatpush1.bf16.msra.mxu0 %v3330
        %3562 = vmatprep.subr.bf16.mxu0 %v3335
        %3563 = vmatpush1.bf16.msra.mxu0 %v3334
        %3564 = vmatprep.subr.bf16.mxu0 %v3339
        %3565 = vmatpush1.bf16.msra.mxu0 %v3338
        %3566 = vmatprep.mubr.bf16.mxu0 %v2713
        %3567 = vmatmul.mubr.bf16.gmra.mrb[0].mxu0 %v2712
        %v3568 = vpop.f32.mrb[0].mxu0
        %v3569 = vadd.f32 %v2877, %v3568
        %v3570 = vpop.f32.mrb[0].mxu0
        %v3571 = vadd.f32 %v2881, %v3570
        %v3572 = vpop.f32.mrb[0].mxu0
        %v3573 = vadd.f32 %v2877, %v3572
        %v3574 = vpop.f32.mrb[0].mxu0
        %v3575 = vadd.f32 %v2881, %v3574
        %3576 = vmatprep.mubr.bf16.mxu0 %v2717
        %3577 = vmatmul.mubr.bf16.gmra.mrb[0].mxu0 %v2716
        %v3578 = vpop.f32.mrb[0].mxu0
        %v3579 = vadd.f32 %v2877, %v3578
        %v3580 = vpop.f32.mrb[0].mxu0
        %v3581 = vadd.f32 %v2881, %v3580
        %v3582 = vpop.f32.mrb[0].mxu0
        %v3583 = vadd.f32 %v2877, %v3582
        %v3584 = vpop.f32.mrb[0].mxu0
        %v3585 = vadd.f32 %v2881, %v3584
        %3586 = vmatprep.mubr.bf16.mxu0 %v2721
        %3587 = vmatmul.mubr.bf16.gmra.mrb[0].mxu0 %v2720
        %v3588 = vpop.f32.mrb[0].mxu0
        %v3589 = vadd.f32 %v2877, %v3588
        %v3590 = vpop.f32.mrb[0].mxu0
        %v3591 = vadd.f32 %v2881, %v3590
        %v3592 = vpop.f32.mrb[0].mxu0
        %v3593 = vadd.f32 %v2877, %v3592
        %v3594 = vpop.f32.mrb[0].mxu0
        %v3595 = vadd.f32 %v2881, %v3594
        %3596 = vmatprep.mubr.bf16.mxu0 %v2725
        %3597 = vmatmul.mubr.bf16.gmra.mrb[0].mxu0 %v2724
        %v3598 = vpop.f32.mrb[0].mxu0
        %v3599 = vadd.f32 %v2877, %v3598
        %v3600 = vpop.f32.mrb[0].mxu0
        %v3601 = vadd.f32 %v2881, %v3600
        %v3602 = vpop.f32.mrb[0].mxu0
        %v3603 = vadd.f32 %v2877, %v3602
        %v3604 = vpop.f32.mrb[0].mxu0
        %v3605 = vadd.f32 %v2881, %v3604
        %3606 = vmatprep.mubr.bf16.mxu0 %v2729
        %3607 = vmatmul.mubr.bf16.gmra.mrb[0].mxu0 %v2728
        %v3608 = vpop.f32.mrb[0].mxu0
        %v3609 = vadd.f32 %v2877, %v3608
        %v3610 = vpop.f32.mrb[0].mxu0
        %v3611 = vadd.f32 %v2881, %v3610
        %v3612 = vpop.f32.mrb[0].mxu0
        %v3613 = vadd.f32 %v2877, %v3612
        %v3614 = vpop.f32.mrb[0].mxu0
        %v3615 = vadd.f32 %v2881, %v3614
        %3616 = vmatprep.mubr.bf16.mxu0 %v2733
        %3617 = vmatmul.mubr.bf16.gmra.mrb[0].mxu0 %v2732
        %v3618 = vpop.f32.mrb[0].mxu0
        %v3619 = vadd.f32 %v2877, %v3618
        %v3620 = vpop.f32.mrb[0].mxu0
        %v3621 = vadd.f32 %v2881, %v3620
        %v3622 = vpop.f32.mrb[0].mxu0
        %v3623 = vadd.f32 %v2877, %v3622
        %v3624 = vpop.f32.mrb[0].mxu0
        %v3625 = vadd.f32 %v2881, %v3624
        %3626 = vmatprep.mubr.bf16.mxu0 %v2737
        %3627 = vmatmul.mubr.bf16.gmra.mrb[0].mxu0 %v2736
        %v3628 = vpop.f32.mrb[0].mxu0
        %v3629 = vadd.f32 %v2877, %v3628
        %v3630 = vpop.f32.mrb[0].mxu0
        %v3631 = vadd.f32 %v2881, %v3630
        %v3632 = vpop.f32.mrb[0].mxu0
        %v3633 = vadd.f32 %v2877, %v3632
        %v3634 = vpop.f32.mrb[0].mxu0
        %v3635 = vadd.f32 %v2881, %v3634
        %3636 = vmatprep.mubr.bf16.mxu0 %v2741
        %3637 = vmatmul.mubr.bf16.gmra.mrb[0].mxu0 %v2740
        %v3638 = vpop.f32.mrb[0].mxu0
        %v3639 = vadd.f32 %v2877, %v3638
        %v3640 = vpop.f32.mrb[0].mxu0
        %v3641 = vadd.f32 %v2881, %v3640
        %v3642 = vpop.f32.mrb[0].mxu0
        %v3643 = vadd.f32 %v2877, %v3642
        %v3644 = vpop.f32.mrb[0].mxu0
        %v3645 = vadd.f32 %v2881, %v3644
        %3646 = vdwg.mxu0
        %3647 = vmatprep.subr.bf16.mxu0 %v3343
        %3648 = vmatpush1.bf16.msra.mxu0 %v3342
        %3649 = vmatprep.subr.bf16.mxu0 %v3347
        %3650 = vmatpush1.bf16.msra.mxu0 %v3346
        %3651 = vmatprep.subr.bf16.mxu0 %v3351
        %3652 = vmatpush1.bf16.msra.mxu0 %v3350
        %3653 = vmatprep.subr.bf16.mxu0 %v3355
        %3654 = vmatpush1.bf16.msra.mxu0 %v3354
        %3655 = vmatprep.subr.bf16.mxu0 %v3359
        %3656 = vmatpush1.bf16.msra.mxu0 %v3358
        %3657 = vmatprep.subr.bf16.mxu0 %v3363
        %3658 = vmatpush1.bf16.msra.mxu0 %v3362
        %3659 = vmatprep.subr.bf16.mxu0 %v3367
        %3660 = vmatpush1.bf16.msra.mxu0 %v3366
        %3661 = vmatprep.subr.bf16.mxu0 %v3371
        %3662 = vmatpush1.bf16.msra.mxu0 %v3370
        %3663 = vmatprep.subr.bf16.mxu0 %v3375
        %3664 = vmatpush1.bf16.msra.mxu0 %v3374
        %3665 = vmatprep.subr.bf16.mxu0 %v3379
        %3666 = vmatpush1.bf16.msra.mxu0 %v3378
        %3667 = vmatprep.subr.bf16.mxu0 %v3383
        %3668 = vmatpush1.bf16.msra.mxu0 %v3382
        %3669 = vmatprep.subr.bf16.mxu0 %v3387
        %3670 = vmatpush1.bf16.msra.mxu0 %v3386
        %3671 = vmatprep.subr.bf16.mxu0 %v3391
        %3672 = vmatpush1.bf16.msra.mxu0 %v3390
        %3673 = vmatprep.subr.bf16.mxu0 %v3395
        %3674 = vmatpush1.bf16.msra.mxu0 %v3394
        %3675 = vmatprep.subr.bf16.mxu0 %v3399
        %3676 = vmatpush1.bf16.msra.mxu0 %v3398
        %3677 = vmatprep.subr.bf16.mxu0 %v3403
        %3678 = vmatpush1.bf16.msra.mxu0 %v3402
        %3679 = vmatprep.mubr.bf16.mxu0 %v2715
        %3680 = vmatmul.mubr.bf16.gmra.mrb[0].mxu0 %v2714
        %v3681 = vpop.f32.mrb[0].mxu0
        %v3682 = vadd.f32 %v3569, %v3681
        %v3683 = vpop.f32.mrb[0].mxu0
        %v3684 = vadd.f32 %v3571, %v3683
        %v3685 = vpop.f32.mrb[0].mxu0
        %v3686 = vadd.f32 %v3573, %v3685
        %v3687 = vpop.f32.mrb[0].mxu0
        %v3688 = vadd.f32 %v3575, %v3687
        %3689 = vmatprep.mubr.bf16.mxu0 %v2719
        %3690 = vmatmul.mubr.bf16.gmra.mrb[0].mxu0 %v2718
        %v3691 = vpop.f32.mrb[0].mxu0
        %v3692 = vadd.f32 %v3579, %v3691
        %v3693 = vpop.f32.mrb[0].mxu0
        %v3694 = vadd.f32 %v3581, %v3693
        %v3695 = vpop.f32.mrb[0].mxu0
        %v3696 = vadd.f32 %v3583, %v3695
        %v3697 = vpop.f32.mrb[0].mxu0
        %v3698 = vadd.f32 %v3585, %v3697
        %3699 = vmatprep.mubr.bf16.mxu0 %v2723
        %3700 = vmatmul.mubr.bf16.gmra.mrb[0].mxu0 %v2722
        %v3701 = vpop.f32.mrb[0].mxu0
        %v3702 = vadd.f32 %v3589, %v3701
        %v3703 = vpop.f32.mrb[0].mxu0
        %v3704 = vadd.f32 %v3591, %v3703
        %v3705 = vpop.f32.mrb[0].mxu0
        %v3706 = vadd.f32 %v3593, %v3705
        %v3707 = vpop.f32.mrb[0].mxu0
        %v3708 = vadd.f32 %v3595, %v3707
        %3709 = vmatprep.mubr.bf16.mxu0 %v2727
        %3710 = vmatmul.mubr.bf16.gmra.mrb[0].mxu0 %v2726
        %v3711 = vpop.f32.mrb[0].mxu0
        %v3712 = vadd.f32 %v3599, %v3711
        %v3713 = vpop.f32.mrb[0].mxu0
        %v3714 = vadd.f32 %v3601, %v3713
        %v3715 = vpop.f32.mrb[0].mxu0
        %v3716 = vadd.f32 %v3603, %v3715
        %v3717 = vpop.f32.mrb[0].mxu0
        %v3718 = vadd.f32 %v3605, %v3717
        %3719 = vmatprep.mubr.bf16.mxu0 %v2731
        %3720 = vmatmul.mubr.bf16.gmra.mrb[0].mxu0 %v2730
        %v3721 = vpop.f32.mrb[0].mxu0
        %v3722 = vadd.f32 %v3609, %v3721
        %v3723 = vpop.f32.mrb[0].mxu0
        %v3724 = vadd.f32 %v3611, %v3723
        %v3725 = vpop.f32.mrb[0].mxu0
        %v3726 = vadd.f32 %v3613, %v3725
        %v3727 = vpop.f32.mrb[0].mxu0
        %v3728 = vadd.f32 %v3615, %v3727
        %3729 = vmatprep.mubr.bf16.mxu0 %v2735
        %3730 = vmatmul.mubr.bf16.gmra.mrb[0].mxu0 %v2734
        %v3731 = vpop.f32.mrb[0].mxu0
        %v3732 = vadd.f32 %v3619, %v3731
        %v3733 = vpop.f32.mrb[0].mxu0
        %v3734 = vadd.f32 %v3621, %v3733
        %v3735 = vpop.f32.mrb[0].mxu0
        %v3736 = vadd.f32 %v3623, %v3735
        %v3737 = vpop.f32.mrb[0].mxu0
        %v3738 = vadd.f32 %v3625, %v3737
        %3739 = vmatprep.mubr.bf16.mxu0 %v2739
        %3740 = vmatmul.mubr.bf16.gmra.mrb[0].mxu0 %v2738
        %v3741 = vpop.f32.mrb[0].mxu0
        %v3742 = vadd.f32 %v3629, %v3741
        %v3743 = vpop.f32.mrb[0].mxu0
        %v3744 = vadd.f32 %v3631, %v3743
        %v3745 = vpop.f32.mrb[0].mxu0
        %v3746 = vadd.f32 %v3633, %v3745
        %v3747 = vpop.f32.mrb[0].mxu0
        %v3748 = vadd.f32 %v3635, %v3747
        %3749 = vmatprep.mubr.bf16.mxu0 %v2743
        %3750 = vmatmul.mubr.bf16.gmra.mrb[0].mxu0 %v2742
        %v3751 = vpop.f32.mrb[0].mxu0
        %v3752 = vadd.f32 %v3639, %v3751
        %v3753 = vpop.f32.mrb[0].mxu0
        %v3754 = vadd.f32 %v3641, %v3753
        %v3755 = vpop.f32.mrb[0].mxu0
        %v3756 = vadd.f32 %v3643, %v3755
        %v3757 = vpop.f32.mrb[0].mxu0
        %v3758 = vadd.f32 %v3645, %v3757
        %3759 = vdwg.mxu0
        %3760 = vmatprep.subr.bf16.mxu0 %v3281
        %3761 = vmatpush1.bf16.msra.mxu0 %v3280
        %3762 = vmatprep.subr.bf16.mxu0 %v3285
        %3763 = vmatpush1.bf16.msra.mxu0 %v3284
        %3764 = vmatprep.subr.bf16.mxu0 %v3289
        %3765 = vmatpush1.bf16.msra.mxu0 %v3288
        %3766 = vmatprep.subr.bf16.mxu0 %v3293
        %3767 = vmatpush1.bf16.msra.mxu0 %v3292
        %3768 = vmatprep.subr.bf16.mxu0 %v3297
        %3769 = vmatpush1.bf16.msra.mxu0 %v3296
        %3770 = vmatprep.subr.bf16.mxu0 %v3301
        %3771 = vmatpush1.bf16.msra.mxu0 %v3300
        %3772 = vmatprep.subr.bf16.mxu0 %v3305
        %3773 = vmatpush1.bf16.msra.mxu0 %v3304
        %3774 = vmatprep.subr.bf16.mxu0 %v3309
        %3775 = vmatpush1.bf16.msra.mxu0 %v3308
        %3776 = vmatprep.subr.bf16.mxu0 %v3313
        %3777 = vmatpush1.bf16.msra.mxu0 %v3312
        %3778 = vmatprep.subr.bf16.mxu0 %v3317
        %3779 = vmatpush1.bf16.msra.mxu0 %v3316
        %3780 = vmatprep.subr.bf16.mxu0 %v3321
        %3781 = vmatpush1.bf16.msra.mxu0 %v3320
        %3782 = vmatprep.subr.bf16.mxu0 %v3325
        %3783 = vmatpush1.bf16.msra.mxu0 %v3324
        %3784 = vmatprep.subr.bf16.mxu0 %v3329
        %3785 = vmatpush1.bf16.msra.mxu0 %v3328
        %3786 = vmatprep.subr.bf16.mxu0 %v3333
        %3787 = vmatpush1.bf16.msra.mxu0 %v3332
        %3788 = vmatprep.subr.bf16.mxu0 %v3337
        %3789 = vmatpush1.bf16.msra.mxu0 %v3336
        %3790 = vmatprep.subr.bf16.mxu0 %v3341
        %3791 = vmatpush1.bf16.msra.mxu0 %v3340
        %3792 = vmatprep.mubr.bf16.mxu0 %v2713
        %3793 = vmatmul.mubr.bf16.gmra.mrb[0].mxu0 %v2712
        %v3794 = vpop.f32.mrb[0].mxu0
        %v3795 = vadd.f32 %v2885, %v3794
        %v3796 = vpop.f32.mrb[0].mxu0
        %v3797 = vadd.f32 %v2889, %v3796
        %v3798 = vpop.f32.mrb[0].mxu0
        %v3799 = vadd.f32 %v2885, %v3798
        %v3800 = vpop.f32.mrb[0].mxu0
        %v3801 = vadd.f32 %v2889, %v3800
        %3802 = vmatprep.mubr.bf16.mxu0 %v2717
        %3803 = vmatmul.mubr.bf16.gmra.mrb[0].mxu0 %v2716
        %v3804 = vpop.f32.mrb[0].mxu0
        %v3805 = vadd.f32 %v2885, %v3804
        %v3806 = vpop.f32.mrb[0].mxu0
        %v3807 = vadd.f32 %v2889, %v3806
        %v3808 = vpop.f32.mrb[0].mxu0
        %v3809 = vadd.f32 %v2885, %v3808
        %v3810 = vpop.f32.mrb[0].mxu0
        %v3811 = vadd.f32 %v2889, %v3810
        %3812 = vmatprep.mubr.bf16.mxu0 %v2721
        %3813 = vmatmul.mubr.bf16.gmra.mrb[0].mxu0 %v2720
        %v3814 = vpop.f32.mrb[0].mxu0
        %v3815 = vadd.f32 %v2885, %v3814
        %v3816 = vpop.f32.mrb[0].mxu0
        %v3817 = vadd.f32 %v2889, %v3816
        %v3818 = vpop.f32.mrb[0].mxu0
        %v3819 = vadd.f32 %v2885, %v3818
        %v3820 = vpop.f32.mrb[0].mxu0
        %v3821 = vadd.f32 %v2889, %v3820
        %3822 = vmatprep.mubr.bf16.mxu0 %v2725
        %3823 = vmatmul.mubr.bf16.gmra.mrb[0].mxu0 %v2724
        %v3824 = vpop.f32.mrb[0].mxu0
        %v3825 = vadd.f32 %v2885, %v3824
        %v3826 = vpop.f32.mrb[0].mxu0
        %v3827 = vadd.f32 %v2889, %v3826
        %v3828 = vpop.f32.mrb[0].mxu0
        %v3829 = vadd.f32 %v2885, %v3828
        %v3830 = vpop.f32.mrb[0].mxu0
        %v3831 = vadd.f32 %v2889, %v3830
        %3832 = vmatprep.mubr.bf16.mxu0 %v2729
        %3833 = vmatmul.mubr.bf16.gmra.mrb[0].mxu0 %v2728
        %v3834 = vpop.f32.mrb[0].mxu0
        %v3835 = vadd.f32 %v2885, %v3834
        %v3836 = vpop.f32.mrb[0].mxu0
        %v3837 = vadd.f32 %v2889, %v3836
        %v3838 = vpop.f32.mrb[0].mxu0
        %v3839 = vadd.f32 %v2885, %v3838
        %v3840 = vpop.f32.mrb[0].mxu0
        %v3841 = vadd.f32 %v2889, %v3840
        %3842 = vmatprep.mubr.bf16.mxu0 %v2733
        %3843 = vmatmul.mubr.bf16.gmra.mrb[0].mxu0 %v2732
        %v3844 = vpop.f32.mrb[0].mxu0
        %v3845 = vadd.f32 %v2885, %v3844
        %v3846 = vpop.f32.mrb[0].mxu0
        %v3847 = vadd.f32 %v2889, %v3846
        %v3848 = vpop.f32.mrb[0].mxu0
        %v3849 = vadd.f32 %v2885, %v3848
        %v3850 = vpop.f32.mrb[0].mxu0
        %v3851 = vadd.f32 %v2889, %v3850
        %3852 = vmatprep.mubr.bf16.mxu0 %v2737
        %3853 = vmatmul.mubr.bf16.gmra.mrb[0].mxu0 %v2736
        %v3854 = vpop.f32.mrb[0].mxu0
        %v3855 = vadd.f32 %v2885, %v3854
        %v3856 = vpop.f32.mrb[0].mxu0
        %v3857 = vadd.f32 %v2889, %v3856
        %v3858 = vpop.f32.mrb[0].mxu0
        %v3859 = vadd.f32 %v2885, %v3858
        %v3860 = vpop.f32.mrb[0].mxu0
        %v3861 = vadd.f32 %v2889, %v3860
        %3862 = vmatprep.mubr.bf16.mxu0 %v2741
        %3863 = vmatmul.mubr.bf16.gmra.mrb[0].mxu0 %v2740
        %v3864 = vpop.f32.mrb[0].mxu0
        %v3865 = vadd.f32 %v2885, %v3864
        %v3866 = vpop.f32.mrb[0].mxu0
        %v3867 = vadd.f32 %v2889, %v3866
        %v3868 = vpop.f32.mrb[0].mxu0
        %v3869 = vadd.f32 %v2885, %v3868
        %v3870 = vpop.f32.mrb[0].mxu0
        %v3871 = vadd.f32 %v2889, %v3870
        %3872 = vdwg.mxu0
        %3873 = vmatprep.subr.bf16.mxu0 %v3345
        %3874 = vmatpush1.bf16.msra.mxu0 %v3344
        %3875 = vmatprep.subr.bf16.mxu0 %v3349
        %3876 = vmatpush1.bf16.msra.mxu0 %v3348
        %3877 = vmatprep.subr.bf16.mxu0 %v3353
        %3878 = vmatpush1.bf16.msra.mxu0 %v3352
        %3879 = vmatprep.subr.bf16.mxu0 %v3357
        %3880 = vmatpush1.bf16.msra.mxu0 %v3356
        %3881 = vmatprep.subr.bf16.mxu0 %v3361
        %3882 = vmatpush1.bf16.msra.mxu0 %v3360
        %3883 = vmatprep.subr.bf16.mxu0 %v3365
        %3884 = vmatpush1.bf16.msra.mxu0 %v3364
        %3885 = vmatprep.subr.bf16.mxu0 %v3369
        %3886 = vmatpush1.bf16.msra.mxu0 %v3368
        %3887 = vmatprep.subr.bf16.mxu0 %v3373
        %3888 = vmatpush1.bf16.msra.mxu0 %v3372
        %3889 = vmatprep.subr.bf16.mxu0 %v3377
        %3890 = vmatpush1.bf16.msra.mxu0 %v3376
        %3891 = vmatprep.subr.bf16.mxu0 %v3381
        %3892 = vmatpush1.bf16.msra.mxu0 %v3380
        %3893 = vmatprep.subr.bf16.mxu0 %v3385
        %3894 = vmatpush1.bf16.msra.mxu0 %v3384
        %3895 = vmatprep.subr.bf16.mxu0 %v3389
        %3896 = vmatpush1.bf16.msra.mxu0 %v3388
        %3897 = vmatprep.subr.bf16.mxu0 %v3393
        %3898 = vmatpush1.bf16.msra.mxu0 %v3392
        %3899 = vmatprep.subr.bf16.mxu0 %v3397
        %3900 = vmatpush1.bf16.msra.mxu0 %v3396
        %3901 = vmatprep.subr.bf16.mxu0 %v3401
        %3902 = vmatpush1.bf16.msra.mxu0 %v3400
        %3903 = vmatprep.subr.bf16.mxu0 %v3405
        %3904 = vmatpush1.bf16.msra.mxu0 %v3404
        %3905 = vmatprep.mubr.bf16.mxu0 %v2715
        %3906 = vmatmul.mubr.bf16.gmra.mrb[0].mxu0 %v2714
        %v3907 = vpop.f32.mrb[0].mxu0
        %v3908 = vadd.f32 %v3795, %v3907
        %v3909 = vpop.f32.mrb[0].mxu0
        %v3910 = vadd.f32 %v3797, %v3909
        %v3911 = vpop.f32.mrb[0].mxu0
        %v3912 = vadd.f32 %v3799, %v3911
        %v3913 = vpop.f32.mrb[0].mxu0
        %v3914 = vadd.f32 %v3801, %v3913
        %3915 = vmatprep.mubr.bf16.mxu0 %v2719
        %3916 = vmatmul.mubr.bf16.gmra.mrb[0].mxu0 %v2718
        %v3917 = vpop.f32.mrb[0].mxu0
        %v3918 = vadd.f32 %v3805, %v3917
        %v3919 = vpop.f32.mrb[0].mxu0
        %v3920 = vadd.f32 %v3807, %v3919
        %v3921 = vpop.f32.mrb[0].mxu0
        %v3922 = vadd.f32 %v3809, %v3921
        %v3923 = vpop.f32.mrb[0].mxu0
        %v3924 = vadd.f32 %v3811, %v3923
        %3925 = vmatprep.mubr.bf16.mxu0 %v2723
        %3926 = vmatmul.mubr.bf16.gmra.mrb[0].mxu0 %v2722
        %v3927 = vpop.f32.mrb[0].mxu0
        %v3928 = vadd.f32 %v3815, %v3927
        %v3929 = vpop.f32.mrb[0].mxu0
        %v3930 = vadd.f32 %v3817, %v3929
        %v3931 = vpop.f32.mrb[0].mxu0
        %v3932 = vadd.f32 %v3819, %v3931
        %v3933 = vpop.f32.mrb[0].mxu0
        %v3934 = vadd.f32 %v3821, %v3933
        %3935 = vmatprep.mubr.bf16.mxu0 %v2727
        %3936 = vmatmul.mubr.bf16.gmra.mrb[0].mxu0 %v2726
        %v3937 = vpop.f32.mrb[0].mxu0
        %v3938 = vadd.f32 %v3825, %v3937
        %v3939 = vpop.f32.mrb[0].mxu0
        %v3940 = vadd.f32 %v3827, %v3939
        %v3941 = vpop.f32.mrb[0].mxu0
        %v3942 = vadd.f32 %v3829, %v3941
        %v3943 = vpop.f32.mrb[0].mxu0
        %v3944 = vadd.f32 %v3831, %v3943
        %3945 = vmatprep.mubr.bf16.mxu0 %v2731
        %3946 = vmatmul.mubr.bf16.gmra.mrb[0].mxu0 %v2730
        %v3947 = vpop.f32.mrb[0].mxu0
        %v3948 = vadd.f32 %v3835, %v3947
        %v3949 = vpop.f32.mrb[0].mxu0
        %v3950 = vadd.f32 %v3837, %v3949
        %v3951 = vpop.f32.mrb[0].mxu0
        %v3952 = vadd.f32 %v3839, %v3951
        %v3953 = vpop.f32.mrb[0].mxu0
        %v3954 = vadd.f32 %v3841, %v3953
        %3955 = vmatprep.mubr.bf16.mxu0 %v2735
        %3956 = vmatmul.mubr.bf16.gmra.mrb[0].mxu0 %v2734
        %v3957 = vpop.f32.mrb[0].mxu0
        %v3958 = vadd.f32 %v3845, %v3957
        %v3959 = vpop.f32.mrb[0].mxu0
        %v3960 = vadd.f32 %v3847, %v3959
        %v3961 = vpop.f32.mrb[0].mxu0
        %v3962 = vadd.f32 %v3849, %v3961
        %v3963 = vpop.f32.mrb[0].mxu0
        %v3964 = vadd.f32 %v3851, %v3963
        %3965 = vmatprep.mubr.bf16.mxu0 %v2739
        %3966 = vmatmul.mubr.bf16.gmra.mrb[0].mxu0 %v2738
        %v3967 = vpop.f32.mrb[0].mxu0
        %v3968 = vadd.f32 %v3855, %v3967
        %v3969 = vpop.f32.mrb[0].mxu0
        %v3970 = vadd.f32 %v3857, %v3969
        %v3971 = vpop.f32.mrb[0].mxu0
        %v3972 = vadd.f32 %v3859, %v3971
        %v3973 = vpop.f32.mrb[0].mxu0
        %v3974 = vadd.f32 %v3861, %v3973
        %3975 = vmatprep.mubr.bf16.mxu0 %v2743
        %3976 = vmatmul.mubr.bf16.gmra.mrb[0].mxu0 %v2742
        %v3977 = vpop.f32.mrb[0].mxu0
        %v3978 = vadd.f32 %v3865, %v3977
        %v3979 = vpop.f32.mrb[0].mxu0
        %v3980 = vadd.f32 %v3867, %v3979
        %v3981 = vpop.f32.mrb[0].mxu0
        %v3982 = vadd.f32 %v3869, %v3981
        %v3983 = vpop.f32.mrb[0].mxu0
        %v3984 = vadd.f32 %v3871, %v3983
        %3985 = vdwg.mxu0
        %v3986 = vmax.f32 %v3682, 0.0
        %v3987 = vmax.f32 %v3684, 0.0
        %v3988 = vmax.f32 %v3908, 0.0
        %v3989 = vmax.f32 %v3910, 0.0
        %v3990 = vmax.f32 %v3686, 0.0
        %v3991 = vmax.f32 %v3688, 0.0
        %v3992 = vmax.f32 %v3912, 0.0
        %v3993 = vmax.f32 %v3914, 0.0
        %v3994 = vmax.f32 %v3692, 0.0
        %v3995 = vmax.f32 %v3694, 0.0
        %v3996 = vmax.f32 %v3918, 0.0
        %v3997 = vmax.f32 %v3920, 0.0
        %v3998 = vmax.f32 %v3696, 0.0
        %v3999 = vmax.f32 %v3698, 0.0
        %v4000 = vmax.f32 %v3922, 0.0
        %v4001 = vmax.f32 %v3924, 0.0
        %v4002 = vmax.f32 %v3702, 0.0
        %v4003 = vmax.f32 %v3704, 0.0
        %v4004 = vmax.f32 %v3928, 0.0
        %v4005 = vmax.f32 %v3930, 0.0
        %v4006 = vmax.f32 %v3706, 0.0
        %v4007 = vmax.f32 %v3708, 0.0
        %v4008 = vmax.f32 %v3932, 0.0
        %v4009 = vmax.f32 %v3934, 0.0
        %v4010 = vmax.f32 %v3712, 0.0
        %v4011 = vmax.f32 %v3714, 0.0
        %v4012 = vmax.f32 %v3938, 0.0
        %v4013 = vmax.f32 %v3940, 0.0
        %v4014 = vmax.f32 %v3716, 0.0
        %v4015 = vmax.f32 %v3718, 0.0
        %v4016 = vmax.f32 %v3942, 0.0
        %v4017 = vmax.f32 %v3944, 0.0
        %v4018 = vmax.f32 %v3722, 0.0
        %v4019 = vmax.f32 %v3724, 0.0
        %v4020 = vmax.f32 %v3948, 0.0
        %v4021 = vmax.f32 %v3950, 0.0
        %v4022 = vmax.f32 %v3726, 0.0
        %v4023 = vmax.f32 %v3728, 0.0
        %v4024 = vmax.f32 %v3952, 0.0
        %v4025 = vmax.f32 %v3954, 0.0
        %v4026 = vmax.f32 %v3732, 0.0
        %v4027 = vmax.f32 %v3734, 0.0
        %v4028 = vmax.f32 %v3958, 0.0
        %v4029 = vmax.f32 %v3960, 0.0
        %v4030 = vmax.f32 %v3736, 0.0
        %v4031 = vmax.f32 %v3738, 0.0
        %v4032 = vmax.f32 %v3962, 0.0
        %v4033 = vmax.f32 %v3964, 0.0
        %v4034 = vmax.f32 %v3742, 0.0
        %v4035 = vmax.f32 %v3744, 0.0
        %v4036 = vmax.f32 %v3968, 0.0
        %v4037 = vmax.f32 %v3970, 0.0
        %v4038 = vmax.f32 %v3746, 0.0
        %v4039 = vmax.f32 %v3748, 0.0
        %v4040 = vmax.f32 %v3972, 0.0
        %v4041 = vmax.f32 %v3974, 0.0
        %v4042 = vmax.f32 %v3752, 0.0
        %v4043 = vmax.f32 %v3754, 0.0
        %v4044 = vmax.f32 %v3978, 0.0
        %v4045 = vmax.f32 %v3980, 0.0
        %v4046 = vmax.f32 %v3756, 0.0
        %v4047 = vmax.f32 %v3758, 0.0
        %v4048 = vmax.f32 %v3982, 0.0
        %v4049 = vmax.f32 %v3984, 0.0
        %v4050 = vpack.c.bf16 %v3990, %v3986
        %v4051 = vpack.c.bf16 %v3991, %v3987
        %v4052 = vpack.c.bf16 %v3992, %v3988
        %v4053 = vpack.c.bf16 %v3993, %v3989
        %v4054 = vpack.c.bf16 %v3998, %v3994
        %v4055 = vpack.c.bf16 %v3999, %v3995
        %v4056 = vpack.c.bf16 %v4000, %v3996
        %v4057 = vpack.c.bf16 %v4001, %v3997
        %v4058 = vpack.c.bf16 %v4006, %v4002
        %v4059 = vpack.c.bf16 %v4007, %v4003
        %v4060 = vpack.c.bf16 %v4008, %v4004
        %v4061 = vpack.c.bf16 %v4009, %v4005
        %v4062 = vpack.c.bf16 %v4014, %v4010
        %v4063 = vpack.c.bf16 %v4015, %v4011
        %v4064 = vpack.c.bf16 %v4016, %v4012
        %v4065 = vpack.c.bf16 %v4017, %v4013
        %v4066 = vpack.c.bf16 %v4022, %v4018
        %v4067 = vpack.c.bf16 %v4023, %v4019
        %v4068 = vpack.c.bf16 %v4024, %v4020
        %v4069 = vpack.c.bf16 %v4025, %v4021
        %v4070 = vpack.c.bf16 %v4030, %v4026
        %v4071 = vpack.c.bf16 %v4031, %v4027
        %v4072 = vpack.c.bf16 %v4032, %v4028
        %v4073 = vpack.c.bf16 %v4033, %v4029
        %v4074 = vpack.c.bf16 %v4038, %v4034
        %v4075 = vpack.c.bf16 %v4039, %v4035
        %v4076 = vpack.c.bf16 %v4040, %v4036
        %v4077 = vpack.c.bf16 %v4041, %v4037
        %v4078 = vpack.c.bf16 %v4046, %v4042
        %v4079 = vpack.c.bf16 %v4047, %v4043
        %v4080 = vpack.c.bf16 %v4048, %v4044
        %v4081 = vpack.c.bf16 %v4049, %v4045
        %v4082 = vld [vmem:[#allocation2] sm:$0xff]
        %v4083 = vld [vmem:[#allocation2 + $0x8] sm:$0xff]
        %v4084 = vld [vmem:[#allocation2 + $0x10] sm:$0xff]
        %v4085 = vld [vmem:[#allocation2 + $0x18] sm:$0xff]
        %v4086 = vld [vmem:[#allocation2 + $0x20] sm:$0xff]
        %v4087 = vld [vmem:[#allocation2 + $0x28] sm:$0xff]
        %v4088 = vld [vmem:[#allocation2 + $0x30] sm:$0xff]
        %v4089 = vld [vmem:[#allocation2 + $0x38] sm:$0xff]
        %v4090 = vld [vmem:[#allocation2 + $0x40] sm:$0xff]
        %v4091 = vld [vmem:[#allocation2 + $0x48] sm:$0xff]
        %v4092 = vld [vmem:[#allocation2 + $0x50] sm:$0xff]
        %v4093 = vld [vmem:[#allocation2 + $0x58] sm:$0xff]
        %v4094 = vld [vmem:[#allocation2 + $0x60] sm:$0xff]
        %v4095 = vld [vmem:[#allocation2 + $0x68] sm:$0xff]
        %v4096 = vld [vmem:[#allocation2 + $0x70] sm:$0xff]
        %v4097 = vld [vmem:[#allocation2 + $0x78] sm:$0xff]
        %v4098 = vld [vmem:[#allocation2 + $0x80] sm:$0xff]
        %v4099 = vld [vmem:[#allocation2 + $0x88] sm:$0xff]
        %v4100 = vld [vmem:[#allocation2 + $0x90] sm:$0xff]
        %v4101 = vld [vmem:[#allocation2 + $0x98] sm:$0xff]
        %v4102 = vld [vmem:[#allocation2 + $0xa0] sm:$0xff]
        %v4103 = vld [vmem:[#allocation2 + $0xa8] sm:$0xff]
        %v4104 = vld [vmem:[#allocation2 + $0xb0] sm:$0xff]
        %v4105 = vld [vmem:[#allocation2 + $0xb8] sm:$0xff]
        %v4106 = vld [vmem:[#allocation2 + $0xc0] sm:$0xff]
        %v4107 = vld [vmem:[#allocation2 + $0xc8] sm:$0xff]
        %v4108 = vld [vmem:[#allocation2 + $0xd0] sm:$0xff]
        %v4109 = vld [vmem:[#allocation2 + $0xd8] sm:$0xff]
        %v4110 = vld [vmem:[#allocation2 + $0xe0] sm:$0xff]
        %v4111 = vld [vmem:[#allocation2 + $0xe8] sm:$0xff]
        %v4112 = vld [vmem:[#allocation2 + $0xf0] sm:$0xff]
        %v4113 = vld [vmem:[#allocation2 + $0xf8] sm:$0xff]
        %v4114 = vld [vmem:[#allocation2 + $0x100] sm:$0xff]
        %v4115 = vld [vmem:[#allocation2 + $0x108] sm:$0xff]
        %v4116 = vld [vmem:[#allocation2 + $0x110] sm:$0xff]
        %v4117 = vld [vmem:[#allocation2 + $0x118] sm:$0xff]
        %v4118 = vld [vmem:[#allocation2 + $0x120] sm:$0xff]
        %v4119 = vld [vmem:[#allocation2 + $0x128] sm:$0xff]
        %v4120 = vld [vmem:[#allocation2 + $0x130] sm:$0xff]
        %v4121 = vld [vmem:[#allocation2 + $0x138] sm:$0xff]
        %v4122 = vld [vmem:[#allocation2 + $0x140] sm:$0xff]
        %v4123 = vld [vmem:[#allocation2 + $0x148] sm:$0xff]
        %v4124 = vld [vmem:[#allocation2 + $0x150] sm:$0xff]
        %v4125 = vld [vmem:[#allocation2 + $0x158] sm:$0xff]
        %v4126 = vld [vmem:[#allocation2 + $0x160] sm:$0xff]
        %v4127 = vld [vmem:[#allocation2 + $0x168] sm:$0xff]
        %v4128 = vld [vmem:[#allocation2 + $0x170] sm:$0xff]
        %v4129 = vld [vmem:[#allocation2 + $0x178] sm:$0xff]
        %v4130 = vld [vmem:[#allocation2 + $0x180] sm:$0xff]
        %v4131 = vld [vmem:[#allocation2 + $0x188] sm:$0xff]
        %v4132 = vld [vmem:[#allocation2 + $0x190] sm:$0xff]
        %v4133 = vld [vmem:[#allocation2 + $0x198] sm:$0xff]
        %v4134 = vld [vmem:[#allocation2 + $0x1a0] sm:$0xff]
        %v4135 = vld [vmem:[#allocation2 + $0x1a8] sm:$0xff]
        %v4136 = vld [vmem:[#allocation2 + $0x1b0] sm:$0xff]
        %v4137 = vld [vmem:[#allocation2 + $0x1b8] sm:$0xff]
        %v4138 = vld [vmem:[#allocation2 + $0x1c0] sm:$0xff]
        %v4139 = vld [vmem:[#allocation2 + $0x1c8] sm:$0xff]
        %v4140 = vld [vmem:[#allocation2 + $0x1d0] sm:$0xff]
        %v4141 = vld [vmem:[#allocation2 + $0x1d8] sm:$0xff]
        %v4142 = vld [vmem:[#allocation2 + $0x1e0] sm:$0xff]
        %v4143 = vld [vmem:[#allocation2 + $0x1e8] sm:$0xff]
        %v4144 = vld [vmem:[#allocation2 + $0x1f0] sm:$0xff]
        %v4145 = vld [vmem:[#allocation2 + $0x1f8] sm:$0xff]
        %v4146 = vld [vmem:[#allocation2 + $0x200] sm:$0xff]
        %v4147 = vld [vmem:[#allocation2 + $0x208] sm:$0xff]
        %v4148 = vld [vmem:[#allocation2 + $0x210] sm:$0xff]
        %v4149 = vld [vmem:[#allocation2 + $0x218] sm:$0xff]
        %v4150 = vld [vmem:[#allocation2 + $0x220] sm:$0xff]
        %v4151 = vld [vmem:[#allocation2 + $0x228] sm:$0xff]
        %v4152 = vld [vmem:[#allocation2 + $0x230] sm:$0xff]
        %v4153 = vld [vmem:[#allocation2 + $0x238] sm:$0xff]
        %v4154 = vld [vmem:[#allocation2 + $0x240] sm:$0xff]
        %v4155 = vld [vmem:[#allocation2 + $0x248] sm:$0xff]
        %v4156 = vld [vmem:[#allocation2 + $0x250] sm:$0xff]
        %v4157 = vld [vmem:[#allocation2 + $0x258] sm:$0xff]
        %v4158 = vld [vmem:[#allocation2 + $0x260] sm:$0xff]
        %v4159 = vld [vmem:[#allocation2 + $0x268] sm:$0xff]
        %v4160 = vld [vmem:[#allocation2 + $0x270] sm:$0xff]
        %v4161 = vld [vmem:[#allocation2 + $0x278] sm:$0xff]
        %v4162 = vld [vmem:[#allocation2 + $0x280] sm:$0xff]
        %v4163 = vld [vmem:[#allocation2 + $0x288] sm:$0xff]
        %v4164 = vld [vmem:[#allocation2 + $0x290] sm:$0xff]
        %v4165 = vld [vmem:[#allocation2 + $0x298] sm:$0xff]
        %v4166 = vld [vmem:[#allocation2 + $0x2a0] sm:$0xff]
        %v4167 = vld [vmem:[#allocation2 + $0x2a8] sm:$0xff]
        %v4168 = vld [vmem:[#allocation2 + $0x2b0] sm:$0xff]
        %v4169 = vld [vmem:[#allocation2 + $0x2b8] sm:$0xff]
        %v4170 = vld [vmem:[#allocation2 + $0x2c0] sm:$0xff]
        %v4171 = vld [vmem:[#allocation2 + $0x2c8] sm:$0xff]
        %v4172 = vld [vmem:[#allocation2 + $0x2d0] sm:$0xff]
        %v4173 = vld [vmem:[#allocation2 + $0x2d8] sm:$0xff]
        %v4174 = vld [vmem:[#allocation2 + $0x2e0] sm:$0xff]
        %v4175 = vld [vmem:[#allocation2 + $0x2e8] sm:$0xff]
        %v4176 = vld [vmem:[#allocation2 + $0x2f0] sm:$0xff]
        %v4177 = vld [vmem:[#allocation2 + $0x2f8] sm:$0xff]
        %v4178 = vld [vmem:[#allocation2 + $0x300] sm:$0xff]
        %v4179 = vld [vmem:[#allocation2 + $0x308] sm:$0xff]
        %v4180 = vld [vmem:[#allocation2 + $0x310] sm:$0xff]
        %v4181 = vld [vmem:[#allocation2 + $0x318] sm:$0xff]
        %v4182 = vld [vmem:[#allocation2 + $0x320] sm:$0xff]
        %v4183 = vld [vmem:[#allocation2 + $0x328] sm:$0xff]
        %v4184 = vld [vmem:[#allocation2 + $0x330] sm:$0xff]
        %v4185 = vld [vmem:[#allocation2 + $0x338] sm:$0xff]
        %v4186 = vld [vmem:[#allocation2 + $0x340] sm:$0xff]
        %v4187 = vld [vmem:[#allocation2 + $0x348] sm:$0xff]
        %v4188 = vld [vmem:[#allocation2 + $0x350] sm:$0xff]
        %v4189 = vld [vmem:[#allocation2 + $0x358] sm:$0xff]
        %v4190 = vld [vmem:[#allocation2 + $0x360] sm:$0xff]
        %v4191 = vld [vmem:[#allocation2 + $0x368] sm:$0xff]
        %v4192 = vld [vmem:[#allocation2 + $0x370] sm:$0xff]
        %v4193 = vld [vmem:[#allocation2 + $0x378] sm:$0xff]
        %v4194 = vld [vmem:[#allocation2 + $0x380] sm:$0xff]
        %v4195 = vld [vmem:[#allocation2 + $0x388] sm:$0xff]
        %v4196 = vld [vmem:[#allocation2 + $0x390] sm:$0xff]
        %v4197 = vld [vmem:[#allocation2 + $0x398] sm:$0xff]
        %v4198 = vld [vmem:[#allocation2 + $0x3a0] sm:$0xff]
        %v4199 = vld [vmem:[#allocation2 + $0x3a8] sm:$0xff]
        %v4200 = vld [vmem:[#allocation2 + $0x3b0] sm:$0xff]
        %v4201 = vld [vmem:[#allocation2 + $0x3b8] sm:$0xff]
        %v4202 = vld [vmem:[#allocation2 + $0x3c0] sm:$0xff]
        %v4203 = vld [vmem:[#allocation2 + $0x3c8] sm:$0xff]
        %v4204 = vld [vmem:[#allocation2 + $0x3d0] sm:$0xff]
        %v4205 = vld [vmem:[#allocation2 + $0x3d8] sm:$0xff]
        %v4206 = vld [vmem:[#allocation2 + $0x3e0] sm:$0xff]
        %v4207 = vld [vmem:[#allocation2 + $0x3e8] sm:$0xff]
        %v4208 = vld [vmem:[#allocation2 + $0x3f0] sm:$0xff]
        %v4209 = vld [vmem:[#allocation2 + $0x3f8] sm:$0xff]
        %v4210 = vld [vmem:[%s6] sm:$0xf]
        %v4212 = vlaneseq
        %v4213 = vshrl.u32 %v4212, 7
        %v4214 = vsub.s32 0, %v4213
        %v4215 = vrot.slane %v4210, %v4214
        %v4216 = vlaneseq
        %v4217 = vshrl.u32 %v4216, 7
        %v4218 = vsub.s32 1, %v4217
        %v4219 = vrot.slane %v4210, %v4218
        %v4220 = vlaneseq
        %v4221 = vshrl.u32 %v4220, 7
        %v4222 = vsub.s32 2, %v4221
        %v4223 = vrot.slane %v4210, %v4222
        %v4224 = vlaneseq
        %v4225 = vshrl.u32 %v4224, 7
        %v4226 = vsub.s32 3, %v4225
        %v4227 = vrot.slane %v4210, %v4226
        %v4360 = vunpack.c.l.b16 %v4082
        %v4361 = vunpack.c.h.b16 %v4082
        %v4362 = vunpack.c.l.b16 %v4083
        %v4363 = vunpack.c.h.b16 %v4083
        %v4364 = vunpack.c.l.b16 %v4084
        %v4365 = vunpack.c.h.b16 %v4084
        %v4366 = vunpack.c.l.b16 %v4085
        %v4367 = vunpack.c.h.b16 %v4085
        %v4368 = vunpack.c.l.b16 %v4086
        %v4369 = vunpack.c.h.b16 %v4086
        %v4370 = vunpack.c.l.b16 %v4087
        %v4371 = vunpack.c.h.b16 %v4087
        %v4372 = vunpack.c.l.b16 %v4088
        %v4373 = vunpack.c.h.b16 %v4088
        %v4374 = vunpack.c.l.b16 %v4089
        %v4375 = vunpack.c.h.b16 %v4089
        %v4376 = vunpack.c.l.b16 %v4090
        %v4377 = vunpack.c.h.b16 %v4090
        %v4378 = vunpack.c.l.b16 %v4091
        %v4379 = vunpack.c.h.b16 %v4091
        %v4380 = vunpack.c.l.b16 %v4092
        %v4381 = vunpack.c.h.b16 %v4092
        %v4382 = vunpack.c.l.b16 %v4093
        %v4383 = vunpack.c.h.b16 %v4093
        %v4384 = vunpack.c.l.b16 %v4094
        %v4385 = vunpack.c.h.b16 %v4094
        %v4386 = vunpack.c.l.b16 %v4095
        %v4387 = vunpack.c.h.b16 %v4095
        %v4388 = vunpack.c.l.b16 %v4096
        %v4389 = vunpack.c.h.b16 %v4096
        %v4390 = vunpack.c.l.b16 %v4097
        %v4391 = vunpack.c.h.b16 %v4097
        %v4392 = vunpack.c.l.b16 %v4098
        %v4393 = vunpack.c.h.b16 %v4098
        %v4394 = vunpack.c.l.b16 %v4099
        %v4395 = vunpack.c.h.b16 %v4099
        %v4396 = vunpack.c.l.b16 %v4100
        %v4397 = vunpack.c.h.b16 %v4100
        %v4398 = vunpack.c.l.b16 %v4101
        %v4399 = vunpack.c.h.b16 %v4101
        %v4400 = vunpack.c.l.b16 %v4102
        %v4401 = vunpack.c.h.b16 %v4102
        %v4402 = vunpack.c.l.b16 %v4103
        %v4403 = vunpack.c.h.b16 %v4103
        %v4404 = vunpack.c.l.b16 %v4104
        %v4405 = vunpack.c.h.b16 %v4104
        %v4406 = vunpack.c.l.b16 %v4105
        %v4407 = vunpack.c.h.b16 %v4105
        %v4408 = vunpack.c.l.b16 %v4106
        %v4409 = vunpack.c.h.b16 %v4106
        %v4410 = vunpack.c.l.b16 %v4107
        %v4411 = vunpack.c.h.b16 %v4107
        %v4412 = vunpack.c.l.b16 %v4108
        %v4413 = vunpack.c.h.b16 %v4108
        %v4414 = vunpack.c.l.b16 %v4109
        %v4415 = vunpack.c.h.b16 %v4109
        %v4416 = vunpack.c.l.b16 %v4110
        %v4417 = vunpack.c.h.b16 %v4110
        %v4418 = vunpack.c.l.b16 %v4111
        %v4419 = vunpack.c.h.b16 %v4111
        %v4420 = vunpack.c.l.b16 %v4112
        %v4421 = vunpack.c.h.b16 %v4112
        %v4422 = vunpack.c.l.b16 %v4113
        %v4423 = vunpack.c.h.b16 %v4113
        %v4424 = vunpack.c.l.b16 %v4114
        %v4425 = vunpack.c.h.b16 %v4114
        %v4426 = vunpack.c.l.b16 %v4115
        %v4427 = vunpack.c.h.b16 %v4115
        %v4428 = vunpack.c.l.b16 %v4116
        %v4429 = vunpack.c.h.b16 %v4116
        %v4430 = vunpack.c.l.b16 %v4117
        %v4431 = vunpack.c.h.b16 %v4117
        %v4432 = vunpack.c.l.b16 %v4118
        %v4433 = vunpack.c.h.b16 %v4118
        %v4434 = vunpack.c.l.b16 %v4119
        %v4435 = vunpack.c.h.b16 %v4119
        %v4436 = vunpack.c.l.b16 %v4120
        %v4437 = vunpack.c.h.b16 %v4120
        %v4438 = vunpack.c.l.b16 %v4121
        %v4439 = vunpack.c.h.b16 %v4121
        %v4440 = vunpack.c.l.b16 %v4122
        %v4441 = vunpack.c.h.b16 %v4122
        %v4442 = vunpack.c.l.b16 %v4123
        %v4443 = vunpack.c.h.b16 %v4123
        %v4444 = vunpack.c.l.b16 %v4124
        %v4445 = vunpack.c.h.b16 %v4124
        %v4446 = vunpack.c.l.b16 %v4125
        %v4447 = vunpack.c.h.b16 %v4125
        %v4448 = vunpack.c.l.b16 %v4126
        %v4449 = vunpack.c.h.b16 %v4126
        %v4450 = vunpack.c.l.b16 %v4127
        %v4451 = vunpack.c.h.b16 %v4127
        %v4452 = vunpack.c.l.b16 %v4128
        %v4453 = vunpack.c.h.b16 %v4128
        %v4454 = vunpack.c.l.b16 %v4129
        %v4455 = vunpack.c.h.b16 %v4129
        %v4456 = vunpack.c.l.b16 %v4130
        %v4457 = vunpack.c.h.b16 %v4130
        %v4458 = vunpack.c.l.b16 %v4131
        %v4459 = vunpack.c.h.b16 %v4131
        %v4460 = vunpack.c.l.b16 %v4132
        %v4461 = vunpack.c.h.b16 %v4132
        %v4462 = vunpack.c.l.b16 %v4133
        %v4463 = vunpack.c.h.b16 %v4133
        %v4464 = vunpack.c.l.b16 %v4134
        %v4465 = vunpack.c.h.b16 %v4134
        %v4466 = vunpack.c.l.b16 %v4135
        %v4467 = vunpack.c.h.b16 %v4135
        %v4468 = vunpack.c.l.b16 %v4136
        %v4469 = vunpack.c.h.b16 %v4136
        %v4470 = vunpack.c.l.b16 %v4137
        %v4471 = vunpack.c.h.b16 %v4137
        %v4472 = vunpack.c.l.b16 %v4138
        %v4473 = vunpack.c.h.b16 %v4138
        %v4474 = vunpack.c.l.b16 %v4139
        %v4475 = vunpack.c.h.b16 %v4139
        %v4476 = vunpack.c.l.b16 %v4140
        %v4477 = vunpack.c.h.b16 %v4140
        %v4478 = vunpack.c.l.b16 %v4141
        %v4479 = vunpack.c.h.b16 %v4141
        %v4480 = vunpack.c.l.b16 %v4142
        %v4481 = vunpack.c.h.b16 %v4142
        %v4482 = vunpack.c.l.b16 %v4143
        %v4483 = vunpack.c.h.b16 %v4143
        %v4484 = vunpack.c.l.b16 %v4144
        %v4485 = vunpack.c.h.b16 %v4144
        %v4486 = vunpack.c.l.b16 %v4145
        %v4487 = vunpack.c.h.b16 %v4145
        %v4488 = vunpack.c.l.b16 %v4146
        %v4489 = vunpack.c.h.b16 %v4146
        %v4490 = vunpack.c.l.b16 %v4147
        %v4491 = vunpack.c.h.b16 %v4147
        %v4492 = vunpack.c.l.b16 %v4148
        %v4493 = vunpack.c.h.b16 %v4148
        %v4494 = vunpack.c.l.b16 %v4149
        %v4495 = vunpack.c.h.b16 %v4149
        %v4496 = vunpack.c.l.b16 %v4150
        %v4497 = vunpack.c.h.b16 %v4150
        %v4498 = vunpack.c.l.b16 %v4151
        %v4499 = vunpack.c.h.b16 %v4151
        %v4500 = vunpack.c.l.b16 %v4152
        %v4501 = vunpack.c.h.b16 %v4152
        %v4502 = vunpack.c.l.b16 %v4153
        %v4503 = vunpack.c.h.b16 %v4153
        %v4504 = vunpack.c.l.b16 %v4154
        %v4505 = vunpack.c.h.b16 %v4154
        %v4506 = vunpack.c.l.b16 %v4155
        %v4507 = vunpack.c.h.b16 %v4155
        %v4508 = vunpack.c.l.b16 %v4156
        %v4509 = vunpack.c.h.b16 %v4156
        %v4510 = vunpack.c.l.b16 %v4157
        %v4511 = vunpack.c.h.b16 %v4157
        %v4512 = vunpack.c.l.b16 %v4158
        %v4513 = vunpack.c.h.b16 %v4158
        %v4514 = vunpack.c.l.b16 %v4159
        %v4515 = vunpack.c.h.b16 %v4159
        %v4516 = vunpack.c.l.b16 %v4160
        %v4517 = vunpack.c.h.b16 %v4160
        %v4518 = vunpack.c.l.b16 %v4161
        %v4519 = vunpack.c.h.b16 %v4161
        %v4520 = vunpack.c.l.b16 %v4162
        %v4521 = vunpack.c.h.b16 %v4162
        %v4522 = vunpack.c.l.b16 %v4163
        %v4523 = vunpack.c.h.b16 %v4163
        %v4524 = vunpack.c.l.b16 %v4164
        %v4525 = vunpack.c.h.b16 %v4164
        %v4526 = vunpack.c.l.b16 %v4165
        %v4527 = vunpack.c.h.b16 %v4165
        %v4528 = vunpack.c.l.b16 %v4166
        %v4529 = vunpack.c.h.b16 %v4166
        %v4530 = vunpack.c.l.b16 %v4167
        %v4531 = vunpack.c.h.b16 %v4167
        %v4532 = vunpack.c.l.b16 %v4168
        %v4533 = vunpack.c.h.b16 %v4168
        %v4534 = vunpack.c.l.b16 %v4169
        %v4535 = vunpack.c.h.b16 %v4169
        %v4536 = vunpack.c.l.b16 %v4170
        %v4537 = vunpack.c.h.b16 %v4170
        %v4538 = vunpack.c.l.b16 %v4171
        %v4539 = vunpack.c.h.b16 %v4171
        %v4540 = vunpack.c.l.b16 %v4172
        %v4541 = vunpack.c.h.b16 %v4172
        %v4542 = vunpack.c.l.b16 %v4173
        %v4543 = vunpack.c.h.b16 %v4173
        %v4544 = vunpack.c.l.b16 %v4174
        %v4545 = vunpack.c.h.b16 %v4174
        %v4546 = vunpack.c.l.b16 %v4175
        %v4547 = vunpack.c.h.b16 %v4175
        %v4548 = vunpack.c.l.b16 %v4176
        %v4549 = vunpack.c.h.b16 %v4176
        %v4550 = vunpack.c.l.b16 %v4177
        %v4551 = vunpack.c.h.b16 %v4177
        %v4552 = vunpack.c.l.b16 %v4178
        %v4553 = vunpack.c.h.b16 %v4178
        %v4554 = vunpack.c.l.b16 %v4179
        %v4555 = vunpack.c.h.b16 %v4179
        %v4556 = vunpack.c.l.b16 %v4180
        %v4557 = vunpack.c.h.b16 %v4180
        %v4558 = vunpack.c.l.b16 %v4181
        %v4559 = vunpack.c.h.b16 %v4181
        %v4560 = vunpack.c.l.b16 %v4182
        %v4561 = vunpack.c.h.b16 %v4182
        %v4562 = vunpack.c.l.b16 %v4183
        %v4563 = vunpack.c.h.b16 %v4183
        %v4564 = vunpack.c.l.b16 %v4184
        %v4565 = vunpack.c.h.b16 %v4184
        %v4566 = vunpack.c.l.b16 %v4185
        %v4567 = vunpack.c.h.b16 %v4185
        %v4568 = vunpack.c.l.b16 %v4186
        %v4569 = vunpack.c.h.b16 %v4186
        %v4570 = vunpack.c.l.b16 %v4187
        %v4571 = vunpack.c.h.b16 %v4187
        %v4572 = vunpack.c.l.b16 %v4188
        %v4573 = vunpack.c.h.b16 %v4188
        %v4574 = vunpack.c.l.b16 %v4189
        %v4575 = vunpack.c.h.b16 %v4189
        %v4576 = vunpack.c.l.b16 %v4190
        %v4577 = vunpack.c.h.b16 %v4190
        %v4578 = vunpack.c.l.b16 %v4191
        %v4579 = vunpack.c.h.b16 %v4191
        %v4580 = vunpack.c.l.b16 %v4192
        %v4581 = vunpack.c.h.b16 %v4192
        %v4582 = vunpack.c.l.b16 %v4193
        %v4583 = vunpack.c.h.b16 %v4193
        %v4584 = vunpack.c.l.b16 %v4194
        %v4585 = vunpack.c.h.b16 %v4194
        %v4586 = vunpack.c.l.b16 %v4195
        %v4587 = vunpack.c.h.b16 %v4195
        %v4588 = vunpack.c.l.b16 %v4196
        %v4589 = vunpack.c.h.b16 %v4196
        %v4590 = vunpack.c.l.b16 %v4197
        %v4591 = vunpack.c.h.b16 %v4197
        %v4592 = vunpack.c.l.b16 %v4198
        %v4593 = vunpack.c.h.b16 %v4198
        %v4594 = vunpack.c.l.b16 %v4199
        %v4595 = vunpack.c.h.b16 %v4199
        %v4596 = vunpack.c.l.b16 %v4200
        %v4597 = vunpack.c.h.b16 %v4200
        %v4598 = vunpack.c.l.b16 %v4201
        %v4599 = vunpack.c.h.b16 %v4201
        %v4600 = vunpack.c.l.b16 %v4202
        %v4601 = vunpack.c.h.b16 %v4202
        %v4602 = vunpack.c.l.b16 %v4203
        %v4603 = vunpack.c.h.b16 %v4203
        %v4604 = vunpack.c.l.b16 %v4204
        %v4605 = vunpack.c.h.b16 %v4204
        %v4606 = vunpack.c.l.b16 %v4205
        %v4607 = vunpack.c.h.b16 %v4205
        %v4608 = vunpack.c.l.b16 %v4206
        %v4609 = vunpack.c.h.b16 %v4206
        %v4610 = vunpack.c.l.b16 %v4207
        %v4611 = vunpack.c.h.b16 %v4207
        %v4612 = vunpack.c.l.b16 %v4208
        %v4613 = vunpack.c.h.b16 %v4208
        %v4614 = vunpack.c.l.b16 %v4209
        %v4615 = vunpack.c.h.b16 %v4209
        %v4616 = vpack.c.b16 %v4364, %v4360
        %v4617 = vpack.c.b16 %v4365, %v4361
        %v4618 = vpack.c.b16 %v4366, %v4362
        %v4619 = vpack.c.b16 %v4367, %v4363
        %v4620 = vpack.c.b16 %v4372, %v4368
        %v4621 = vpack.c.b16 %v4373, %v4369
        %v4622 = vpack.c.b16 %v4374, %v4370
        %v4623 = vpack.c.b16 %v4375, %v4371
        %v4624 = vpack.c.b16 %v4380, %v4376
        %v4625 = vpack.c.b16 %v4381, %v4377
        %v4626 = vpack.c.b16 %v4382, %v4378
        %v4627 = vpack.c.b16 %v4383, %v4379
        %v4628 = vpack.c.b16 %v4388, %v4384
        %v4629 = vpack.c.b16 %v4389, %v4385
        %v4630 = vpack.c.b16 %v4390, %v4386
        %v4631 = vpack.c.b16 %v4391, %v4387
        %v4632 = vpack.c.b16 %v4396, %v4392
        %v4633 = vpack.c.b16 %v4397, %v4393
        %v4634 = vpack.c.b16 %v4398, %v4394
        %v4635 = vpack.c.b16 %v4399, %v4395
        %v4636 = vpack.c.b16 %v4404, %v4400
        %v4637 = vpack.c.b16 %v4405, %v4401
        %v4638 = vpack.c.b16 %v4406, %v4402
        %v4639 = vpack.c.b16 %v4407, %v4403
        %v4640 = vpack.c.b16 %v4412, %v4408
        %v4641 = vpack.c.b16 %v4413, %v4409
        %v4642 = vpack.c.b16 %v4414, %v4410
        %v4643 = vpack.c.b16 %v4415, %v4411
        %v4644 = vpack.c.b16 %v4420, %v4416
        %v4645 = vpack.c.b16 %v4421, %v4417
        %v4646 = vpack.c.b16 %v4422, %v4418
        %v4647 = vpack.c.b16 %v4423, %v4419
        %v4648 = vpack.c.b16 %v4428, %v4424
        %v4649 = vpack.c.b16 %v4429, %v4425
        %v4650 = vpack.c.b16 %v4430, %v4426
        %v4651 = vpack.c.b16 %v4431, %v4427
        %v4652 = vpack.c.b16 %v4436, %v4432
        %v4653 = vpack.c.b16 %v4437, %v4433
        %v4654 = vpack.c.b16 %v4438, %v4434
        %v4655 = vpack.c.b16 %v4439, %v4435
        %v4656 = vpack.c.b16 %v4444, %v4440
        %v4657 = vpack.c.b16 %v4445, %v4441
        %v4658 = vpack.c.b16 %v4446, %v4442
        %v4659 = vpack.c.b16 %v4447, %v4443
        %v4660 = vpack.c.b16 %v4452, %v4448
        %v4661 = vpack.c.b16 %v4453, %v4449
        %v4662 = vpack.c.b16 %v4454, %v4450
        %v4663 = vpack.c.b16 %v4455, %v4451
        %v4664 = vpack.c.b16 %v4460, %v4456
        %v4665 = vpack.c.b16 %v4461, %v4457
        %v4666 = vpack.c.b16 %v4462, %v4458
        %v4667 = vpack.c.b16 %v4463, %v4459
        %v4668 = vpack.c.b16 %v4468, %v4464
        %v4669 = vpack.c.b16 %v4469, %v4465
        %v4670 = vpack.c.b16 %v4470, %v4466
        %v4671 = vpack.c.b16 %v4471, %v4467
        %v4672 = vpack.c.b16 %v4476, %v4472
        %v4673 = vpack.c.b16 %v4477, %v4473
        %v4674 = vpack.c.b16 %v4478, %v4474
        %v4675 = vpack.c.b16 %v4479, %v4475
        %v4676 = vpack.c.b16 %v4484, %v4480
        %v4677 = vpack.c.b16 %v4485, %v4481
        %v4678 = vpack.c.b16 %v4486, %v4482
        %v4679 = vpack.c.b16 %v4487, %v4483
        %v4680 = vpack.c.b16 %v4492, %v4488
        %v4681 = vpack.c.b16 %v4493, %v4489
        %v4682 = vpack.c.b16 %v4494, %v4490
        %v4683 = vpack.c.b16 %v4495, %v4491
        %v4684 = vpack.c.b16 %v4500, %v4496
        %v4685 = vpack.c.b16 %v4501, %v4497
        %v4686 = vpack.c.b16 %v4502, %v4498
        %v4687 = vpack.c.b16 %v4503, %v4499
        %v4688 = vpack.c.b16 %v4508, %v4504
        %v4689 = vpack.c.b16 %v4509, %v4505
        %v4690 = vpack.c.b16 %v4510, %v4506
        %v4691 = vpack.c.b16 %v4511, %v4507
        %v4692 = vpack.c.b16 %v4516, %v4512
        %v4693 = vpack.c.b16 %v4517, %v4513
        %v4694 = vpack.c.b16 %v4518, %v4514
        %v4695 = vpack.c.b16 %v4519, %v4515
        %v4696 = vpack.c.b16 %v4524, %v4520
        %v4697 = vpack.c.b16 %v4525, %v4521
        %v4698 = vpack.c.b16 %v4526, %v4522
        %v4699 = vpack.c.b16 %v4527, %v4523
        %v4700 = vpack.c.b16 %v4532, %v4528
        %v4701 = vpack.c.b16 %v4533, %v4529
        %v4702 = vpack.c.b16 %v4534, %v4530
        %v4703 = vpack.c.b16 %v4535, %v4531
        %v4704 = vpack.c.b16 %v4540, %v4536
        %v4705 = vpack.c.b16 %v4541, %v4537
        %v4706 = vpack.c.b16 %v4542, %v4538
        %v4707 = vpack.c.b16 %v4543, %v4539
        %v4708 = vpack.c.b16 %v4548, %v4544
        %v4709 = vpack.c.b16 %v4549, %v4545
        %v4710 = vpack.c.b16 %v4550, %v4546
        %v4711 = vpack.c.b16 %v4551, %v4547
        %v4712 = vpack.c.b16 %v4556, %v4552
        %v4713 = vpack.c.b16 %v4557, %v4553
        %v4714 = vpack.c.b16 %v4558, %v4554
        %v4715 = vpack.c.b16 %v4559, %v4555
        %v4716 = vpack.c.b16 %v4564, %v4560
        %v4717 = vpack.c.b16 %v4565, %v4561
        %v4718 = vpack.c.b16 %v4566, %v4562
        %v4719 = vpack.c.b16 %v4567, %v4563
        %v4720 = vpack.c.b16 %v4572, %v4568
        %v4721 = vpack.c.b16 %v4573, %v4569
        %v4722 = vpack.c.b16 %v4574, %v4570
        %v4723 = vpack.c.b16 %v4575, %v4571
        %v4724 = vpack.c.b16 %v4580, %v4576
        %v4725 = vpack.c.b16 %v4581, %v4577
        %v4726 = vpack.c.b16 %v4582, %v4578
        %v4727 = vpack.c.b16 %v4583, %v4579
        %v4728 = vpack.c.b16 %v4588, %v4584
        %v4729 = vpack.c.b16 %v4589, %v4585
        %v4730 = vpack.c.b16 %v4590, %v4586
        %v4731 = vpack.c.b16 %v4591, %v4587
        %v4732 = vpack.c.b16 %v4596, %v4592
        %v4733 = vpack.c.b16 %v4597, %v4593
        %v4734 = vpack.c.b16 %v4598, %v4594
        %v4735 = vpack.c.b16 %v4599, %v4595
        %v4736 = vpack.c.b16 %v4604, %v4600
        %v4737 = vpack.c.b16 %v4605, %v4601
        %v4738 = vpack.c.b16 %v4606, %v4602
        %v4739 = vpack.c.b16 %v4607, %v4603
        %v4740 = vpack.c.b16 %v4612, %v4608
        %v4741 = vpack.c.b16 %v4613, %v4609
        %v4742 = vpack.c.b16 %v4614, %v4610
        %v4743 = vpack.c.b16 %v4615, %v4611
        %4872 = vmatprep.subr.bf16.mxu0 %v4617
        %4873 = vmatpush1.bf16.msra.mxu0 %v4616
        %4874 = vmatprep.subr.bf16.mxu0 %v4621
        %4875 = vmatpush1.bf16.msra.mxu0 %v4620
        %4876 = vmatprep.subr.bf16.mxu0 %v4625
        %4877 = vmatpush1.bf16.msra.mxu0 %v4624
        %4878 = vmatprep.subr.bf16.mxu0 %v4629
        %4879 = vmatpush1.bf16.msra.mxu0 %v4628
        %4880 = vmatprep.subr.bf16.mxu0 %v4633
        %4881 = vmatpush1.bf16.msra.mxu0 %v4632
        %4882 = vmatprep.subr.bf16.mxu0 %v4637
        %4883 = vmatpush1.bf16.msra.mxu0 %v4636
        %4884 = vmatprep.subr.bf16.mxu0 %v4641
        %4885 = vmatpush1.bf16.msra.mxu0 %v4640
        %4886 = vmatprep.subr.bf16.mxu0 %v4645
        %4887 = vmatpush1.bf16.msra.mxu0 %v4644
        %4888 = vmatprep.subr.bf16.mxu0 %v4649
        %4889 = vmatpush1.bf16.msra.mxu0 %v4648
        %4890 = vmatprep.subr.bf16.mxu0 %v4653
        %4891 = vmatpush1.bf16.msra.mxu0 %v4652
        %4892 = vmatprep.subr.bf16.mxu0 %v4657
        %4893 = vmatpush1.bf16.msra.mxu0 %v4656
        %4894 = vmatprep.subr.bf16.mxu0 %v4661
        %4895 = vmatpush1.bf16.msra.mxu0 %v4660
        %4896 = vmatprep.subr.bf16.mxu0 %v4665
        %4897 = vmatpush1.bf16.msra.mxu0 %v4664
        %4898 = vmatprep.subr.bf16.mxu0 %v4669
        %4899 = vmatpush1.bf16.msra.mxu0 %v4668
        %4900 = vmatprep.subr.bf16.mxu0 %v4673
        %4901 = vmatpush1.bf16.msra.mxu0 %v4672
        %4902 = vmatprep.subr.bf16.mxu0 %v4677
        %4903 = vmatpush1.bf16.msra.mxu0 %v4676
        %4904 = vmatprep.mubr.bf16.mxu0 %v4051
        %4905 = vmatmul.mubr.bf16.gmra.mrb[0].mxu0 %v4050
        %v4906 = vpop.f32.mrb[0].mxu0
        %v4907 = vadd.f32 %v4215, %v4906
        %v4908 = vpop.f32.mrb[0].mxu0
        %v4909 = vadd.f32 %v4219, %v4908
        %v4910 = vpop.f32.mrb[0].mxu0
        %v4911 = vadd.f32 %v4215, %v4910
        %v4912 = vpop.f32.mrb[0].mxu0
        %v4913 = vadd.f32 %v4219, %v4912
        %4914 = vmatprep.mubr.bf16.mxu0 %v4055
        %4915 = vmatmul.mubr.bf16.gmra.mrb[0].mxu0 %v4054
        %v4916 = vpop.f32.mrb[0].mxu0
        %v4917 = vadd.f32 %v4215, %v4916
        %v4918 = vpop.f32.mrb[0].mxu0
        %v4919 = vadd.f32 %v4219, %v4918
        %v4920 = vpop.f32.mrb[0].mxu0
        %v4921 = vadd.f32 %v4215, %v4920
        %v4922 = vpop.f32.mrb[0].mxu0
        %v4923 = vadd.f32 %v4219, %v4922
        %4924 = vmatprep.mubr.bf16.mxu0 %v4059
        %4925 = vmatmul.mubr.bf16.gmra.mrb[0].mxu0 %v4058
        %v4926 = vpop.f32.mrb[0].mxu0
        %v4927 = vadd.f32 %v4215, %v4926
        %v4928 = vpop.f32.mrb[0].mxu0
        %v4929 = vadd.f32 %v4219, %v4928
        %v4930 = vpop.f32.mrb[0].mxu0
        %v4931 = vadd.f32 %v4215, %v4930
        %v4932 = vpop.f32.mrb[0].mxu0
        %v4933 = vadd.f32 %v4219, %v4932
        %4934 = vmatprep.mubr.bf16.mxu0 %v4063
        %4935 = vmatmul.mubr.bf16.gmra.mrb[0].mxu0 %v4062
        %v4936 = vpop.f32.mrb[0].mxu0
        %v4937 = vadd.f32 %v4215, %v4936
        %v4938 = vpop.f32.mrb[0].mxu0
        %v4939 = vadd.f32 %v4219, %v4938
        %v4940 = vpop.f32.mrb[0].mxu0
        %v4941 = vadd.f32 %v4215, %v4940
        %v4942 = vpop.f32.mrb[0].mxu0
        %v4943 = vadd.f32 %v4219, %v4942
        %4944 = vmatprep.mubr.bf16.mxu0 %v4067
        %4945 = vmatmul.mubr.bf16.gmra.mrb[0].mxu0 %v4066
        %v4946 = vpop.f32.mrb[0].mxu0
        %v4947 = vadd.f32 %v4215, %v4946
        %v4948 = vpop.f32.mrb[0].mxu0
        %v4949 = vadd.f32 %v4219, %v4948
        %v4950 = vpop.f32.mrb[0].mxu0
        %v4951 = vadd.f32 %v4215, %v4950
        %v4952 = vpop.f32.mrb[0].mxu0
        %v4953 = vadd.f32 %v4219, %v4952
        %4954 = vmatprep.mubr.bf16.mxu0 %v4071
        %4955 = vmatmul.mubr.bf16.gmra.mrb[0].mxu0 %v4070
        %v4956 = vpop.f32.mrb[0].mxu0
        %v4957 = vadd.f32 %v4215, %v4956
        %v4958 = vpop.f32.mrb[0].mxu0
        %v4959 = vadd.f32 %v4219, %v4958
        %v4960 = vpop.f32.mrb[0].mxu0
        %v4961 = vadd.f32 %v4215, %v4960
        %v4962 = vpop.f32.mrb[0].mxu0
        %v4963 = vadd.f32 %v4219, %v4962
        %4964 = vmatprep.mubr.bf16.mxu0 %v4075
        %4965 = vmatmul.mubr.bf16.gmra.mrb[0].mxu0 %v4074
        %v4966 = vpop.f32.mrb[0].mxu0
        %v4967 = vadd.f32 %v4215, %v4966
        %v4968 = vpop.f32.mrb[0].mxu0
        %v4969 = vadd.f32 %v4219, %v4968
        %v4970 = vpop.f32.mrb[0].mxu0
        %v4971 = vadd.f32 %v4215, %v4970
        %v4972 = vpop.f32.mrb[0].mxu0
        %v4973 = vadd.f32 %v4219, %v4972
        %4974 = vmatprep.mubr.bf16.mxu0 %v4079
        %4975 = vmatmul.mubr.bf16.gmra.mrb[0].mxu0 %v4078
        %v4976 = vpop.f32.mrb[0].mxu0
        %v4977 = vadd.f32 %v4215, %v4976
        %v4978 = vpop.f32.mrb[0].mxu0
        %v4979 = vadd.f32 %v4219, %v4978
        %v4980 = vpop.f32.mrb[0].mxu0
        %v4981 = vadd.f32 %v4215, %v4980
        %v4982 = vpop.f32.mrb[0].mxu0
        %v4983 = vadd.f32 %v4219, %v4982
        %4984 = vdwg.mxu0
        %4985 = vmatprep.subr.bf16.mxu0 %v4681
        %4986 = vmatpush1.bf16.msra.mxu0 %v4680
        %4987 = vmatprep.subr.bf16.mxu0 %v4685
        %4988 = vmatpush1.bf16.msra.mxu0 %v4684
        %4989 = vmatprep.subr.bf16.mxu0 %v4689
        %4990 = vmatpush1.bf16.msra.mxu0 %v4688
        %4991 = vmatprep.subr.bf16.mxu0 %v4693
        %4992 = vmatpush1.bf16.msra.mxu0 %v4692
        %4993 = vmatprep.subr.bf16.mxu0 %v4697
        %4994 = vmatpush1.bf16.msra.mxu0 %v4696
        %4995 = vmatprep.subr.bf16.mxu0 %v4701
        %4996 = vmatpush1.bf16.msra.mxu0 %v4700
        %4997 = vmatprep.subr.bf16.mxu0 %v4705
        %4998 = vmatpush1.bf16.msra.mxu0 %v4704
        %4999 = vmatprep.subr.bf16.mxu0 %v4709
        %5000 = vmatpush1.bf16.msra.mxu0 %v4708
        %5001 = vmatprep.subr.bf16.mxu0 %v4713
        %5002 = vmatpush1.bf16.msra.mxu0 %v4712
        %5003 = vmatprep.subr.bf16.mxu0 %v4717
        %5004 = vmatpush1.bf16.msra.mxu0 %v4716
        %5005 = vmatprep.subr.bf16.mxu0 %v4721
        %5006 = vmatpush1.bf16.msra.mxu0 %v4720
        %5007 = vmatprep.subr.bf16.mxu0 %v4725
        %5008 = vmatpush1.bf16.msra.mxu0 %v4724
        %5009 = vmatprep.subr.bf16.mxu0 %v4729
        %5010 = vmatpush1.bf16.msra.mxu0 %v4728
        %5011 = vmatprep.subr.bf16.mxu0 %v4733
        %5012 = vmatpush1.bf16.msra.mxu0 %v4732
        %5013 = vmatprep.subr.bf16.mxu0 %v4737
        %5014 = vmatpush1.bf16.msra.mxu0 %v4736
        %5015 = vmatprep.subr.bf16.mxu0 %v4741
        %5016 = vmatpush1.bf16.msra.mxu0 %v4740
        %5017 = vmatprep.mubr.bf16.mxu0 %v4053
        %5018 = vmatmul.mubr.bf16.gmra.mrb[0].mxu0 %v4052
        %v5019 = vpop.f32.mrb[0].mxu0
        %v5020 = vadd.f32 %v4907, %v5019
        %v5021 = vpop.f32.mrb[0].mxu0
        %v5022 = vadd.f32 %v4909, %v5021
        %v5023 = vpop.f32.mrb[0].mxu0
        %v5024 = vadd.f32 %v4911, %v5023
        %v5025 = vpop.f32.mrb[0].mxu0
        %v5026 = vadd.f32 %v4913, %v5025
        %5027 = vmatprep.mubr.bf16.mxu0 %v4057
        %5028 = vmatmul.mubr.bf16.gmra.mrb[0].mxu0 %v4056
        %v5029 = vpop.f32.mrb[0].mxu0
        %v5030 = vadd.f32 %v4917, %v5029
        %v5031 = vpop.f32.mrb[0].mxu0
        %v5032 = vadd.f32 %v4919, %v5031
        %v5033 = vpop.f32.mrb[0].mxu0
        %v5034 = vadd.f32 %v4921, %v5033
        %v5035 = vpop.f32.mrb[0].mxu0
        %v5036 = vadd.f32 %v4923, %v5035
        %5037 = vmatprep.mubr.bf16.mxu0 %v4061
        %5038 = vmatmul.mubr.bf16.gmra.mrb[0].mxu0 %v4060
        %v5039 = vpop.f32.mrb[0].mxu0
        %v5040 = vadd.f32 %v4927, %v5039
        %v5041 = vpop.f32.mrb[0].mxu0
        %v5042 = vadd.f32 %v4929, %v5041
        %v5043 = vpop.f32.mrb[0].mxu0
        %v5044 = vadd.f32 %v4931, %v5043
        %v5045 = vpop.f32.mrb[0].mxu0
        %v5046 = vadd.f32 %v4933, %v5045
        %5047 = vmatprep.mubr.bf16.mxu0 %v4065
        %5048 = vmatmul.mubr.bf16.gmra.mrb[0].mxu0 %v4064
        %v5049 = vpop.f32.mrb[0].mxu0
        %v5050 = vadd.f32 %v4937, %v5049
        %v5051 = vpop.f32.mrb[0].mxu0
        %v5052 = vadd.f32 %v4939, %v5051
        %v5053 = vpop.f32.mrb[0].mxu0
        %v5054 = vadd.f32 %v4941, %v5053
        %v5055 = vpop.f32.mrb[0].mxu0
        %v5056 = vadd.f32 %v4943, %v5055
        %5057 = vmatprep.mubr.bf16.mxu0 %v4069
        %5058 = vmatmul.mubr.bf16.gmra.mrb[0].mxu0 %v4068
        %v5059 = vpop.f32.mrb[0].mxu0
        %v5060 = vadd.f32 %v4947, %v5059
        %v5061 = vpop.f32.mrb[0].mxu0
        %v5062 = vadd.f32 %v4949, %v5061
        %v5063 = vpop.f32.mrb[0].mxu0
        %v5064 = vadd.f32 %v4951, %v5063
        %v5065 = vpop.f32.mrb[0].mxu0
        %v5066 = vadd.f32 %v4953, %v5065
        %5067 = vmatprep.mubr.bf16.mxu0 %v4073
        %5068 = vmatmul.mubr.bf16.gmra.mrb[0].mxu0 %v4072
        %v5069 = vpop.f32.mrb[0].mxu0
        %v5070 = vadd.f32 %v4957, %v5069
        %v5071 = vpop.f32.mrb[0].mxu0
        %v5072 = vadd.f32 %v4959, %v5071
        %v5073 = vpop.f32.mrb[0].mxu0
        %v5074 = vadd.f32 %v4961, %v5073
        %v5075 = vpop.f32.mrb[0].mxu0
        %v5076 = vadd.f32 %v4963, %v5075
        %5077 = vmatprep.mubr.bf16.mxu0 %v4077
        %5078 = vmatmul.mubr.bf16.gmra.mrb[0].mxu0 %v4076
        %v5079 = vpop.f32.mrb[0].mxu0
        %v5080 = vadd.f32 %v4967, %v5079
        %v5081 = vpop.f32.mrb[0].mxu0
        %v5082 = vadd.f32 %v4969, %v5081
        %v5083 = vpop.f32.mrb[0].mxu0
        %v5084 = vadd.f32 %v4971, %v5083
        %v5085 = vpop.f32.mrb[0].mxu0
        %v5086 = vadd.f32 %v4973, %v5085
        %5087 = vmatprep.mubr.bf16.mxu0 %v4081
        %5088 = vmatmul.mubr.bf16.gmra.mrb[0].mxu0 %v4080
        %v5089 = vpop.f32.mrb[0].mxu0
        %v5090 = vadd.f32 %v4977, %v5089
        %v5091 = vpop.f32.mrb[0].mxu0
        %v5092 = vadd.f32 %v4979, %v5091
        %v5093 = vpop.f32.mrb[0].mxu0
        %v5094 = vadd.f32 %v4981, %v5093
        %v5095 = vpop.f32.mrb[0].mxu0
        %v5096 = vadd.f32 %v4983, %v5095
        %5097 = vdwg.mxu0
        %5098 = vmatprep.subr.bf16.mxu0 %v4619
        %5099 = vmatpush1.bf16.msra.mxu0 %v4618
        %5100 = vmatprep.subr.bf16.mxu0 %v4623
        %5101 = vmatpush1.bf16.msra.mxu0 %v4622
        %5102 = vmatprep.subr.bf16.mxu0 %v4627
        %5103 = vmatpush1.bf16.msra.mxu0 %v4626
        %5104 = vmatprep.subr.bf16.mxu0 %v4631
        %5105 = vmatpush1.bf16.msra.mxu0 %v4630
        %5106 = vmatprep.subr.bf16.mxu0 %v4635
        %5107 = vmatpush1.bf16.msra.mxu0 %v4634
        %5108 = vmatprep.subr.bf16.mxu0 %v4639
        %5109 = vmatpush1.bf16.msra.mxu0 %v4638
        %5110 = vmatprep.subr.bf16.mxu0 %v4643
        %5111 = vmatpush1.bf16.msra.mxu0 %v4642
        %5112 = vmatprep.subr.bf16.mxu0 %v4647
        %5113 = vmatpush1.bf16.msra.mxu0 %v4646
        %5114 = vmatprep.subr.bf16.mxu0 %v4651
        %5115 = vmatpush1.bf16.msra.mxu0 %v4650
        %5116 = vmatprep.subr.bf16.mxu0 %v4655
        %5117 = vmatpush1.bf16.msra.mxu0 %v4654
        %5118 = vmatprep.subr.bf16.mxu0 %v4659
        %5119 = vmatpush1.bf16.msra.mxu0 %v4658
        %5120 = vmatprep.subr.bf16.mxu0 %v4663
        %5121 = vmatpush1.bf16.msra.mxu0 %v4662
        %5122 = vmatprep.subr.bf16.mxu0 %v4667
        %5123 = vmatpush1.bf16.msra.mxu0 %v4666
        %5124 = vmatprep.subr.bf16.mxu0 %v4671
        %5125 = vmatpush1.bf16.msra.mxu0 %v4670
        %5126 = vmatprep.subr.bf16.mxu0 %v4675
        %5127 = vmatpush1.bf16.msra.mxu0 %v4674
        %5128 = vmatprep.subr.bf16.mxu0 %v4679
        %5129 = vmatpush1.bf16.msra.mxu0 %v4678
        %5130 = vmatprep.mubr.bf16.mxu0 %v4051
        %5131 = vmatmul.mubr.bf16.gmra.mrb[0].mxu0 %v4050
        %v5132 = vpop.f32.mrb[0].mxu0
        %v5133 = vadd.f32 %v4223, %v5132
        %v5134 = vpop.f32.mrb[0].mxu0
        %v5135 = vadd.f32 %v4227, %v5134
        %v5136 = vpop.f32.mrb[0].mxu0
        %v5137 = vadd.f32 %v4223, %v5136
        %v5138 = vpop.f32.mrb[0].mxu0
        %v5139 = vadd.f32 %v4227, %v5138
        %5140 = vmatprep.mubr.bf16.mxu0 %v4055
        %5141 = vmatmul.mubr.bf16.gmra.mrb[0].mxu0 %v4054
        %v5142 = vpop.f32.mrb[0].mxu0
        %v5143 = vadd.f32 %v4223, %v5142
        %v5144 = vpop.f32.mrb[0].mxu0
        %v5145 = vadd.f32 %v4227, %v5144
        %v5146 = vpop.f32.mrb[0].mxu0
        %v5147 = vadd.f32 %v4223, %v5146
        %v5148 = vpop.f32.mrb[0].mxu0
        %v5149 = vadd.f32 %v4227, %v5148
        %5150 = vmatprep.mubr.bf16.mxu0 %v4059
        %5151 = vmatmul.mubr.bf16.gmra.mrb[0].mxu0 %v4058
        %v5152 = vpop.f32.mrb[0].mxu0
        %v5153 = vadd.f32 %v4223, %v5152
        %v5154 = vpop.f32.mrb[0].mxu0
        %v5155 = vadd.f32 %v4227, %v5154
        %v5156 = vpop.f32.mrb[0].mxu0
        %v5157 = vadd.f32 %v4223, %v5156
        %v5158 = vpop.f32.mrb[0].mxu0
        %v5159 = vadd.f32 %v4227, %v5158
        %5160 = vmatprep.mubr.bf16.mxu0 %v4063
        %5161 = vmatmul.mubr.bf16.gmra.mrb[0].mxu0 %v4062
        %v5162 = vpop.f32.mrb[0].mxu0
        %v5163 = vadd.f32 %v4223, %v5162
        %v5164 = vpop.f32.mrb[0].mxu0
        %v5165 = vadd.f32 %v4227, %v5164
        %v5166 = vpop.f32.mrb[0].mxu0
        %v5167 = vadd.f32 %v4223, %v5166
        %v5168 = vpop.f32.mrb[0].mxu0
        %v5169 = vadd.f32 %v4227, %v5168
        %5170 = vmatprep.mubr.bf16.mxu0 %v4067
        %5171 = vmatmul.mubr.bf16.gmra.mrb[0].mxu0 %v4066
        %v5172 = vpop.f32.mrb[0].mxu0
        %v5173 = vadd.f32 %v4223, %v5172
        %v5174 = vpop.f32.mrb[0].mxu0
        %v5175 = vadd.f32 %v4227, %v5174
        %v5176 = vpop.f32.mrb[0].mxu0
        %v5177 = vadd.f32 %v4223, %v5176
        %v5178 = vpop.f32.mrb[0].mxu0
        %v5179 = vadd.f32 %v4227, %v5178
        %5180 = vmatprep.mubr.bf16.mxu0 %v4071
        %5181 = vmatmul.mubr.bf16.gmra.mrb[0].mxu0 %v4070
        %v5182 = vpop.f32.mrb[0].mxu0
        %v5183 = vadd.f32 %v4223, %v5182
        %v5184 = vpop.f32.mrb[0].mxu0
        %v5185 = vadd.f32 %v4227, %v5184
        %v5186 = vpop.f32.mrb[0].mxu0
        %v5187 = vadd.f32 %v4223, %v5186
        %v5188 = vpop.f32.mrb[0].mxu0
        %v5189 = vadd.f32 %v4227, %v5188
        %5190 = vmatprep.mubr.bf16.mxu0 %v4075
        %5191 = vmatmul.mubr.bf16.gmra.mrb[0].mxu0 %v4074
        %v5192 = vpop.f32.mrb[0].mxu0
        %v5193 = vadd.f32 %v4223, %v5192
        %v5194 = vpop.f32.mrb[0].mxu0
        %v5195 = vadd.f32 %v4227, %v5194
        %v5196 = vpop.f32.mrb[0].mxu0
        %v5197 = vadd.f32 %v4223, %v5196
        %v5198 = vpop.f32.mrb[0].mxu0
        %v5199 = vadd.f32 %v4227, %v5198
        %5200 = vmatprep.mubr.bf16.mxu0 %v4079
        %5201 = vmatmul.mubr.bf16.gmra.mrb[0].mxu0 %v4078
        %v5202 = vpop.f32.mrb[0].mxu0
        %v5203 = vadd.f32 %v4223, %v5202
        %v5204 = vpop.f32.mrb[0].mxu0
        %v5205 = vadd.f32 %v4227, %v5204
        %v5206 = vpop.f32.mrb[0].mxu0
        %v5207 = vadd.f32 %v4223, %v5206
        %v5208 = vpop.f32.mrb[0].mxu0
        %v5209 = vadd.f32 %v4227, %v5208
        %5210 = vdwg.mxu0
        %5211 = vmatprep.subr.bf16.mxu0 %v4683
        %5212 = vmatpush1.bf16.msra.mxu0 %v4682
        %5213 = vmatprep.subr.bf16.mxu0 %v4687
        %5214 = vmatpush1.bf16.msra.mxu0 %v4686
        %5215 = vmatprep.subr.bf16.mxu0 %v4691
        %5216 = vmatpush1.bf16.msra.mxu0 %v4690
        %5217 = vmatprep.subr.bf16.mxu0 %v4695
        %5218 = vmatpush1.bf16.msra.mxu0 %v4694
        %5219 = vmatprep.subr.bf16.mxu0 %v4699
        %5220 = vmatpush1.bf16.msra.mxu0 %v4698
        %5221 = vmatprep.subr.bf16.mxu0 %v4703
        %5222 = vmatpush1.bf16.msra.mxu0 %v4702
        %5223 = vmatprep.subr.bf16.mxu0 %v4707
        %5224 = vmatpush1.bf16.msra.mxu0 %v4706
        %5225 = vmatprep.subr.bf16.mxu0 %v4711
        %5226 = vmatpush1.bf16.msra.mxu0 %v4710
        %5227 = vmatprep.subr.bf16.mxu0 %v4715
        %5228 = vmatpush1.bf16.msra.mxu0 %v4714
        %5229 = vmatprep.subr.bf16.mxu0 %v4719
        %5230 = vmatpush1.bf16.msra.mxu0 %v4718
        %5231 = vmatprep.subr.bf16.mxu0 %v4723
        %5232 = vmatpush1.bf16.msra.mxu0 %v4722
        %5233 = vmatprep.subr.bf16.mxu0 %v4727
        %5234 = vmatpush1.bf16.msra.mxu0 %v4726
        %5235 = vmatprep.subr.bf16.mxu0 %v4731
        %5236 = vmatpush1.bf16.msra.mxu0 %v4730
        %5237 = vmatprep.subr.bf16.mxu0 %v4735
        %5238 = vmatpush1.bf16.msra.mxu0 %v4734
        %5239 = vmatprep.subr.bf16.mxu0 %v4739
        %5240 = vmatpush1.bf16.msra.mxu0 %v4738
        %5241 = vmatprep.subr.bf16.mxu0 %v4743
        %5242 = vmatpush1.bf16.msra.mxu0 %v4742
        %5243 = vmatprep.mubr.bf16.mxu0 %v4053
        %5244 = vmatmul.mubr.bf16.gmra.mrb[0].mxu0 %v4052
        %v5245 = vpop.f32.mrb[0].mxu0
        %v5246 = vadd.f32 %v5133, %v5245
        %v5247 = vpop.f32.mrb[0].mxu0
        %v5248 = vadd.f32 %v5135, %v5247
        %v5249 = vpop.f32.mrb[0].mxu0
        %v5250 = vadd.f32 %v5137, %v5249
        %v5251 = vpop.f32.mrb[0].mxu0
        %v5252 = vadd.f32 %v5139, %v5251
        %5253 = vmatprep.mubr.bf16.mxu0 %v4057
        %5254 = vmatmul.mubr.bf16.gmra.mrb[0].mxu0 %v4056
        %v5255 = vpop.f32.mrb[0].mxu0
        %v5256 = vadd.f32 %v5143, %v5255
        %v5257 = vpop.f32.mrb[0].mxu0
        %v5258 = vadd.f32 %v5145, %v5257
        %v5259 = vpop.f32.mrb[0].mxu0
        %v5260 = vadd.f32 %v5147, %v5259
        %v5261 = vpop.f32.mrb[0].mxu0
        %v5262 = vadd.f32 %v5149, %v5261
        %5263 = vmatprep.mubr.bf16.mxu0 %v4061
        %5264 = vmatmul.mubr.bf16.gmra.mrb[0].mxu0 %v4060
        %v5265 = vpop.f32.mrb[0].mxu0
        %v5266 = vadd.f32 %v5153, %v5265
        %v5267 = vpop.f32.mrb[0].mxu0
        %v5268 = vadd.f32 %v5155, %v5267
        %v5269 = vpop.f32.mrb[0].mxu0
        %v5270 = vadd.f32 %v5157, %v5269
        %v5271 = vpop.f32.mrb[0].mxu0
        %v5272 = vadd.f32 %v5159, %v5271
        %5273 = vmatprep.mubr.bf16.mxu0 %v4065
        %5274 = vmatmul.mubr.bf16.gmra.mrb[0].mxu0 %v4064
        %v5275 = vpop.f32.mrb[0].mxu0
        %v5276 = vadd.f32 %v5163, %v5275
        %v5277 = vpop.f32.mrb[0].mxu0
        %v5278 = vadd.f32 %v5165, %v5277
        %v5279 = vpop.f32.mrb[0].mxu0
        %v5280 = vadd.f32 %v5167, %v5279
        %v5281 = vpop.f32.mrb[0].mxu0
        %v5282 = vadd.f32 %v5169, %v5281
        %5283 = vmatprep.mubr.bf16.mxu0 %v4069
        %5284 = vmatmul.mubr.bf16.gmra.mrb[0].mxu0 %v4068
        %v5285 = vpop.f32.mrb[0].mxu0
        %v5286 = vadd.f32 %v5173, %v5285
        %v5287 = vpop.f32.mrb[0].mxu0
        %v5288 = vadd.f32 %v5175, %v5287
        %v5289 = vpop.f32.mrb[0].mxu0
        %v5290 = vadd.f32 %v5177, %v5289
        %v5291 = vpop.f32.mrb[0].mxu0
        %v5292 = vadd.f32 %v5179, %v5291
        %5293 = vmatprep.mubr.bf16.mxu0 %v4073
        %5294 = vmatmul.mubr.bf16.gmra.mrb[0].mxu0 %v4072
        %v5295 = vpop.f32.mrb[0].mxu0
        %v5296 = vadd.f32 %v5183, %v5295
        %v5297 = vpop.f32.mrb[0].mxu0
        %v5298 = vadd.f32 %v5185, %v5297
        %v5299 = vpop.f32.mrb[0].mxu0
        %v5300 = vadd.f32 %v5187, %v5299
        %v5301 = vpop.f32.mrb[0].mxu0
        %v5302 = vadd.f32 %v5189, %v5301
        %5303 = vmatprep.mubr.bf16.mxu0 %v4077
        %5304 = vmatmul.mubr.bf16.gmra.mrb[0].mxu0 %v4076
        %v5305 = vpop.f32.mrb[0].mxu0
        %v5306 = vadd.f32 %v5193, %v5305
        %v5307 = vpop.f32.mrb[0].mxu0
        %v5308 = vadd.f32 %v5195, %v5307
        %v5309 = vpop.f32.mrb[0].mxu0
        %v5310 = vadd.f32 %v5197, %v5309
        %v5311 = vpop.f32.mrb[0].mxu0
        %v5312 = vadd.f32 %v5199, %v5311
        %5313 = vmatprep.mubr.bf16.mxu0 %v4081
        %5314 = vmatmul.mubr.bf16.gmra.mrb[0].mxu0 %v4080
        %v5315 = vpop.f32.mrb[0].mxu0
        %v5316 = vadd.f32 %v5203, %v5315
        %v5317 = vpop.f32.mrb[0].mxu0
        %v5318 = vadd.f32 %v5205, %v5317
        %v5319 = vpop.f32.mrb[0].mxu0
        %v5320 = vadd.f32 %v5207, %v5319
        %v5321 = vpop.f32.mrb[0].mxu0
        %v5322 = vadd.f32 %v5209, %v5321
        %5323 = vdwg.mxu0
        %v5324 = vmax.f32 %v5020, 0.0
        %v5325 = vmax.f32 %v5022, 0.0
        %v5326 = vmax.f32 %v5246, 0.0
        %v5327 = vmax.f32 %v5248, 0.0
        %v5328 = vmax.f32 %v5024, 0.0
        %v5329 = vmax.f32 %v5026, 0.0
        %v5330 = vmax.f32 %v5250, 0.0
        %v5331 = vmax.f32 %v5252, 0.0
        %v5332 = vmax.f32 %v5030, 0.0
        %v5333 = vmax.f32 %v5032, 0.0
        %v5334 = vmax.f32 %v5256, 0.0
        %v5335 = vmax.f32 %v5258, 0.0
        %v5336 = vmax.f32 %v5034, 0.0
        %v5337 = vmax.f32 %v5036, 0.0
        %v5338 = vmax.f32 %v5260, 0.0
        %v5339 = vmax.f32 %v5262, 0.0
        %v5340 = vmax.f32 %v5040, 0.0
        %v5341 = vmax.f32 %v5042, 0.0
        %v5342 = vmax.f32 %v5266, 0.0
        %v5343 = vmax.f32 %v5268, 0.0
        %v5344 = vmax.f32 %v5044, 0.0
        %v5345 = vmax.f32 %v5046, 0.0
        %v5346 = vmax.f32 %v5270, 0.0
        %v5347 = vmax.f32 %v5272, 0.0
        %v5348 = vmax.f32 %v5050, 0.0
        %v5349 = vmax.f32 %v5052, 0.0
        %v5350 = vmax.f32 %v5276, 0.0
        %v5351 = vmax.f32 %v5278, 0.0
        %v5352 = vmax.f32 %v5054, 0.0
        %v5353 = vmax.f32 %v5056, 0.0
        %v5354 = vmax.f32 %v5280, 0.0
        %v5355 = vmax.f32 %v5282, 0.0
        %v5356 = vmax.f32 %v5060, 0.0
        %v5357 = vmax.f32 %v5062, 0.0
        %v5358 = vmax.f32 %v5286, 0.0
        %v5359 = vmax.f32 %v5288, 0.0
        %v5360 = vmax.f32 %v5064, 0.0
        %v5361 = vmax.f32 %v5066, 0.0
        %v5362 = vmax.f32 %v5290, 0.0
        %v5363 = vmax.f32 %v5292, 0.0
        %v5364 = vmax.f32 %v5070, 0.0
        %v5365 = vmax.f32 %v5072, 0.0
        %v5366 = vmax.f32 %v5296, 0.0
        %v5367 = vmax.f32 %v5298, 0.0
        %v5368 = vmax.f32 %v5074, 0.0
        %v5369 = vmax.f32 %v5076, 0.0
        %v5370 = vmax.f32 %v5300, 0.0
        %v5371 = vmax.f32 %v5302, 0.0
        %v5372 = vmax.f32 %v5080, 0.0
        %v5373 = vmax.f32 %v5082, 0.0
        %v5374 = vmax.f32 %v5306, 0.0
        %v5375 = vmax.f32 %v5308, 0.0
        %v5376 = vmax.f32 %v5084, 0.0
        %v5377 = vmax.f32 %v5086, 0.0
        %v5378 = vmax.f32 %v5310, 0.0
        %v5379 = vmax.f32 %v5312, 0.0
        %v5380 = vmax.f32 %v5090, 0.0
        %v5381 = vmax.f32 %v5092, 0.0
        %v5382 = vmax.f32 %v5316, 0.0
        %v5383 = vmax.f32 %v5318, 0.0
        %v5384 = vmax.f32 %v5094, 0.0
        %v5385 = vmax.f32 %v5096, 0.0
        %v5386 = vmax.f32 %v5320, 0.0
        %v5387 = vmax.f32 %v5322, 0.0
        %v5388 = vpack.c.bf16 %v5328, %v5324
        %v5389 = vpack.c.bf16 %v5329, %v5325
        %v5390 = vpack.c.bf16 %v5330, %v5326
        %v5391 = vpack.c.bf16 %v5331, %v5327
        %v5392 = vpack.c.bf16 %v5336, %v5332
        %v5393 = vpack.c.bf16 %v5337, %v5333
        %v5394 = vpack.c.bf16 %v5338, %v5334
        %v5395 = vpack.c.bf16 %v5339, %v5335
        %v5396 = vpack.c.bf16 %v5344, %v5340
        %v5397 = vpack.c.bf16 %v5345, %v5341
        %v5398 = vpack.c.bf16 %v5346, %v5342
        %v5399 = vpack.c.bf16 %v5347, %v5343
        %v5400 = vpack.c.bf16 %v5352, %v5348
        %v5401 = vpack.c.bf16 %v5353, %v5349
        %v5402 = vpack.c.bf16 %v5354, %v5350
        %v5403 = vpack.c.bf16 %v5355, %v5351
        %v5404 = vpack.c.bf16 %v5360, %v5356
        %v5405 = vpack.c.bf16 %v5361, %v5357
        %v5406 = vpack.c.bf16 %v5362, %v5358
        %v5407 = vpack.c.bf16 %v5363, %v5359
        %v5408 = vpack.c.bf16 %v5368, %v5364
        %v5409 = vpack.c.bf16 %v5369, %v5365
        %v5410 = vpack.c.bf16 %v5370, %v5366
        %v5411 = vpack.c.bf16 %v5371, %v5367
        %v5412 = vpack.c.bf16 %v5376, %v5372
        %v5413 = vpack.c.bf16 %v5377, %v5373
        %v5414 = vpack.c.bf16 %v5378, %v5374
        %v5415 = vpack.c.bf16 %v5379, %v5375
        %v5416 = vpack.c.bf16 %v5384, %v5380
        %v5417 = vpack.c.bf16 %v5385, %v5381
        %v5418 = vpack.c.bf16 %v5386, %v5382
        %v5419 = vpack.c.bf16 %v5387, %v5383
        %v5420 = vld [vmem:[%s7] sm:$0xf]
        %v5421 = vld [vmem:[%s7 + $0x4] sm:$0xf]
        %v5422 = vld [vmem:[%s7 + $0x8] sm:$0xf]
        %v5423 = vld [vmem:[%s7 + $0xc] sm:$0xf]
        %v5424 = vld [vmem:[%s7 + $0x10] sm:$0xf]
        %v5425 = vld [vmem:[%s7 + $0x14] sm:$0xf]
        %v5426 = vld [vmem:[%s7 + $0x18] sm:$0xf]
        %v5427 = vld [vmem:[%s7 + $0x1c] sm:$0xf]
        %v5428 = vld [vmem:[%s7 + $0x20] sm:$0xf]
        %v5429 = vld [vmem:[%s7 + $0x24] sm:$0xf]
        %v5430 = vld [vmem:[%s7 + $0x28] sm:$0xf]
        %v5431 = vld [vmem:[%s7 + $0x2c] sm:$0xf]
        %v5432 = vld [vmem:[%s7 + $0x30] sm:$0xf]
        %v5433 = vld [vmem:[%s7 + $0x34] sm:$0xf]
        %v5434 = vld [vmem:[%s7 + $0x38] sm:$0xf]
        %v5435 = vld [vmem:[%s7 + $0x3c] sm:$0xf]
        %v5436 = vld [vmem:[%s7 + $0x40] sm:$0xf]
        %v5437 = vld [vmem:[%s7 + $0x44] sm:$0xf]
        %v5438 = vld [vmem:[%s7 + $0x48] sm:$0xf]
        %v5439 = vld [vmem:[%s7 + $0x4c] sm:$0xf]
        %v5440 = vld [vmem:[%s7 + $0x50] sm:$0xf]
        %v5441 = vld [vmem:[%s7 + $0x54] sm:$0xf]
        %v5442 = vld [vmem:[%s7 + $0x58] sm:$0xf]
        %v5443 = vld [vmem:[%s7 + $0x5c] sm:$0xf]
        %v5444 = vld [vmem:[%s7 + $0x60] sm:$0xf]
        %v5445 = vld [vmem:[%s7 + $0x64] sm:$0xf]
        %v5446 = vld [vmem:[%s7 + $0x68] sm:$0xf]
        %v5447 = vld [vmem:[%s7 + $0x6c] sm:$0xf]
        %v5448 = vld [vmem:[%s7 + $0x70] sm:$0xf]
        %v5449 = vld [vmem:[%s7 + $0x74] sm:$0xf]
        %v5450 = vld [vmem:[%s7 + $0x78] sm:$0xf]
        %v5451 = vld [vmem:[%s7 + $0x7c] sm:$0xf]
        %v5452 = vld [vmem:[%s7 + $0x80] sm:$0xf]
        %v5453 = vld [vmem:[%s7 + $0x84] sm:$0xf]
        %v5454 = vld [vmem:[%s7 + $0x88] sm:$0xf]
        %v5455 = vld [vmem:[%s7 + $0x8c] sm:$0xf]
        %v5456 = vld [vmem:[%s7 + $0x90] sm:$0xf]
        %v5457 = vld [vmem:[%s7 + $0x94] sm:$0xf]
        %v5458 = vld [vmem:[%s7 + $0x98] sm:$0xf]
        %v5459 = vld [vmem:[%s7 + $0x9c] sm:$0xf]
        %v5460 = vld [vmem:[%s7 + $0xa0] sm:$0xf]
        %v5461 = vld [vmem:[%s7 + $0xa4] sm:$0xf]
        %v5462 = vld [vmem:[%s7 + $0xa8] sm:$0xf]
        %v5463 = vld [vmem:[%s7 + $0xac] sm:$0xf]
        %v5464 = vld [vmem:[%s7 + $0xb0] sm:$0xf]
        %v5465 = vld [vmem:[%s7 + $0xb4] sm:$0xf]
        %v5466 = vld [vmem:[%s7 + $0xb8] sm:$0xf]
        %v5467 = vld [vmem:[%s7 + $0xbc] sm:$0xf]
        %v5468 = vld [vmem:[%s7 + $0xc0] sm:$0xf]
        %v5469 = vld [vmem:[%s7 + $0xc4] sm:$0xf]
        %v5470 = vld [vmem:[%s7 + $0xc8] sm:$0xf]
        %v5471 = vld [vmem:[%s7 + $0xcc] sm:$0xf]
        %v5472 = vld [vmem:[%s7 + $0xd0] sm:$0xf]
        %v5473 = vld [vmem:[%s7 + $0xd4] sm:$0xf]
        %v5474 = vld [vmem:[%s7 + $0xd8] sm:$0xf]
        %v5475 = vld [vmem:[%s7 + $0xdc] sm:$0xf]
        %v5476 = vld [vmem:[%s7 + $0xe0] sm:$0xf]
        %v5477 = vld [vmem:[%s7 + $0xe4] sm:$0xf]
        %v5478 = vld [vmem:[%s7 + $0xe8] sm:$0xf]
        %v5479 = vld [vmem:[%s7 + $0xec] sm:$0xf]
        %v5480 = vld [vmem:[%s7 + $0xf0] sm:$0xf]
        %v5481 = vld [vmem:[%s7 + $0xf4] sm:$0xf]
        %v5482 = vld [vmem:[%s7 + $0xf8] sm:$0xf]
        %v5483 = vld [vmem:[%s7 + $0xfc] sm:$0xf]
        %v5484 = vld [vmem:[%s8] sm:$0x1]
        %v5486 = vlaneseq
        %v5487 = vshrl.u32 %v5486, 7
        %v5488 = vsub.s32 0, %v5487
        %v5489 = vrot.slane %v5484, %v5488
        %v5555 = vunpack.c.l.b16 %v5420
        %v5556 = vunpack.c.l.b16 %v5421
        %v5557 = vunpack.c.l.b16 %v5422
        %v5558 = vunpack.c.l.b16 %v5423
        %v5559 = vunpack.c.l.b16 %v5424
        %v5560 = vunpack.c.l.b16 %v5425
        %v5561 = vunpack.c.l.b16 %v5426
        %v5562 = vunpack.c.l.b16 %v5427
        %v5563 = vunpack.c.l.b16 %v5428
        %v5564 = vunpack.c.l.b16 %v5429
        %v5565 = vunpack.c.l.b16 %v5430
        %v5566 = vunpack.c.l.b16 %v5431
        %v5567 = vunpack.c.l.b16 %v5432
        %v5568 = vunpack.c.l.b16 %v5433
        %v5569 = vunpack.c.l.b16 %v5434
        %v5570 = vunpack.c.l.b16 %v5435
        %v5571 = vunpack.c.l.b16 %v5436
        %v5572 = vunpack.c.l.b16 %v5437
        %v5573 = vunpack.c.l.b16 %v5438
        %v5574 = vunpack.c.l.b16 %v5439
        %v5575 = vunpack.c.l.b16 %v5440
        %v5576 = vunpack.c.l.b16 %v5441
        %v5577 = vunpack.c.l.b16 %v5442
        %v5578 = vunpack.c.l.b16 %v5443
        %v5579 = vunpack.c.l.b16 %v5444
        %v5580 = vunpack.c.l.b16 %v5445
        %v5581 = vunpack.c.l.b16 %v5446
        %v5582 = vunpack.c.l.b16 %v5447
        %v5583 = vunpack.c.l.b16 %v5448
        %v5584 = vunpack.c.l.b16 %v5449
        %v5585 = vunpack.c.l.b16 %v5450
        %v5586 = vunpack.c.l.b16 %v5451
        %v5587 = vunpack.c.l.b16 %v5452
        %v5588 = vunpack.c.l.b16 %v5453
        %v5589 = vunpack.c.l.b16 %v5454
        %v5590 = vunpack.c.l.b16 %v5455
        %v5591 = vunpack.c.l.b16 %v5456
        %v5592 = vunpack.c.l.b16 %v5457
        %v5593 = vunpack.c.l.b16 %v5458
        %v5594 = vunpack.c.l.b16 %v5459
        %v5595 = vunpack.c.l.b16 %v5460
        %v5596 = vunpack.c.l.b16 %v5461
        %v5597 = vunpack.c.l.b16 %v5462
        %v5598 = vunpack.c.l.b16 %v5463
        %v5599 = vunpack.c.l.b16 %v5464
        %v5600 = vunpack.c.l.b16 %v5465
        %v5601 = vunpack.c.l.b16 %v5466
        %v5602 = vunpack.c.l.b16 %v5467
        %v5603 = vunpack.c.l.b16 %v5468
        %v5604 = vunpack.c.l.b16 %v5469
        %v5605 = vunpack.c.l.b16 %v5470
        %v5606 = vunpack.c.l.b16 %v5471
        %v5607 = vunpack.c.l.b16 %v5472
        %v5608 = vunpack.c.l.b16 %v5473
        %v5609 = vunpack.c.l.b16 %v5474
        %v5610 = vunpack.c.l.b16 %v5475
        %v5611 = vunpack.c.l.b16 %v5476
        %v5612 = vunpack.c.l.b16 %v5477
        %v5613 = vunpack.c.l.b16 %v5478
        %v5614 = vunpack.c.l.b16 %v5479
        %v5615 = vunpack.c.l.b16 %v5480
        %v5616 = vunpack.c.l.b16 %v5481
        %v5617 = vunpack.c.l.b16 %v5482
        %v5618 = vunpack.c.l.b16 %v5483
        %v5619 = vpack.c.b16 %v5556, %v5555
        %v5620 = vpack.c.b16 %v5558, %v5557
        %v5621 = vpack.c.b16 %v5560, %v5559
        %v5622 = vpack.c.b16 %v5562, %v5561
        %v5623 = vpack.c.b16 %v5564, %v5563
        %v5624 = vpack.c.b16 %v5566, %v5565
        %v5625 = vpack.c.b16 %v5568, %v5567
        %v5626 = vpack.c.b16 %v5570, %v5569
        %v5627 = vpack.c.b16 %v5572, %v5571
        %v5628 = vpack.c.b16 %v5574, %v5573
        %v5629 = vpack.c.b16 %v5576, %v5575
        %v5630 = vpack.c.b16 %v5578, %v5577
        %v5631 = vpack.c.b16 %v5580, %v5579
        %v5632 = vpack.c.b16 %v5582, %v5581
        %v5633 = vpack.c.b16 %v5584, %v5583
        %v5634 = vpack.c.b16 %v5586, %v5585
        %v5635 = vpack.c.b16 %v5588, %v5587
        %v5636 = vpack.c.b16 %v5590, %v5589
        %v5637 = vpack.c.b16 %v5592, %v5591
        %v5638 = vpack.c.b16 %v5594, %v5593
        %v5639 = vpack.c.b16 %v5596, %v5595
        %v5640 = vpack.c.b16 %v5598, %v5597
        %v5641 = vpack.c.b16 %v5600, %v5599
        %v5642 = vpack.c.b16 %v5602, %v5601
        %v5643 = vpack.c.b16 %v5604, %v5603
        %v5644 = vpack.c.b16 %v5606, %v5605
        %v5645 = vpack.c.b16 %v5608, %v5607
        %v5646 = vpack.c.b16 %v5610, %v5609
        %v5647 = vpack.c.b16 %v5612, %v5611
        %v5648 = vpack.c.b16 %v5614, %v5613
        %v5649 = vpack.c.b16 %v5616, %v5615
        %v5650 = vpack.c.b16 %v5618, %v5617
        %5683 = vmatprep.subr.bf16.mxu0 0
        %5684 = vmatpush1.bf16.msra.mxu0 %v5619
        %5685 = vmatprep.subr.bf16.mxu0 0
        %5686 = vmatpush1.bf16.msra.mxu0 %v5620
        %5687 = vmatprep.subr.bf16.mxu0 0
        %5688 = vmatpush1.bf16.msra.mxu0 %v5621
        %5689 = vmatprep.subr.bf16.mxu0 0
        %5690 = vmatpush1.bf16.msra.mxu0 %v5622
        %5691 = vmatprep.subr.bf16.mxu0 0
        %5692 = vmatpush1.bf16.msra.mxu0 %v5623
        %5693 = vmatprep.subr.bf16.mxu0 0
        %5694 = vmatpush1.bf16.msra.mxu0 %v5624
        %5695 = vmatprep.subr.bf16.mxu0 0
        %5696 = vmatpush1.bf16.msra.mxu0 %v5625
        %5697 = vmatprep.subr.bf16.mxu0 0
        %5698 = vmatpush1.bf16.msra.mxu0 %v5626
        %5699 = vmatprep.subr.bf16.mxu0 0
        %5700 = vmatpush1.bf16.msra.mxu0 %v5627
        %5701 = vmatprep.subr.bf16.mxu0 0
        %5702 = vmatpush1.bf16.msra.mxu0 %v5628
        %5703 = vmatprep.subr.bf16.mxu0 0
        %5704 = vmatpush1.bf16.msra.mxu0 %v5629
        %5705 = vmatprep.subr.bf16.mxu0 0
        %5706 = vmatpush1.bf16.msra.mxu0 %v5630
        %5707 = vmatprep.subr.bf16.mxu0 0
        %5708 = vmatpush1.bf16.msra.mxu0 %v5631
        %5709 = vmatprep.subr.bf16.mxu0 0
        %5710 = vmatpush1.bf16.msra.mxu0 %v5632
        %5711 = vmatprep.subr.bf16.mxu0 0
        %5712 = vmatpush1.bf16.msra.mxu0 %v5633
        %5713 = vmatprep.subr.bf16.mxu0 0
        %5714 = vmatpush1.bf16.msra.mxu0 %v5634
        %5715 = vmatprep.mubr.bf16.mxu0 %v5389
        %5716 = vmatmul.mubr.bf16.gmra.mrb[0].mxu0 %v5388
        %v5717 = vpop.f32.mrb[0].mxu0
        %v5718 = vadd.f32 %v5489, %v5717
        %v5719 = vpop.f32.mrb[0].mxu0
        %v5720 = vpop.f32.mrb[0].mxu0
        %v5721 = vadd.f32 %v5489, %v5720
        %v5722 = vpop.f32.mrb[0].mxu0
        %5723 = vmatprep.mubr.bf16.mxu0 %v5393
        %5724 = vmatmul.mubr.bf16.gmra.mrb[0].mxu0 %v5392
        %v5725 = vpop.f32.mrb[0].mxu0
        %v5726 = vadd.f32 %v5489, %v5725
        %v5727 = vpop.f32.mrb[0].mxu0
        %v5728 = vpop.f32.mrb[0].mxu0
        %v5729 = vadd.f32 %v5489, %v5728
        %v5730 = vpop.f32.mrb[0].mxu0
        %5731 = vmatprep.mubr.bf16.mxu0 %v5397
        %5732 = vmatmul.mubr.bf16.gmra.mrb[0].mxu0 %v5396
        %v5733 = vpop.f32.mrb[0].mxu0
        %v5734 = vadd.f32 %v5489, %v5733
        %v5735 = vpop.f32.mrb[0].mxu0
        %v5736 = vpop.f32.mrb[0].mxu0
        %v5737 = vadd.f32 %v5489, %v5736
        %v5738 = vpop.f32.mrb[0].mxu0
        %5739 = vmatprep.mubr.bf16.mxu0 %v5401
        %5740 = vmatmul.mubr.bf16.gmra.mrb[0].mxu0 %v5400
        %v5741 = vpop.f32.mrb[0].mxu0
        %v5742 = vadd.f32 %v5489, %v5741
        %v5743 = vpop.f32.mrb[0].mxu0
        %v5744 = vpop.f32.mrb[0].mxu0
        %v5745 = vadd.f32 %v5489, %v5744
        %v5746 = vpop.f32.mrb[0].mxu0
        %5747 = vmatprep.mubr.bf16.mxu0 %v5405
        %5748 = vmatmul.mubr.bf16.gmra.mrb[0].mxu0 %v5404
        %v5749 = vpop.f32.mrb[0].mxu0
        %v5750 = vadd.f32 %v5489, %v5749
        %v5751 = vpop.f32.mrb[0].mxu0
        %v5752 = vpop.f32.mrb[0].mxu0
        %v5753 = vadd.f32 %v5489, %v5752
        %v5754 = vpop.f32.mrb[0].mxu0
        %5755 = vmatprep.mubr.bf16.mxu0 %v5409
        %5756 = vmatmul.mubr.bf16.gmra.mrb[0].mxu0 %v5408
        %v5757 = vpop.f32.mrb[0].mxu0
        %v5758 = vadd.f32 %v5489, %v5757
        %v5759 = vpop.f32.mrb[0].mxu0
        %v5760 = vpop.f32.mrb[0].mxu0
        %v5761 = vadd.f32 %v5489, %v5760
        %v5762 = vpop.f32.mrb[0].mxu0
        %5763 = vmatprep.mubr.bf16.mxu0 %v5413
        %5764 = vmatmul.mubr.bf16.gmra.mrb[0].mxu0 %v5412
        %v5765 = vpop.f32.mrb[0].mxu0
        %v5766 = vadd.f32 %v5489, %v5765
        %v5767 = vpop.f32.mrb[0].mxu0
        %v5768 = vpop.f32.mrb[0].mxu0
        %v5769 = vadd.f32 %v5489, %v5768
        %v5770 = vpop.f32.mrb[0].mxu0
        %5771 = vmatprep.mubr.bf16.mxu0 %v5417
        %5772 = vmatmul.mubr.bf16.gmra.mrb[0].mxu0 %v5416
        %v5773 = vpop.f32.mrb[0].mxu0
        %v5774 = vadd.f32 %v5489, %v5773
        %v5775 = vpop.f32.mrb[0].mxu0
        %v5776 = vpop.f32.mrb[0].mxu0
        %v5777 = vadd.f32 %v5489, %v5776
        %v5778 = vpop.f32.mrb[0].mxu0
        %5779 = vdwg.mxu0
        %5780 = vmatprep.subr.bf16.mxu0 0
        %5781 = vmatpush1.bf16.msra.mxu0 %v5635
        %5782 = vmatprep.subr.bf16.mxu0 0
        %5783 = vmatpush1.bf16.msra.mxu0 %v5636
        %5784 = vmatprep.subr.bf16.mxu0 0
        %5785 = vmatpush1.bf16.msra.mxu0 %v5637
        %5786 = vmatprep.subr.bf16.mxu0 0
        %5787 = vmatpush1.bf16.msra.mxu0 %v5638
        %5788 = vmatprep.subr.bf16.mxu0 0
        %5789 = vmatpush1.bf16.msra.mxu0 %v5639
        %5790 = vmatprep.subr.bf16.mxu0 0
        %5791 = vmatpush1.bf16.msra.mxu0 %v5640
        %5792 = vmatprep.subr.bf16.mxu0 0
        %5793 = vmatpush1.bf16.msra.mxu0 %v5641
        %5794 = vmatprep.subr.bf16.mxu0 0
        %5795 = vmatpush1.bf16.msra.mxu0 %v5642
        %5796 = vmatprep.subr.bf16.mxu0 0
        %5797 = vmatpush1.bf16.msra.mxu0 %v5643
        %5798 = vmatprep.subr.bf16.mxu0 0
        %5799 = vmatpush1.bf16.msra.mxu0 %v5644
        %5800 = vmatprep.subr.bf16.mxu0 0
        %5801 = vmatpush1.bf16.msra.mxu0 %v5645
        %5802 = vmatprep.subr.bf16.mxu0 0
        %5803 = vmatpush1.bf16.msra.mxu0 %v5646
        %5804 = vmatprep.subr.bf16.mxu0 0
        %5805 = vmatpush1.bf16.msra.mxu0 %v5647
        %5806 = vmatprep.subr.bf16.mxu0 0
        %5807 = vmatpush1.bf16.msra.mxu0 %v5648
        %5808 = vmatprep.subr.bf16.mxu0 0
        %5809 = vmatpush1.bf16.msra.mxu0 %v5649
        %5810 = vmatprep.subr.bf16.mxu0 0
        %5811 = vmatpush1.bf16.msra.mxu0 %v5650
        %5812 = vmatprep.mubr.bf16.mxu0 %v5391
        %5813 = vmatmul.mubr.bf16.gmra.mrb[0].mxu0 %v5390
        %v5814 = vpop.f32.mrb[0].mxu0
        %v5815 = vadd.f32 %v5718, %v5814
        %v5816 = vpop.f32.mrb[0].mxu0
        %v5817 = vpop.f32.mrb[0].mxu0
        %v5818 = vadd.f32 %v5721, %v5817
        %v5819 = vpop.f32.mrb[0].mxu0
        %5820 = vmatprep.mubr.bf16.mxu0 %v5395
        %5821 = vmatmul.mubr.bf16.gmra.mrb[0].mxu0 %v5394
        %v5822 = vpop.f32.mrb[0].mxu0
        %v5823 = vadd.f32 %v5726, %v5822
        %v5824 = vpop.f32.mrb[0].mxu0
        %v5825 = vpop.f32.mrb[0].mxu0
        %v5826 = vadd.f32 %v5729, %v5825
        %v5827 = vpop.f32.mrb[0].mxu0
        %5828 = vmatprep.mubr.bf16.mxu0 %v5399
        %5829 = vmatmul.mubr.bf16.gmra.mrb[0].mxu0 %v5398
        %v5830 = vpop.f32.mrb[0].mxu0
        %v5831 = vadd.f32 %v5734, %v5830
        %v5832 = vpop.f32.mrb[0].mxu0
        %v5833 = vpop.f32.mrb[0].mxu0
        %v5834 = vadd.f32 %v5737, %v5833
        %v5835 = vpop.f32.mrb[0].mxu0
        %5836 = vmatprep.mubr.bf16.mxu0 %v5403
        %5837 = vmatmul.mubr.bf16.gmra.mrb[0].mxu0 %v5402
        %v5838 = vpop.f32.mrb[0].mxu0
        %v5839 = vadd.f32 %v5742, %v5838
        %v5840 = vpop.f32.mrb[0].mxu0
        %v5841 = vpop.f32.mrb[0].mxu0
        %v5842 = vadd.f32 %v5745, %v5841
        %v5843 = vpop.f32.mrb[0].mxu0
        %5844 = vmatprep.mubr.bf16.mxu0 %v5407
        %5845 = vmatmul.mubr.bf16.gmra.mrb[0].mxu0 %v5406
        %v5846 = vpop.f32.mrb[0].mxu0
        %v5847 = vadd.f32 %v5750, %v5846
        %v5848 = vpop.f32.mrb[0].mxu0
        %v5849 = vpop.f32.mrb[0].mxu0
        %v5850 = vadd.f32 %v5753, %v5849
        %v5851 = vpop.f32.mrb[0].mxu0
        %5852 = vmatprep.mubr.bf16.mxu0 %v5411
        %5853 = vmatmul.mubr.bf16.gmra.mrb[0].mxu0 %v5410
        %v5854 = vpop.f32.mrb[0].mxu0
        %v5855 = vadd.f32 %v5758, %v5854
        %v5856 = vpop.f32.mrb[0].mxu0
        %v5857 = vpop.f32.mrb[0].mxu0
        %v5858 = vadd.f32 %v5761, %v5857
        %v5859 = vpop.f32.mrb[0].mxu0
        %5860 = vmatprep.mubr.bf16.mxu0 %v5415
        %5861 = vmatmul.mubr.bf16.gmra.mrb[0].mxu0 %v5414
        %v5862 = vpop.f32.mrb[0].mxu0
        %v5863 = vadd.f32 %v5766, %v5862
        %v5864 = vpop.f32.mrb[0].mxu0
        %v5865 = vpop.f32.mrb[0].mxu0
        %v5866 = vadd.f32 %v5769, %v5865
        %v5867 = vpop.f32.mrb[0].mxu0
        %5868 = vmatprep.mubr.bf16.mxu0 %v5419
        %5869 = vmatmul.mubr.bf16.gmra.mrb[0].mxu0 %v5418
        %v5870 = vpop.f32.mrb[0].mxu0
        %v5871 = vadd.f32 %v5774, %v5870
        %v5872 = vpop.f32.mrb[0].mxu0
        %v5873 = vpop.f32.mrb[0].mxu0
        %v5874 = vadd.f32 %v5777, %v5873
        %v5875 = vpop.f32.mrb[0].mxu0
        %5876 = vdwg.mxu0
        %5877 = vst [vmem:[%s343] sm:$0xff] %v5815
        %5878 = vst [vmem:[%s343 + $0x8] sm:$0xff] %v5818
        %5879 = vst [vmem:[%s343 + $0x10] sm:$0xff] %v5823
        %5880 = vst [vmem:[%s343 + $0x18] sm:$0xff] %v5826
        %5881 = vst [vmem:[%s343 + $0x20] sm:$0xff] %v5831
        %5882 = vst [vmem:[%s343 + $0x28] sm:$0xff] %v5834
        %5883 = vst [vmem:[%s343 + $0x30] sm:$0xff] %v5839
        %5884 = vst [vmem:[%s343 + $0x38] sm:$0xff] %v5842
        %5885 = vst [vmem:[%s343 + $0x40] sm:$0xff] %v5847
        %5886 = vst [vmem:[%s343 + $0x48] sm:$0xff] %v5850
        %5887 = vst [vmem:[%s343 + $0x50] sm:$0xff] %v5855
        %5888 = vst [vmem:[%s343 + $0x58] sm:$0xff] %v5858
        %5889 = vst [vmem:[%s343 + $0x60] sm:$0xff] %v5863
        %5890 = vst [vmem:[%s343 + $0x68] sm:$0xff] %v5866
        %5891 = vst [vmem:[%s343 + $0x70] sm:$0xff] %v5871
        %5892 = vst [vmem:[%s343 + $0x78] sm:$0xff] %v5874
        %s5893 = sand.u32 %s226, 1
        %s5894 = scalar_lea.sflag [#allocation4], %s5893
        %s5895 = sand.u32 %s226, 1
        %s5896 = smul.addr %s5895, 128
        %s5897 = scalar_lea.vmem [#allocation5], %s5896
        // Predicated region
        $region61: #{tpu_custom_call.1} parent=55 // pred_check
          %p5898 = pneg %p236
        $region62: #{tpu_custom_call.1} parent=55 // pred_check_branch
          %5900 = sbr.rel (%p5898) target = $region64
        $region63: #{tpu_custom_call.1} parent=55 // pred_region
          %s5901 = smul.u32 16, %s24
          %s5903 = ssub.s32 2048, 2048
          %5904 = vsyncadd %s5894, %s5903
          %s5905 = smul.addr %s5901, 128
          %s5906 = scalar_lea.hbm %s9, %s5905
          %s5907 = sshll.u32 %s5897, 4
          %s5908 = int_to_ptr.vmem [resolvable:$true] %s5907
          %5913 = dma.vmem_to_hbm [thread:$0]  %s5908, 2048, %s5906, %s5894, 128, 128, 8
        $region64: #{tpu_custom_call.1} parent=55 // pred_fallthru
          _
      $region56: #{tpu_custom_call.1} parent=5 // pred_fallthru
        _
      %p5914 = scmp.le.s32.totalorder 2, %s19
      // Predicated region
      $region65: #{tpu_custom_call.1} parent=5 // pred_check
        %p5915 = pneg %p5914
      $region66: #{tpu_custom_call.1} parent=5 // pred_check_branch
        %5917 = sbr.rel (%p5915) target = $region68
      $region67: #{tpu_custom_call.1} parent=5 // pred_region
        %s5918 = ssub.s32 %s19, 2
        // Predicated region
        $region69: #{tpu_custom_call.1} parent=67 // pred_check
          %p5919 = pneg %p242
        $region70: #{tpu_custom_call.1} parent=67 // pred_check_branch
          %5921 = sbr.rel (%p5919) target = $region72
        $region71: #{tpu_custom_call.1} parent=67 // pred_region
          %s5922 = sand.u32 %s227, 1
          %s5923 = scalar_lea.sflag [#allocation4], %s5922
          %s5924 = sand.u32 %s227, 1
          %s5925 = smul.addr %s5924, 128
          %s5926 = scalar_lea.vmem [#allocation5], %s5925
          %5927 = dma.done %s5923, 2048
        $region72: #{tpu_custom_call.1} parent=67 // pred_fallthru
          _
      $region68: #{tpu_custom_call.1} parent=5 // pred_fallthru
        _
    $region6: #{tpu_custom_call.1} parent=1 // loop_footer
      %s23 = sadd.s32 1, %s19
    $region7: #{tpu_custom_call.1} parent=1 // loop_footer_branch
      %18 = sbr.rel target = $region3
    $region8: #{tpu_custom_call.1} parent=1 // loop_exit
      _
    %5928 = vsyncpa [#allocation3], 1
    %s5929 = scalar_lea.sflag [#allocation3], 1
    %5930 = vsyncpa %s5929, 1
    %5931 = vsyncpa [#allocation4], 1
    %s5932 = scalar_lea.sflag [#allocation4], 1
    %5933 = vsyncpa %s5932, 1

</llo_original>
